<compile_context>
chip_gen: v6e
topology: v6e:2x2x1
jax: 0.10.0
libtpu: 0.0.40
codegen_flags: <defaults>
</compile_context>

<pallas_src>
import functools
import math

import jax
import jax.numpy as jnp
import numpy as np
from jax.experimental import pallas as pl
from jax.experimental.pallas import tpu as pltpu

EPS = 1e-5


def _vmem_spec():
    # Whole (small) array resident in VMEM, single grid point.
    return pl.BlockSpec(memory_space=pltpu.MemorySpace.VMEM)


# --------------------------- in-kernel helpers ------------------------------ #

def _bn_rows(a, sel_ref, selT_ref, g_ref, b_ref, count):
    """Training-mode BN factors computed from lane-dense rows.

    a:    (M, (W+2)*C) fp32 with *zero* padding lanes.
    sel:  ((W+2)*C, C) 0/1 matrix summing interior w positions per channel.
    selT: (C, (W+2)*C) transpose (expands channel vectors back to lanes,
          leaving padding lanes at zero).
    Returns (scale_row, shift_row), each (1, (W+2)*C), such that
    a * scale_row + shift_row applies BN to interior lanes and keeps the
    padding lanes at exactly zero.
    """
    inv = 1.0 / count
    col_s = jnp.sum(a, axis=0, keepdims=True)            # (1, (W+2)*C)
    col_ss = jnp.sum(a * a, axis=0, keepdims=True)
    mean = jnp.dot(col_s, sel_ref[...], preferred_element_type=jnp.float32) * inv
    ex2 = jnp.dot(col_ss, sel_ref[...], preferred_element_type=jnp.float32) * inv
    var = jnp.maximum(ex2 - mean * mean, 0.0)             # clamp one-pass var
    scale = g_ref[...] * jax.lax.rsqrt(var + EPS)         # (1, C)
    shift = b_ref[...] - mean * scale
    scale_row = jnp.dot(scale, selT_ref[...], preferred_element_type=jnp.float32)
    shift_row = jnp.dot(shift, selT_ref[...], preferred_element_type=jnp.float32)
    return scale_row, shift_row


# ------------------------------ fused kernel ------------------------------- #

def fused_cnn_kernel(*refs, depth, N, H, W, Cin, width):
    """Entire CNN forward in one kernel (lane-dense layout).

    Ref order:
      xp (N*H, (W+2)*Cin),
      sel_in ((W+2)*Cin, Cin), selT_in (Cin, (W+2)*Cin),
      in_gamma (1, Cin), in_beta (1, Cin),
      sel_w ((W+2)*width, width), selT_w (width, (W+2)*width),
      [B_i (3, (W+2)*Cin_i, (W+2)*width), bias_i (1, (W+2)*width),
       gamma_i (1, width), beta_i (1, width)]                x (depth-1)
      Cf (3, (W+2)*width, Kout), bias_f (1, Kout),
      out (N, Kout),
      scratch: pad_a (N, H+2, (W+2)*Cin), pad_b / pad_c (N, H+2, (W+2)*width)
    """
    f32 = jnp.float32
    nl = 4 * (depth - 1)
    (xp_ref, sel_in_ref, selT_in_ref, g_in_ref, b_in_ref,
     sel_w_ref, selT_w_ref) = refs[0:7]
    layer_refs = refs[7:7 + nl]
    cf_ref, bf_ref = refs[7 + nl:9 + nl]
    out_ref = refs[9 + nl]
    pad_a_ref, pad_b_ref, pad_c_ref = refs[10 + nl:13 + nl]

    L_in = (W + 2) * Cin
    L_w = (W + 2) * width
    m_pix = N * H * W

    # Zero ONLY the two h-border rows of each padded buffer; the w-padding
    # lanes come out as exact zeros from the banded matmuls / masked BN rows.
    for ref, lanes in ((pad_a_ref, L_in), (pad_b_ref, L_w), (pad_c_ref, L_w)):
        ref[:, 0:1, :] = jnp.zeros((N, 1, lanes), f32)
        ref[:, H + 1:H + 2, :] = jnp.zeros((N, 1, lanes), f32)

    # ---- Stage A: input BatchNorm (batch stats) -> pad_a interior. --------
    x = xp_ref[...]                                        # (N*H, (W+2)*Cin)
    sc, sh = _bn_rows(x, sel_in_ref, selT_in_ref, g_in_ref, b_in_ref, m_pix)
    pad_a_ref[:, 1:H + 1, :] = (x * sc + sh).reshape(N, H, L_in)

    # ---- Stage B: (conv3x3 'same' -> ReLU -> BatchNorm) x (depth-1). ------
    # Each conv = 3 banded matmuls (one per kernel row dy); the LHS is a
    # contiguous row-slab of the padded activation, no im2col staging.
    cur, l_cur = pad_a_ref, L_in
    dsts = (pad_b_ref, pad_c_ref)
    for i in range(depth - 1):
        b_ref, bias_ref, g_ref, be_ref = layer_refs[4 * i:4 * i + 4]
        dst = dsts[i % 2]
        acc = jnp.zeros((N * H, L_w), f32)
        for dy in range(3):
            lhs = cur[:, dy:dy + H, :].reshape(N * H, l_cur)
            acc = acc + jnp.dot(lhs, b_ref[dy], preferred_element_type=f32)
        a = jnp.maximum(acc + bias_ref[...], 0.0)          # bias + ReLU
        sc, sh = _bn_rows(a, sel_w_ref, selT_w_ref, g_ref, be_ref, m_pix)
        dst[:, 1:H + 1, :] = (a * sc + sh).reshape(N, H, L_w)
        cur, l_cur = dst, L_w

    # ---- Stage C: final 3x3 'valid' conv + spatial mean, via linearity:
    # per-dy row-sums through w-summed banded matrices, then one tiny matmul.
    Ho, Wo = H - 2, W - 2
    kout = out_ref.shape[-1]
    acc = jnp.zeros((N, kout), f32)
    for dy in range(3):
        r = jnp.sum(cur[:, 1 + dy:1 + dy + Ho, :], axis=1)  # (N, (W+2)*width)
        acc = acc + jnp.dot(r, cf_ref[dy], preferred_element_type=f32)
    out_ref[...] = (acc * (1.0 / (Ho * Wo)) + bf_ref[...]).astype(out_ref.dtype)


# --------------------- host-side (wrapper) weight prep ---------------------- #

def _build_banded_same(w, W):
    """PyTorch conv weight (Cout, Cin, 3, 3) -> (3, (W+2)*Cin, (W+2)*Cout)
    banded matrices (one per kernel row dy) for a 3x3 'same' conv in the
    lane-dense layout (lane = w*C + c).  Columns at the two w-padding output
    positions are zero, so the matmul also writes the next layer's w-pad."""
    w = np.asarray(w, np.float32)
    cout, cin = w.shape[0], w.shape[1]
    wt = np.transpose(w, (2, 3, 1, 0))                      # (dy, dx, Cin, Cout)
    mats = []
    for dy in range(3):
        b = np.zeros((W + 2, cin, W + 2, cout), np.float32)
        for w_out in range(W):                               # real output col
            for dx in range(3):
                b[w_out + dx, :, w_out + 1, :] = wt[dy, dx]
        mats.append(b.reshape((W + 2) * cin, (W + 2) * cout))
    return np.stack(mats)


def _build_banded_final(w, W):
    """Final (valid) conv weight (Kout, Cin, 3, 3) -> (3, (W+2)*Cin, Kout)
    matrices already summed over output w positions (for the spatial mean)."""
    w = np.asarray(w, np.float32)
    kout, cin = w.shape[0], w.shape[1]
    wt = np.transpose(w, (2, 3, 1, 0))                       # (dy, dx, Cin, Kout)
    wo = W - 2
    mats = []
    for dy in range(3):
        c = np.zeros((W + 2, cin, kout), np.float32)
        for w_pad in range(W + 2):
            for dx in range(3):
                if 0 <= w_pad - 1 - dx < wo:
                    c[w_pad] += wt[dy, dx]
        mats.append(c.reshape((W + 2) * cin, kout))
    return np.stack(mats)


def _build_sel(W, C):
    """0/1 lane->channel selection matrix ((W+2)*C, C) over interior w, and
    its transpose (channel->lane expansion, zero at padding lanes)."""
    sel = np.zeros((W + 2, C, C), np.float32)
    sel[1:W + 1] = np.eye(C, dtype=np.float32)
    sel = sel.reshape((W + 2) * C, C)
    return sel, np.ascontiguousarray(sel.T)


def _pad_bias(b, W):
    c = np.asarray(b, np.float32).reshape(-1)
    bp = np.zeros((W + 2, c.shape[0]), np.float32)
    bp[1:W + 1, :] = c
    return bp.reshape(1, -1)


# ------------------------------ JAX wrapper -------------------------------- #

def cnn_forward(x_nchw, params, depth, output_dimensions):
    N, Cin, H, W = x_nchw.shape
    width = params["conv_w"][0].shape[0]
    Kout = params["final_w"].shape[0]

    # Lane-dense, w-padded input rows: NCHW -> NHWC -> (N*H, (W+2)*Cin).
    x = jnp.transpose(x_nchw, (0, 2, 3, 1)).astype(jnp.float32)
    xp = jnp.pad(x, ((0, 0), (0, 0), (1, 1), (0, 0))).reshape(N * H, (W + 2) * Cin)

    sel_in, selT_in = _build_sel(W, Cin)
    sel_w, selT_w = _build_sel(W, width)

    args = [xp,
            jnp.asarray(sel_in), jnp.asarray(selT_in),
            params["in_bn_gamma"].reshape(1, Cin).astype(jnp.float32),
            params["in_bn_beta"].reshape(1, Cin).astype(jnp.float32),
            jnp.asarray(sel_w), jnp.asarray(selT_w)]
    for i in range(depth - 1):
        args += [jnp.asarray(_build_banded_same(params["conv_w"][i], W)),
                 jnp.asarray(_pad_bias(params["conv_b"][i], W)),
                 params["bn_gamma"][i].reshape(1, width).astype(jnp.float32),
                 params["bn_beta"][i].reshape(1, width).astype(jnp.float32)]
    args += [jnp.asarray(_build_banded_final(params["final_w"], W)),
             params["final_b"].reshape(1, Kout).astype(jnp.float32)]

    out = pl.pallas_call(
        functools.partial(fused_cnn_kernel, depth=depth, N=N, H=H, W=W,
                          Cin=Cin, width=width),
        out_shape=jax.ShapeDtypeStruct((N, Kout), jnp.float32),
        in_specs=[_vmem_spec()] * len(args),
        out_specs=_vmem_spec(),
        scratch_shapes=[
            pltpu.VMEM((N, H + 2, (W + 2) * Cin), jnp.float32),    # BN'd input
            pltpu.VMEM((N, H + 2, (W + 2) * width), jnp.float32),  # ping
            pltpu.VMEM((N, H + 2, (W + 2) * width), jnp.float32),  # pong
        ],
        compiler_params=pltpu.CompilerParams(vmem_limit_bytes=32 * 1024 * 1024),
    )(*args)
    return out.reshape((N,) + tuple(output_dimensions))


# ----------------------------- pure-JAX reference --------------------------- #

def ref_forward(x_nchw, params, depth, output_dimensions):
    x = jnp.transpose(x_nchw, (0, 2, 3, 1)).astype(jnp.float32)

    def bn(x, g, b):
        m = jnp.mean(x, axis=(0, 1, 2), keepdims=True)
        v = jnp.mean((x - m) ** 2, axis=(0, 1, 2), keepdims=True)
        return (x - m) * jax.lax.rsqrt(v + EPS) * g.reshape(1, 1, 1, -1) + b.reshape(1, 1, 1, -1)

    def conv(x, w, b, same):
        wn = jnp.transpose(w, (2, 3, 1, 0))  # HWIO
        pad = [(1, 1), (1, 1)] if same else [(0, 0), (0, 0)]
        y = jax.lax.conv_general_dilated(
            x, wn, (1, 1), pad, dimension_numbers=("NHWC", "HWIO", "NHWC"),
            precision=jax.lax.Precision.HIGHEST)
        return y + b.reshape(1, 1, 1, -1)

    x = bn(x, params["in_bn_gamma"], params["in_bn_beta"])
    for i in range(depth - 1):
        x = bn(jnp.maximum(conv(x, params["conv_w"][i], params["conv_b"][i], True), 0.0),
               params["bn_gamma"][i], params["bn_beta"][i])
    x = conv(x, params["final_w"], params["final_b"], False)
    return jnp.mean(x, axis=(1, 2)).reshape((x.shape[0],) + tuple(output_dimensions))


# ----------------------------------- main ----------------------------------- #

def init_params(key, width, depth, input_dimensions, output_dimensions):
    cin = input_dimensions[0]
    kout = int(math.prod(output_dimensions))
    params = {
        "in_bn_gamma": jnp.ones((cin,), jnp.float32),
        "in_bn_beta": jnp.zeros((cin,), jnp.float32),
        "conv_w": [], "conv_b": [],
        "bn_gamma": [], "bn_beta": [],
    }
    keys = jax.random.split(key, 2 * (depth - 1) + 2)
    prev = cin
    for i in range(depth - 1):
        fan_in = prev * 9
        params["conv_w"].append(
            jax.random.normal(keys[2 * i], (width, prev, 3, 3), jnp.float32) / math.sqrt(fan_in))
        params["conv_b"].append(
            0.01 * jax.random.normal(keys[2 * i + 1], (width,), jnp.float32))
        params["bn_gamma"].append(jnp.ones((width,), jnp.float32))
        params["bn_beta"].append(jnp.zeros((width,), jnp.float32))
        prev = width
    params["final_w"] = jax.random.normal(keys[-2], (kout, width, 3, 3), jnp.float32) / math.sqrt(width * 9)
    params["final_b"] = 0.01 * jax.random.normal(keys[-1], (kout,), jnp.float32)
    return params


if __name__ == "__main__":
    # Small, self-consistent config: act=ReLU, width=16, depth=3,
    # input_dimensions=(4, 16, 16), output_dimensions=(10,), batch=2.
    width, depth = 16, 3
    input_dimensions = (4, 16, 16)
    output_dimensions = (10,)
    batch = 2

    key = jax.random.PRNGKey(0)
    kx, kp = jax.random.split(key)
    x = jax.random.normal(kx, (batch,) + input_dimensions, jnp.float32)  # NCHW like PyTorch
    params = init_params(kp, width, depth, input_dimensions, output_dimensions)

    out = jax.block_until_ready(cnn_forward(x, params, depth, output_dimensions))
    ref = jax.block_until_ready(ref_forward(x, params, depth, output_dimensions))

    assert out.shape == (batch,) + output_dimensions, out.shape
    assert jnp.allclose(out, ref, rtol=1e-4, atol=1e-4), (out, ref)

    print("KERNEL_OK")
</pallas_src>

<mosaic_0001>
module attributes {stable_mosaic.version = 11 : i64} {
  func.func @fused_cnn_kernel(%arg0: memref<32x72xf32, #tpu.memory_space<vmem>>, %arg1: memref<72x4xf32, #tpu.memory_space<vmem>>, %arg2: memref<4x72xf32, #tpu.memory_space<vmem>>, %arg3: memref<1x4xf32, #tpu.memory_space<vmem>>, %arg4: memref<1x4xf32, #tpu.memory_space<vmem>>, %arg5: memref<288x16xf32, #tpu.memory_space<vmem>>, %arg6: memref<16x288xf32, #tpu.memory_space<vmem>>, %arg7: memref<3x72x288xf32, #tpu.memory_space<vmem>>, %arg8: memref<1x288xf32, #tpu.memory_space<vmem>>, %arg9: memref<1x16xf32, #tpu.memory_space<vmem>>, %arg10: memref<1x16xf32, #tpu.memory_space<vmem>>, %arg11: memref<3x288x288xf32, #tpu.memory_space<vmem>>, %arg12: memref<1x288xf32, #tpu.memory_space<vmem>>, %arg13: memref<1x16xf32, #tpu.memory_space<vmem>>, %arg14: memref<1x16xf32, #tpu.memory_space<vmem>>, %arg15: memref<3x288x10xf32, #tpu.memory_space<vmem>>, %arg16: memref<1x10xf32, #tpu.memory_space<vmem>>, %arg17: memref<2x10xf32, #tpu.memory_space<vmem>>, %arg18: memref<2x18x72xf32, #tpu.memory_space<vmem>>, %arg19: memref<2x18x288xf32, #tpu.memory_space<vmem>>, %arg20: memref<2x18x288xf32, #tpu.memory_space<vmem>>) attributes {dimension_semantics = [], scalar_prefetch = 0 : i64, scratch_operands = 3 : i64, tpu.core_type = #tpu.core_type<tc>} {
    %cst = arith.constant 0.000000e+00 : f32
    %0 = vector.broadcast %cst : f32 to vector<2x1x72xf32>
    %c0 = arith.constant 0 : index
    %c0_0 = arith.constant 0 : index
    %c0_1 = arith.constant 0 : index
    %1 = vector.load %arg18[%c0, %c0_0, %c0_1] : memref<2x18x72xf32, #tpu.memory_space<vmem>>, vector<2x1x72xf32>
    tpu.vector_store %arg18[%c0, %c0_0, %c0_1], %0 {strides = array<i32>} : memref<2x18x72xf32, #tpu.memory_space<vmem>>, vector<2x1x72xf32>,
    %cst_2 = arith.constant 0.000000e+00 : f32
    %2 = vector.broadcast %cst_2 : f32 to vector<2x1x72xf32>
    %c0_3 = arith.constant 0 : index
    %c17 = arith.constant 17 : index
    %c0_4 = arith.constant 0 : index
    %3 = vector.load %arg18[%c0_3, %c17, %c0_4] : memref<2x18x72xf32, #tpu.memory_space<vmem>>, vector<2x1x72xf32>
    tpu.vector_store %arg18[%c0_3, %c17, %c0_4], %2 {strides = array<i32>} : memref<2x18x72xf32, #tpu.memory_space<vmem>>, vector<2x1x72xf32>,
    %cst_5 = arith.constant 0.000000e+00 : f32
    %4 = vector.broadcast %cst_5 : f32 to vector<2x1x288xf32>
    %c0_6 = arith.constant 0 : index
    %c0_7 = arith.constant 0 : index
    %c0_8 = arith.constant 0 : index
    %5 = vector.load %arg19[%c0_6, %c0_7, %c0_8] : memref<2x18x288xf32, #tpu.memory_space<vmem>>, vector<2x1x288xf32>
    tpu.vector_store %arg19[%c0_6, %c0_7, %c0_8], %4 {strides = array<i32>} : memref<2x18x288xf32, #tpu.memory_space<vmem>>, vector<2x1x288xf32>,
    %cst_9 = arith.constant 0.000000e+00 : f32
    %6 = vector.broadcast %cst_9 : f32 to vector<2x1x288xf32>
    %c0_10 = arith.constant 0 : index
    %c17_11 = arith.constant 17 : index
    %c0_12 = arith.constant 0 : index
    %7 = vector.load %arg19[%c0_10, %c17_11, %c0_12] : memref<2x18x288xf32, #tpu.memory_space<vmem>>, vector<2x1x288xf32>
    tpu.vector_store %arg19[%c0_10, %c17_11, %c0_12], %6 {strides = array<i32>} : memref<2x18x288xf32, #tpu.memory_space<vmem>>, vector<2x1x288xf32>,
    %cst_13 = arith.constant 0.000000e+00 : f32
    %8 = vector.broadcast %cst_13 : f32 to vector<2x1x288xf32>
    %c0_14 = arith.constant 0 : index
    %c0_15 = arith.constant 0 : index
    %c0_16 = arith.constant 0 : index
    %9 = vector.load %arg20[%c0_14, %c0_15, %c0_16] : memref<2x18x288xf32, #tpu.memory_space<vmem>>, vector<2x1x288xf32>
    tpu.vector_store %arg20[%c0_14, %c0_15, %c0_16], %8 {strides = array<i32>} : memref<2x18x288xf32, #tpu.memory_space<vmem>>, vector<2x1x288xf32>,
    %cst_17 = arith.constant 0.000000e+00 : f32
    %10 = vector.broadcast %cst_17 : f32 to vector<2x1x288xf32>
    %c0_18 = arith.constant 0 : index
    %c17_19 = arith.constant 17 : index
    %c0_20 = arith.constant 0 : index
    %11 = vector.load %arg20[%c0_18, %c17_19, %c0_20] : memref<2x18x288xf32, #tpu.memory_space<vmem>>, vector<2x1x288xf32>
    tpu.vector_store %arg20[%c0_18, %c17_19, %c0_20], %10 {strides = array<i32>} : memref<2x18x288xf32, #tpu.memory_space<vmem>>, vector<2x1x288xf32>,
    %c0_21 = arith.constant 0 : index
    %c0_22 = arith.constant 0 : index
    %12 = vector.load %arg0[%c0_21, %c0_22] : memref<32x72xf32, #tpu.memory_space<vmem>>, vector<32x72xf32>
    %cst_23 = arith.constant dense<0.000000e+00> : vector<72xf32>
    %13 = vector.multi_reduction <add>, %12, %cst_23 [0] : vector<32x72xf32> to vector<72xf32>
    %14 = vector.shape_cast %13 : vector<72xf32> to vector<1x72xf32>
    %15 = arith.mulf %12, %12 : vector<32x72xf32>
    %cst_24 = arith.constant dense<0.000000e+00> : vector<72xf32>
    %16 = vector.multi_reduction <add>, %15, %cst_24 [0] : vector<32x72xf32> to vector<72xf32>
    %17 = vector.shape_cast %16 : vector<72xf32> to vector<1x72xf32>
    %c0_25 = arith.constant 0 : index
    %c0_26 = arith.constant 0 : index
    %18 = vector.load %arg1[%c0_25, %c0_26] : memref<72x4xf32, #tpu.memory_space<vmem>>, vector<72x4xf32>
    %cst_27 = arith.constant dense<0.000000e+00> : vector<1x4xf32>
    %19 = tpu.matmul %14, %18, %cst_27 {dimension_numbers = #tpu.dot_dimension_numbers<[1], [0], [0], [1], [0, 0, 1, 1], [], []>} : vector<1x72xf32>, vector<72x4xf32>, vector<1x4xf32> -> vector<1x4xf32>
    %cst_28 = arith.constant 0.001953125 : f32
    %20 = vector.broadcast %cst_28 : f32 to vector<1x4xf32>
    %21 = arith.mulf %19, %20 : vector<1x4xf32>
    %c0_29 = arith.constant 0 : index
    %c0_30 = arith.constant 0 : index
    %22 = vector.load %arg1[%c0_29, %c0_30] : memref<72x4xf32, #tpu.memory_space<vmem>>, vector<72x4xf32>
    %cst_31 = arith.constant dense<0.000000e+00> : vector<1x4xf32>
    %23 = tpu.matmul %17, %22, %cst_31 {dimension_numbers = #tpu.dot_dimension_numbers<[1], [0], [0], [1], [0, 0, 1, 1], [], []>} : vector<1x72xf32>, vector<72x4xf32>, vector<1x4xf32> -> vector<1x4xf32>
    %cst_32 = arith.constant 0.001953125 : f32
    %24 = vector.broadcast %cst_32 : f32 to vector<1x4xf32>
    %25 = arith.mulf %23, %24 : vector<1x4xf32>
    %26 = arith.mulf %21, %21 : vector<1x4xf32>
    %27 = arith.subf %25, %26 : vector<1x4xf32>
    %cst_33 = arith.constant 0.000000e+00 : f32
    %28 = vector.broadcast %cst_33 : f32 to vector<1x4xf32>
    %29 = arith.maximumf %27, %28 : vector<1x4xf32>
    %c0_34 = arith.constant 0 : index
    %c0_35 = arith.constant 0 : index
    %30 = vector.load %arg3[%c0_34, %c0_35] : memref<1x4xf32, #tpu.memory_space<vmem>>, vector<1x4xf32>
    %cst_36 = arith.constant 9.99999974E-6 : f32
    %31 = vector.broadcast %cst_36 : f32 to vector<1x4xf32>
    %32 = arith.addf %29, %31 : vector<1x4xf32>
    %33 = math.rsqrt %32 : vector<1x4xf32>
    %34 = arith.mulf %30, %33 : vector<1x4xf32>
    %c0_37 = arith.constant 0 : index
    %c0_38 = arith.constant 0 : index
    %35 = vector.load %arg4[%c0_37, %c0_38] : memref<1x4xf32, #tpu.memory_space<vmem>>, vector<1x4xf32>
    %36 = arith.mulf %21, %34 : vector<1x4xf32>
    %37 = arith.subf %35, %36 : vector<1x4xf32>
    %c0_39 = arith.constant 0 : index
    %c0_40 = arith.constant 0 : index
    %38 = vector.load %arg2[%c0_39, %c0_40] : memref<4x72xf32, #tpu.memory_space<vmem>>, vector<4x72xf32>
    %cst_41 = arith.constant dense<0.000000e+00> : vector<1x72xf32>
    %39 = tpu.matmul %34, %38, %cst_41 {dimension_numbers = #tpu.dot_dimension_numbers<[1], [0], [0], [1], [0, 0, 1, 1], [], []>} : vector<1x4xf32>, vector<4x72xf32>, vector<1x72xf32> -> vector<1x72xf32>
    %c0_42 = arith.constant 0 : index
    %c0_43 = arith.constant 0 : index
    %40 = vector.load %arg2[%c0_42, %c0_43] : memref<4x72xf32, #tpu.memory_space<vmem>>, vector<4x72xf32>
    %cst_44 = arith.constant dense<0.000000e+00> : vector<1x72xf32>
    %41 = tpu.matmul %37, %40, %cst_44 {dimension_numbers = #tpu.dot_dimension_numbers<[1], [0], [0], [1], [0, 0, 1, 1], [], []>} : vector<1x4xf32>, vector<4x72xf32>, vector<1x72xf32> -> vector<1x72xf32>
    %42 = vector.broadcast %39 : vector<1x72xf32> to vector<32x72xf32>
    %43 = arith.mulf %12, %42 : vector<32x72xf32>
    %44 = vector.broadcast %41 : vector<1x72xf32> to vector<32x72xf32>
    %45 = arith.addf %43, %44 : vector<32x72xf32>
    %46 = vector.shape_cast %45 : vector<32x72xf32> to vector<2x16x72xf32>
    %c0_45 = arith.constant 0 : index
    %c1 = arith.constant 1 : index
    %c0_46 = arith.constant 0 : index
    %47 = vector.load %arg18[%c0_45, %c1, %c0_46] : memref<2x18x72xf32, #tpu.memory_space<vmem>>, vector<2x16x72xf32>
    tpu.vector_store %arg18[%c0_45, %c1, %c0_46], %46 {strides = array<i32>} : memref<2x18x72xf32, #tpu.memory_space<vmem>>, vector<2x16x72xf32>,
    %cst_47 = arith.constant 0.000000e+00 : f32
    %48 = vector.broadcast %cst_47 : f32 to vector<32x288xf32>
    %c0_48 = arith.constant 0 : index
    %c0_49 = arith.constant 0 : index
    %c0_50 = arith.constant 0 : index
    %49 = vector.load %arg18[%c0_48, %c0_49, %c0_50] : memref<2x18x72xf32, #tpu.memory_space<vmem>>, vector<2x16x72xf32>
    %50 = vector.shape_cast %49 : vector<2x16x72xf32> to vector<32x72xf32>
    %c0_51 = arith.constant 0 : index
    %c0_52 = arith.constant 0 : index
    %c0_53 = arith.constant 0 : index
    %51 = vector.load %arg7[%c0_51, %c0_52, %c0_53] : memref<3x72x288xf32, #tpu.memory_space<vmem>>, vector<1x72x288xf32>
    %52 = vector.shape_cast %51 : vector<1x72x288xf32> to vector<72x288xf32>
    %cst_54 = arith.constant dense<0.000000e+00> : vector<32x288xf32>
    %53 = tpu.matmul %50, %52, %cst_54 {dimension_numbers = #tpu.dot_dimension_numbers<[1], [0], [0], [1], [0, 0, 1, 1], [], []>} : vector<32x72xf32>, vector<72x288xf32>, vector<32x288xf32> -> vector<32x288xf32>
    %54 = arith.addf %48, %53 : vector<32x288xf32>
    %c0_55 = arith.constant 0 : index
    %c1_56 = arith.constant 1 : index
    %c0_57 = arith.constant 0 : index
    %55 = vector.load %arg18[%c0_55, %c1_56, %c0_57] : memref<2x18x72xf32, #tpu.memory_space<vmem>>, vector<2x16x72xf32>
    %56 = vector.shape_cast %55 : vector<2x16x72xf32> to vector<32x72xf32>
    %c1_58 = arith.constant 1 : index
    %c0_59 = arith.constant 0 : index
    %c0_60 = arith.constant 0 : index
    %57 = vector.load %arg7[%c1_58, %c0_59, %c0_60] : memref<3x72x288xf32, #tpu.memory_space<vmem>>, vector<1x72x288xf32>
    %58 = vector.shape_cast %57 : vector<1x72x288xf32> to vector<72x288xf32>
    %cst_61 = arith.constant dense<0.000000e+00> : vector<32x288xf32>
    %59 = tpu.matmul %56, %58, %cst_61 {dimension_numbers = #tpu.dot_dimension_numbers<[1], [0], [0], [1], [0, 0, 1, 1], [], []>} : vector<32x72xf32>, vector<72x288xf32>, vector<32x288xf32> -> vector<32x288xf32>
    %60 = arith.addf %54, %59 : vector<32x288xf32>
    %c0_62 = arith.constant 0 : index
    %c2 = arith.constant 2 : index
    %c0_63 = arith.constant 0 : index
    %61 = vector.load %arg18[%c0_62, %c2, %c0_63] : memref<2x18x72xf32, #tpu.memory_space<vmem>>, vector<2x16x72xf32>
    %62 = vector.shape_cast %61 : vector<2x16x72xf32> to vector<32x72xf32>
    %c2_64 = arith.constant 2 : index
    %c0_65 = arith.constant 0 : index
    %c0_66 = arith.constant 0 : index
    %63 = vector.load %arg7[%c2_64, %c0_65, %c0_66] : memref<3x72x288xf32, #tpu.memory_space<vmem>>, vector<1x72x288xf32>
    %64 = vector.shape_cast %63 : vector<1x72x288xf32> to vector<72x288xf32>
    %cst_67 = arith.constant dense<0.000000e+00> : vector<32x288xf32>
    %65 = tpu.matmul %62, %64, %cst_67 {dimension_numbers = #tpu.dot_dimension_numbers<[1], [0], [0], [1], [0, 0, 1, 1], [], []>} : vector<32x72xf32>, vector<72x288xf32>, vector<32x288xf32> -> vector<32x288xf32>
    %66 = arith.addf %60, %65 : vector<32x288xf32>
    %c0_68 = arith.constant 0 : index
    %c0_69 = arith.constant 0 : index
    %67 = vector.load %arg8[%c0_68, %c0_69] : memref<1x288xf32, #tpu.memory_space<vmem>>, vector<1x288xf32>
    %68 = vector.broadcast %67 : vector<1x288xf32> to vector<32x288xf32>
    %69 = arith.addf %66, %68 : vector<32x288xf32>
    %cst_70 = arith.constant 0.000000e+00 : f32
    %70 = vector.broadcast %cst_70 : f32 to vector<32x288xf32>
    %71 = arith.maximumf %69, %70 : vector<32x288xf32>
    %cst_71 = arith.constant dense<0.000000e+00> : vector<288xf32>
    %72 = vector.multi_reduction <add>, %71, %cst_71 [0] : vector<32x288xf32> to vector<288xf32>
    %73 = vector.shape_cast %72 : vector<288xf32> to vector<1x288xf32>
    %74 = arith.mulf %71, %71 : vector<32x288xf32>
    %cst_72 = arith.constant dense<0.000000e+00> : vector<288xf32>
    %75 = vector.multi_reduction <add>, %74, %cst_72 [0] : vector<32x288xf32> to vector<288xf32>
    %76 = vector.shape_cast %75 : vector<288xf32> to vector<1x288xf32>
    %c0_73 = arith.constant 0 : index
    %c0_74 = arith.constant 0 : index
    %77 = vector.load %arg5[%c0_73, %c0_74] : memref<288x16xf32, #tpu.memory_space<vmem>>, vector<288x16xf32>
    %cst_75 = arith.constant dense<0.000000e+00> : vector<1x16xf32>
    %78 = tpu.matmul %73, %77, %cst_75 {dimension_numbers = #tpu.dot_dimension_numbers<[1], [0], [0], [1], [0, 0, 1, 1], [], []>} : vector<1x288xf32>, vector<288x16xf32>, vector<1x16xf32> -> vector<1x16xf32>
    %cst_76 = arith.constant 0.001953125 : f32
    %79 = vector.broadcast %cst_76 : f32 to vector<1x16xf32>
    %80 = arith.mulf %78, %79 : vector<1x16xf32>
    %c0_77 = arith.constant 0 : index
    %c0_78 = arith.constant 0 : index
    %81 = vector.load %arg5[%c0_77, %c0_78] : memref<288x16xf32, #tpu.memory_space<vmem>>, vector<288x16xf32>
    %cst_79 = arith.constant dense<0.000000e+00> : vector<1x16xf32>
    %82 = tpu.matmul %76, %81, %cst_79 {dimension_numbers = #tpu.dot_dimension_numbers<[1], [0], [0], [1], [0, 0, 1, 1], [], []>} : vector<1x288xf32>, vector<288x16xf32>, vector<1x16xf32> -> vector<1x16xf32>
    %cst_80 = arith.constant 0.001953125 : f32
    %83 = vector.broadcast %cst_80 : f32 to vector<1x16xf32>
    %84 = arith.mulf %82, %83 : vector<1x16xf32>
    %85 = arith.mulf %80, %80 : vector<1x16xf32>
    %86 = arith.subf %84, %85 : vector<1x16xf32>
    %cst_81 = arith.constant 0.000000e+00 : f32
    %87 = vector.broadcast %cst_81 : f32 to vector<1x16xf32>
    %88 = arith.maximumf %86, %87 : vector<1x16xf32>
    %c0_82 = arith.constant 0 : index
    %c0_83 = arith.constant 0 : index
    %89 = vector.load %arg9[%c0_82, %c0_83] : memref<1x16xf32, #tpu.memory_space<vmem>>, vector<1x16xf32>
    %cst_84 = arith.constant 9.99999974E-6 : f32
    %90 = vector.broadcast %cst_84 : f32 to vector<1x16xf32>
    %91 = arith.addf %88, %90 : vector<1x16xf32>
    %92 = math.rsqrt %91 : vector<1x16xf32>
    %93 = arith.mulf %89, %92 : vector<1x16xf32>
    %c0_85 = arith.constant 0 : index
    %c0_86 = arith.constant 0 : index
    %94 = vector.load %arg10[%c0_85, %c0_86] : memref<1x16xf32, #tpu.memory_space<vmem>>, vector<1x16xf32>
    %95 = arith.mulf %80, %93 : vector<1x16xf32>
    %96 = arith.subf %94, %95 : vector<1x16xf32>
    %c0_87 = arith.constant 0 : index
    %c0_88 = arith.constant 0 : index
    %97 = vector.load %arg6[%c0_87, %c0_88] : memref<16x288xf32, #tpu.memory_space<vmem>>, vector<16x288xf32>
    %cst_89 = arith.constant dense<0.000000e+00> : vector<1x288xf32>
    %98 = tpu.matmul %93, %97, %cst_89 {dimension_numbers = #tpu.dot_dimension_numbers<[1], [0], [0], [1], [0, 0, 1, 1], [], []>} : vector<1x16xf32>, vector<16x288xf32>, vector<1x288xf32> -> vector<1x288xf32>
    %c0_90 = arith.constant 0 : index
    %c0_91 = arith.constant 0 : index
    %99 = vector.load %arg6[%c0_90, %c0_91] : memref<16x288xf32, #tpu.memory_space<vmem>>, vector<16x288xf32>
    %cst_92 = arith.constant dense<0.000000e+00> : vector<1x288xf32>
    %100 = tpu.matmul %96, %99, %cst_92 {dimension_numbers = #tpu.dot_dimension_numbers<[1], [0], [0], [1], [0, 0, 1, 1], [], []>} : vector<1x16xf32>, vector<16x288xf32>, vector<1x288xf32> -> vector<1x288xf32>
    %101 = vector.broadcast %98 : vector<1x288xf32> to vector<32x288xf32>
    %102 = arith.mulf %71, %101 : vector<32x288xf32>
    %103 = vector.broadcast %100 : vector<1x288xf32> to vector<32x288xf32>
    %104 = arith.addf %102, %103 : vector<32x288xf32>
    %105 = vector.shape_cast %104 : vector<32x288xf32> to vector<2x16x288xf32>
    %c0_93 = arith.constant 0 : index
    %c1_94 = arith.constant 1 : index
    %c0_95 = arith.constant 0 : index
    %106 = vector.load %arg19[%c0_93, %c1_94, %c0_95] : memref<2x18x288xf32, #tpu.memory_space<vmem>>, vector<2x16x288xf32>
    tpu.vector_store %arg19[%c0_93, %c1_94, %c0_95], %105 {strides = array<i32>} : memref<2x18x288xf32, #tpu.memory_space<vmem>>, vector<2x16x288xf32>,
    %cst_96 = arith.constant 0.000000e+00 : f32
    %107 = vector.broadcast %cst_96 : f32 to vector<32x288xf32>
    %c0_97 = arith.constant 0 : index
    %c0_98 = arith.constant 0 : index
    %c0_99 = arith.constant 0 : index
    %108 = vector.load %arg19[%c0_97, %c0_98, %c0_99] : memref<2x18x288xf32, #tpu.memory_space<vmem>>, vector<2x16x288xf32>
    %109 = vector.shape_cast %108 : vector<2x16x288xf32> to vector<32x288xf32>
    %c0_100 = arith.constant 0 : index
    %c0_101 = arith.constant 0 : index
    %c0_102 = arith.constant 0 : index
    %110 = vector.load %arg11[%c0_100, %c0_101, %c0_102] : memref<3x288x288xf32, #tpu.memory_space<vmem>>, vector<1x288x288xf32>
    %111 = vector.shape_cast %110 : vector<1x288x288xf32> to vector<288x288xf32>
    %cst_103 = arith.constant dense<0.000000e+00> : vector<32x288xf32>
    %112 = tpu.matmul %109, %111, %cst_103 {dimension_numbers = #tpu.dot_dimension_numbers<[1], [0], [0], [1], [0, 0, 1, 1], [], []>} : vector<32x288xf32>, vector<288x288xf32>, vector<32x288xf32> -> vector<32x288xf32>
    %113 = arith.addf %107, %112 : vector<32x288xf32>
    %c0_104 = arith.constant 0 : index
    %c1_105 = arith.constant 1 : index
    %c0_106 = arith.constant 0 : index
    %114 = vector.load %arg19[%c0_104, %c1_105, %c0_106] : memref<2x18x288xf32, #tpu.memory_space<vmem>>, vector<2x16x288xf32>
    %115 = vector.shape_cast %114 : vector<2x16x288xf32> to vector<32x288xf32>
    %c1_107 = arith.constant 1 : index
    %c0_108 = arith.constant 0 : index
    %c0_109 = arith.constant 0 : index
    %116 = vector.load %arg11[%c1_107, %c0_108, %c0_109] : memref<3x288x288xf32, #tpu.memory_space<vmem>>, vector<1x288x288xf32>
    %117 = vector.shape_cast %116 : vector<1x288x288xf32> to vector<288x288xf32>
    %cst_110 = arith.constant dense<0.000000e+00> : vector<32x288xf32>
    %118 = tpu.matmul %115, %117, %cst_110 {dimension_numbers = #tpu.dot_dimension_numbers<[1], [0], [0], [1], [0, 0, 1, 1], [], []>} : vector<32x288xf32>, vector<288x288xf32>, vector<32x288xf32> -> vector<32x288xf32>
    %119 = arith.addf %113, %118 : vector<32x288xf32>
    %c0_111 = arith.constant 0 : index
    %c2_112 = arith.constant 2 : index
    %c0_113 = arith.constant 0 : index
    %120 = vector.load %arg19[%c0_111, %c2_112, %c0_113] : memref<2x18x288xf32, #tpu.memory_space<vmem>>, vector<2x16x288xf32>
    %121 = vector.shape_cast %120 : vector<2x16x288xf32> to vector<32x288xf32>
    %c2_114 = arith.constant 2 : index
    %c0_115 = arith.constant 0 : index
    %c0_116 = arith.constant 0 : index
    %122 = vector.load %arg11[%c2_114, %c0_115, %c0_116] : memref<3x288x288xf32, #tpu.memory_space<vmem>>, vector<1x288x288xf32>
    %123 = vector.shape_cast %122 : vector<1x288x288xf32> to vector<288x288xf32>
    %cst_117 = arith.constant dense<0.000000e+00> : vector<32x288xf32>
    %124 = tpu.matmul %121, %123, %cst_117 {dimension_numbers = #tpu.dot_dimension_numbers<[1], [0], [0], [1], [0, 0, 1, 1], [], []>} : vector<32x288xf32>, vector<288x288xf32>, vector<32x288xf32> -> vector<32x288xf32>
    %125 = arith.addf %119, %124 : vector<32x288xf32>
    %c0_118 = arith.constant 0 : index
    %c0_119 = arith.constant 0 : index
    %126 = vector.load %arg12[%c0_118, %c0_119] : memref<1x288xf32, #tpu.memory_space<vmem>>, vector<1x288xf32>
    %127 = vector.broadcast %126 : vector<1x288xf32> to vector<32x288xf32>
    %128 = arith.addf %125, %127 : vector<32x288xf32>
    %cst_120 = arith.constant 0.000000e+00 : f32
    %129 = vector.broadcast %cst_120 : f32 to vector<32x288xf32>
    %130 = arith.maximumf %128, %129 : vector<32x288xf32>
    %cst_121 = arith.constant dense<0.000000e+00> : vector<288xf32>
    %131 = vector.multi_reduction <add>, %130, %cst_121 [0] : vector<32x288xf32> to vector<288xf32>
    %132 = vector.shape_cast %131 : vector<288xf32> to vector<1x288xf32>
    %133 = arith.mulf %130, %130 : vector<32x288xf32>
    %cst_122 = arith.constant dense<0.000000e+00> : vector<288xf32>
    %134 = vector.multi_reduction <add>, %133, %cst_122 [0] : vector<32x288xf32> to vector<288xf32>
    %135 = vector.shape_cast %134 : vector<288xf32> to vector<1x288xf32>
    %c0_123 = arith.constant 0 : index
    %c0_124 = arith.constant 0 : index
    %136 = vector.load %arg5[%c0_123, %c0_124] : memref<288x16xf32, #tpu.memory_space<vmem>>, vector<288x16xf32>
    %cst_125 = arith.constant dense<0.000000e+00> : vector<1x16xf32>
    %137 = tpu.matmul %132, %136, %cst_125 {dimension_numbers = #tpu.dot_dimension_numbers<[1], [0], [0], [1], [0, 0, 1, 1], [], []>} : vector<1x288xf32>, vector<288x16xf32>, vector<1x16xf32> -> vector<1x16xf32>
    %cst_126 = arith.constant 0.001953125 : f32
    %138 = vector.broadcast %cst_126 : f32 to vector<1x16xf32>
    %139 = arith.mulf %137, %138 : vector<1x16xf32>
    %c0_127 = arith.constant 0 : index
    %c0_128 = arith.constant 0 : index
    %140 = vector.load %arg5[%c0_127, %c0_128] : memref<288x16xf32, #tpu.memory_space<vmem>>, vector<288x16xf32>
    %cst_129 = arith.constant dense<0.000000e+00> : vector<1x16xf32>
    %141 = tpu.matmul %135, %140, %cst_129 {dimension_numbers = #tpu.dot_dimension_numbers<[1], [0], [0], [1], [0, 0, 1, 1], [], []>} : vector<1x288xf32>, vector<288x16xf32>, vector<1x16xf32> -> vector<1x16xf32>
    %cst_130 = arith.constant 0.001953125 : f32
    %142 = vector.broadcast %cst_130 : f32 to vector<1x16xf32>
    %143 = arith.mulf %141, %142 : vector<1x16xf32>
    %144 = arith.mulf %139, %139 : vector<1x16xf32>
    %145 = arith.subf %143, %144 : vector<1x16xf32>
    %cst_131 = arith.constant 0.000000e+00 : f32
    %146 = vector.broadcast %cst_131 : f32 to vector<1x16xf32>
    %147 = arith.maximumf %145, %146 : vector<1x16xf32>
    %c0_132 = arith.constant 0 : index
    %c0_133 = arith.constant 0 : index
    %148 = vector.load %arg13[%c0_132, %c0_133] : memref<1x16xf32, #tpu.memory_space<vmem>>, vector<1x16xf32>
    %cst_134 = arith.constant 9.99999974E-6 : f32
    %149 = vector.broadcast %cst_134 : f32 to vector<1x16xf32>
    %150 = arith.addf %147, %149 : vector<1x16xf32>
    %151 = math.rsqrt %150 : vector<1x16xf32>
    %152 = arith.mulf %148, %151 : vector<1x16xf32>
    %c0_135 = arith.constant 0 : index
    %c0_136 = arith.constant 0 : index
    %153 = vector.load %arg14[%c0_135, %c0_136] : memref<1x16xf32, #tpu.memory_space<vmem>>, vector<1x16xf32>
    %154 = arith.mulf %139, %152 : vector<1x16xf32>
    %155 = arith.subf %153, %154 : vector<1x16xf32>
    %c0_137 = arith.constant 0 : index
    %c0_138 = arith.constant 0 : index
    %156 = vector.load %arg6[%c0_137, %c0_138] : memref<16x288xf32, #tpu.memory_space<vmem>>, vector<16x288xf32>
    %cst_139 = arith.constant dense<0.000000e+00> : vector<1x288xf32>
    %157 = tpu.matmul %152, %156, %cst_139 {dimension_numbers = #tpu.dot_dimension_numbers<[1], [0], [0], [1], [0, 0, 1, 1], [], []>} : vector<1x16xf32>, vector<16x288xf32>, vector<1x288xf32> -> vector<1x288xf32>
    %c0_140 = arith.constant 0 : index
    %c0_141 = arith.constant 0 : index
    %158 = vector.load %arg6[%c0_140, %c0_141] : memref<16x288xf32, #tpu.memory_space<vmem>>, vector<16x288xf32>
    %cst_142 = arith.constant dense<0.000000e+00> : vector<1x288xf32>
    %159 = tpu.matmul %155, %158, %cst_142 {dimension_numbers = #tpu.dot_dimension_numbers<[1], [0], [0], [1], [0, 0, 1, 1], [], []>} : vector<1x16xf32>, vector<16x288xf32>, vector<1x288xf32> -> vector<1x288xf32>
    %160 = vector.broadcast %157 : vector<1x288xf32> to vector<32x288xf32>
    %161 = arith.mulf %130, %160 : vector<32x288xf32>
    %162 = vector.broadcast %159 : vector<1x288xf32> to vector<32x288xf32>
    %163 = arith.addf %161, %162 : vector<32x288xf32>
    %164 = vector.shape_cast %163 : vector<32x288xf32> to vector<2x16x288xf32>
    %c0_143 = arith.constant 0 : index
    %c1_144 = arith.constant 1 : index
    %c0_145 = arith.constant 0 : index
    %165 = vector.load %arg20[%c0_143, %c1_144, %c0_145] : memref<2x18x288xf32, #tpu.memory_space<vmem>>, vector<2x16x288xf32>
    tpu.vector_store %arg20[%c0_143, %c1_144, %c0_145], %164 {strides = array<i32>} : memref<2x18x288xf32, #tpu.memory_space<vmem>>, vector<2x16x288xf32>,
    %cst_146 = arith.constant 0.000000e+00 : f32
    %166 = vector.broadcast %cst_146 : f32 to vector<2x10xf32>
    %c0_147 = arith.constant 0 : index
    %c1_148 = arith.constant 1 : index
    %c0_149 = arith.constant 0 : index
    %167 = vector.load %arg20[%c0_147, %c1_148, %c0_149] : memref<2x18x288xf32, #tpu.memory_space<vmem>>, vector<2x14x288xf32>
    %cst_150 = arith.constant dense<0.000000e+00> : vector<2x288xf32>
    %168 = vector.multi_reduction <add>, %167, %cst_150 [1] : vector<2x14x288xf32> to vector<2x288xf32>
    %c0_151 = arith.constant 0 : index
    %c0_152 = arith.constant 0 : index
    %c0_153 = arith.constant 0 : index
    %169 = vector.load %arg15[%c0_151, %c0_152, %c0_153] : memref<3x288x10xf32, #tpu.memory_space<vmem>>, vector<1x288x10xf32>
    %170 = vector.shape_cast %169 : vector<1x288x10xf32> to vector<288x10xf32>
    %cst_154 = arith.constant dense<0.000000e+00> : vector<2x10xf32>
    %171 = tpu.matmul %168, %170, %cst_154 {dimension_numbers = #tpu.dot_dimension_numbers<[1], [0], [0], [1], [0, 0, 1, 1], [], []>} : vector<2x288xf32>, vector<288x10xf32>, vector<2x10xf32> -> vector<2x10xf32>
    %172 = arith.addf %166, %171 : vector<2x10xf32>
    %c0_155 = arith.constant 0 : index
    %c2_156 = arith.constant 2 : index
    %c0_157 = arith.constant 0 : index
    %173 = vector.load %arg20[%c0_155, %c2_156, %c0_157] : memref<2x18x288xf32, #tpu.memory_space<vmem>>, vector<2x14x288xf32>
    %cst_158 = arith.constant dense<0.000000e+00> : vector<2x288xf32>
    %174 = vector.multi_reduction <add>, %173, %cst_158 [1] : vector<2x14x288xf32> to vector<2x288xf32>
    %c1_159 = arith.constant 1 : index
    %c0_160 = arith.constant 0 : index
    %c0_161 = arith.constant 0 : index
    %175 = vector.load %arg15[%c1_159, %c0_160, %c0_161] : memref<3x288x10xf32, #tpu.memory_space<vmem>>, vector<1x288x10xf32>
    %176 = vector.shape_cast %175 : vector<1x288x10xf32> to vector<288x10xf32>
    %cst_162 = arith.constant dense<0.000000e+00> : vector<2x10xf32>
    %177 = tpu.matmul %174, %176, %cst_162 {dimension_numbers = #tpu.dot_dimension_numbers<[1], [0], [0], [1], [0, 0, 1, 1], [], []>} : vector<2x288xf32>, vector<288x10xf32>, vector<2x10xf32> -> vector<2x10xf32>
    %178 = arith.addf %172, %177 : vector<2x10xf32>
    %c0_163 = arith.constant 0 : index
    %c3 = arith.constant 3 : index
    %c0_164 = arith.constant 0 : index
    %179 = vector.load %arg20[%c0_163, %c3, %c0_164] : memref<2x18x288xf32, #tpu.memory_space<vmem>>, vector<2x14x288xf32>
    %cst_165 = arith.constant dense<0.000000e+00> : vector<2x288xf32>
    %180 = vector.multi_reduction <add>, %179, %cst_165 [1] : vector<2x14x288xf32> to vector<2x288xf32>
    %c2_166 = arith.constant 2 : index
    %c0_167 = arith.constant 0 : index
    %c0_168 = arith.constant 0 : index
    %181 = vector.load %arg15[%c2_166, %c0_167, %c0_168] : memref<3x288x10xf32, #tpu.memory_space<vmem>>, vector<1x288x10xf32>
    %182 = vector.shape_cast %181 : vector<1x288x10xf32> to vector<288x10xf32>
    %cst_169 = arith.constant dense<0.000000e+00> : vector<2x10xf32>
    %183 = tpu.matmul %180, %182, %cst_169 {dimension_numbers = #tpu.dot_dimension_numbers<[1], [0], [0], [1], [0, 0, 1, 1], [], []>} : vector<2x288xf32>, vector<288x10xf32>, vector<2x10xf32> -> vector<2x10xf32>
    %184 = arith.addf %178, %183 : vector<2x10xf32>
    %cst_170 = arith.constant 0.00510204071 : f32
    %185 = vector.broadcast %cst_170 : f32 to vector<2x10xf32>
    %186 = arith.mulf %184, %185 : vector<2x10xf32>
    %c0_171 = arith.constant 0 : index
    %c0_172 = arith.constant 0 : index
    %187 = vector.load %arg16[%c0_171, %c0_172] : memref<1x10xf32, #tpu.memory_space<vmem>>, vector<1x10xf32>
    %188 = vector.broadcast %187 : vector<1x10xf32> to vector<2x10xf32>
    %189 = arith.addf %186, %188 : vector<2x10xf32>
    %c0_173 = arith.constant 0 : index
    %c0_174 = arith.constant 0 : index
    %190 = vector.load %arg17[%c0_173, %c0_174] : memref<2x10xf32, #tpu.memory_space<vmem>>, vector<2x10xf32>
    tpu.vector_store %arg17[%c0_173, %c0_174], %189 {strides = array<i32>} : memref<2x10xf32, #tpu.memory_space<vmem>>, vector<2x10xf32>,
    return
  }
}

</mosaic_0001>

<llo_original>
// kernel: tpu_custom_call.1
$region0: #{tpu_custom_call.1}
  #allocation0 [shape = 'u32[]', space=smem, size = 0x4, offset = 0x4, fixed_abs, tag = 'smem constant byte address 0x4 - core index']
  #allocation1 [shape = 'u32[144,128]{1,0:T(1,128)}', space=vmem, size = 0x12000, scoped, tag = 'internal scratch']
  #allocation2 [shape = 'f32[2,18,72]{2,1,0:T(8,128)}', space=vmem, size = 0x6000, scoped, tag = 'scratch operand']
  #allocation3 [shape = 'f32[2,18,288]{2,1,0:T(8,128)}', space=vmem, size = 0x12000, scoped, tag = 'scratch operand']
  #allocation4 [shape = 'f32[2,18,288]{2,1,0:T(8,128)}', space=vmem, size = 0x12000, scoped, tag = 'scratch operand']
  %s0 = inlined_call_operand.hbm [shape: f32[32,72], index: 0, kind: input, shape index: {}]
  %s1 = inlined_call_operand.vmem [shape: f32[72,4], index: 1, kind: input, shape index: {}]
  %s2 = inlined_call_operand.hbm [shape: f32[4,72], index: 2, kind: input, shape index: {}]
  %s3 = inlined_call_operand.hbm [shape: f32[1,4], index: 3, kind: input, shape index: {}]
  %s4 = inlined_call_operand.hbm [shape: f32[1,4], index: 4, kind: input, shape index: {}]
  %s5 = inlined_call_operand.vmem [shape: f32[288,16], index: 5, kind: input, shape index: {}]
  %s6 = inlined_call_operand.hbm [shape: f32[16,288], index: 6, kind: input, shape index: {}]
  %s7 = inlined_call_operand.hbm [shape: f32[3,72,288], index: 7, kind: input, shape index: {}]
  %s8 = inlined_call_operand.hbm [shape: f32[1,288], index: 8, kind: input, shape index: {}]
  %s9 = inlined_call_operand.hbm [shape: f32[1,16], index: 9, kind: input, shape index: {}]
  %s10 = inlined_call_operand.hbm [shape: f32[1,16], index: 10, kind: input, shape index: {}]
  %s11 = inlined_call_operand.hbm [shape: f32[3,288,288], index: 11, kind: input, shape index: {}]
  %s12 = inlined_call_operand.hbm [shape: f32[1,288], index: 12, kind: input, shape index: {}]
  %s13 = inlined_call_operand.hbm [shape: f32[1,16], index: 13, kind: input, shape index: {}]
  %s14 = inlined_call_operand.hbm [shape: f32[1,16], index: 14, kind: input, shape index: {}]
  %s15 = inlined_call_operand.vmem [shape: f32[3,288,10], index: 15, kind: input, shape index: {}]
  %s16 = inlined_call_operand.hbm [shape: f32[1,10], index: 16, kind: input, shape index: {}]
  %s17 = inlined_call_operand.hbm [shape: f32[2,10], index: 17, kind: output, shape index: {}]
  %s18 = sld [smem:[#allocation0]]
  $region134: #{tpu_custom_call.1} parent=0
    _
  %s20 = ssub.s32 1, %s18
  %s21 = scalar_select 0, %s20, %s18
  $region1: #{tpu_custom_call.1} parent=0
    #allocation5 [shape = 'u8[16384]{0}', space=vmem, size = 0x4000, scoped, tag = 'input window, operand 0, single buffered']
    #allocation6 [shape = 's32[1]{0}', space=sflag, size = 0x4, scoped, tag = 'scoped memory for tpu_custom_call.1']
    #allocation7 [shape = 's32[1]{0}', space=sflag, size = 0x4, scoped, tag = 'scoped memory for tpu_custom_call.1']
    #allocation8 [shape = 'u8[2048]{0}', space=vmem, size = 0x800, scoped, tag = 'input window, operand 2, single buffered']
    #allocation9 [shape = 's32[1]{0}', space=sflag, size = 0x4, scoped, tag = 'scoped memory for tpu_custom_call.1']
    #allocation10 [shape = 'u8[512]{0}', space=vmem, size = 0x400, scoped, tag = 'input window, operand 3, single buffered']
    #allocation11 [shape = 'u8[512]{0}', space=vmem, size = 0x400, scoped, tag = 'input window, operand 4, single buffered']
    #allocation12 [shape = 's32[1]{0}', space=sflag, size = 0x4, scoped, tag = 'scoped memory for tpu_custom_call.1']
    #allocation13 [shape = 'u8[24576]{0}', space=vmem, size = 0x6000, scoped, tag = 'input window, operand 6, single buffered']
    #allocation14 [shape = 'u8[331776]{0}', space=vmem, size = 0x51000, scoped, tag = 'input window, operand 7, single buffered']
    #allocation15 [shape = 's32[1]{0}', space=sflag, size = 0x4, scoped, tag = 'scoped memory for tpu_custom_call.1']
    #allocation16 [shape = 'u8[1536]{0}', space=vmem, size = 0x800, scoped, tag = 'input window, operand 8, single buffered']
    #allocation17 [shape = 'u8[512]{0}', space=vmem, size = 0x400, scoped, tag = 'input window, operand 9, single buffered']
    #allocation18 [shape = 's32[1]{0}', space=sflag, size = 0x4, scoped, tag = 'scoped memory for tpu_custom_call.1']
    #allocation19 [shape = 'u8[512]{0}', space=vmem, size = 0x400, scoped, tag = 'input window, operand 10, single buffered']
    #allocation20 [shape = 'u8[1327104]{0}', space=vmem, size = 0x144000, scoped, tag = 'input window, operand 11, single buffered']
    #allocation21 [shape = 's32[1]{0}', space=sflag, size = 0x4, scoped, tag = 'scoped memory for tpu_custom_call.1']
    #allocation22 [shape = 'u8[1536]{0}', space=vmem, size = 0x800, scoped, tag = 'input window, operand 12, single buffered']
    #allocation23 [shape = 'u8[512]{0}', space=vmem, size = 0x400, scoped, tag = 'input window, operand 13, single buffered']
    #allocation24 [shape = 's32[1]{0}', space=sflag, size = 0x4, scoped, tag = 'scoped memory for tpu_custom_call.1']
    #allocation25 [shape = 'u8[512]{0}', space=vmem, size = 0x400, scoped, tag = 'input window, operand 14, single buffered']
    #allocation26 [shape = 'u8[512]{0}', space=vmem, size = 0x400, scoped, tag = 'input window, operand 16, single buffered']
    #allocation27 [shape = 's32[1]{0}', space=sflag, size = 0x4, scoped, tag = 'scoped memory for tpu_custom_call.1']
    #allocation28 [shape = 'u8[1024]{0}', space=vmem, size = 0x400, scoped, tag = 'output window, operand 0, single buffered']
    %22 = vsyncpa [#allocation6], 0
    %23 = vsyncpa [#allocation9], 0
    %24 = vsyncpa [#allocation12], 0
    %25 = vsyncpa [#allocation15], 0
    %26 = vsyncpa [#allocation18], 0
    %27 = vsyncpa [#allocation21], 0
    %28 = vsyncpa [#allocation24], 0
    %29 = vsyncpa [#allocation27], 0
    %30 = vsyncpa [#allocation7], 0
    // Predicated region
    $region2: #{tpu_custom_call.1} parent=1 // pred_check
      _
    $region3: #{tpu_custom_call.1} parent=1 // pred_check_branch
      %32 = sbr.rel (0) target = $region5
    $region4: #{tpu_custom_call.1} parent=1 // pred_region
      %s34 = ssub.s32 512, 512
      %35 = vsyncadd [#allocation6], %s34
      %s36 = sshll.u32 [#allocation5], 4
      %s37 = int_to_ptr.vmem [resolvable:$true] %s36
      %42 = dma.hbm_to_vmem [thread:$0]  %s0, 512, %s37, [#allocation6], 128, 128, 8
    $region5: #{tpu_custom_call.1} parent=1 // pred_fallthru
      _
    // Predicated region
    $region6: #{tpu_custom_call.1} parent=1 // pred_check
      _
    $region7: #{tpu_custom_call.1} parent=1 // pred_check_branch
      %44 = sbr.rel (0) target = $region9
    $region8: #{tpu_custom_call.1} parent=1 // pred_region
      _
    $region9: #{tpu_custom_call.1} parent=1 // pred_fallthru
      _
    // Predicated region
    $region10: #{tpu_custom_call.1} parent=1 // pred_check
      _
    $region11: #{tpu_custom_call.1} parent=1 // pred_check_branch
      %46 = sbr.rel (0) target = $region13
    $region12: #{tpu_custom_call.1} parent=1 // pred_region
      %s48 = ssub.s32 64, 64
      %49 = vsyncadd [#allocation9], %s48
      %s51 = sshll.u32 [#allocation8], 4
      %s52 = int_to_ptr.vmem [resolvable:$true] %s51
      %54 = dma.hbm_to_vmem [thread:$0]  %s2, 64, %s52, [#allocation9]
    $region13: #{tpu_custom_call.1} parent=1 // pred_fallthru
      _
    // Predicated region
    $region14: #{tpu_custom_call.1} parent=1 // pred_check
      _
    $region15: #{tpu_custom_call.1} parent=1 // pred_check_branch
      %56 = sbr.rel (0) target = $region17
    $region16: #{tpu_custom_call.1} parent=1 // pred_region
      %s58 = ssub.s32 16, 16
      %59 = vsyncadd [#allocation9], %s58
      %s61 = sshll.u32 [#allocation10], 4
      %s62 = int_to_ptr.vmem [resolvable:$true] %s61
      %64 = dma.hbm_to_vmem [thread:$0]  %s3, 16, %s62, [#allocation9]
    $region17: #{tpu_custom_call.1} parent=1 // pred_fallthru
      _
    // Predicated region
    $region18: #{tpu_custom_call.1} parent=1 // pred_check
      _
    $region19: #{tpu_custom_call.1} parent=1 // pred_check_branch
      %66 = sbr.rel (0) target = $region21
    $region20: #{tpu_custom_call.1} parent=1 // pred_region
      %s68 = ssub.s32 16, 16
      %69 = vsyncadd [#allocation12], %s68
      %s71 = sshll.u32 [#allocation11], 4
      %s72 = int_to_ptr.vmem [resolvable:$true] %s71
      %74 = dma.hbm_to_vmem [thread:$0]  %s4, 16, %s72, [#allocation12]
    $region21: #{tpu_custom_call.1} parent=1 // pred_fallthru
      _
    // Predicated region
    $region22: #{tpu_custom_call.1} parent=1 // pred_check
      _
    $region23: #{tpu_custom_call.1} parent=1 // pred_check_branch
      %76 = sbr.rel (0) target = $region25
    $region24: #{tpu_custom_call.1} parent=1 // pred_region
      _
    $region25: #{tpu_custom_call.1} parent=1 // pred_fallthru
      _
    // Predicated region
    $region26: #{tpu_custom_call.1} parent=1 // pred_check
      _
    $region27: #{tpu_custom_call.1} parent=1 // pred_check_branch
      %78 = sbr.rel (0) target = $region29
    $region28: #{tpu_custom_call.1} parent=1 // pred_region
      %s80 = ssub.s32 768, 768
      %81 = vsyncadd [#allocation12], %s80
      %s82 = sshll.u32 [#allocation13], 4
      %s83 = int_to_ptr.vmem [resolvable:$true] %s82
      %88 = dma.hbm_to_vmem [thread:$0]  %s6, 768, %s83, [#allocation12], 384, 384, 24
    $region29: #{tpu_custom_call.1} parent=1 // pred_fallthru
      _
    // Predicated region
    $region30: #{tpu_custom_call.1} parent=1 // pred_check
      _
    $region31: #{tpu_custom_call.1} parent=1 // pred_check_branch
      %90 = sbr.rel (0) target = $region33
    $region32: #{tpu_custom_call.1} parent=1 // pred_region
      %s92 = ssub.s32 10368, 10368
      %93 = vsyncadd [#allocation15], %s92
      %s94 = sshll.u32 [#allocation14], 4
      %s95 = int_to_ptr.vmem [resolvable:$true] %s94
      %100 = dma.hbm_to_vmem [thread:$0]  %s7, 10368, %s95, [#allocation15], 384, 384, 24
    $region33: #{tpu_custom_call.1} parent=1 // pred_fallthru
      _
    // Predicated region
    $region34: #{tpu_custom_call.1} parent=1 // pred_check
      _
    $region35: #{tpu_custom_call.1} parent=1 // pred_check_branch
      %102 = sbr.rel (0) target = $region37
    $region36: #{tpu_custom_call.1} parent=1 // pred_region
      %s104 = ssub.s32 48, 48
      %105 = vsyncadd [#allocation15], %s104
      %s107 = sshll.u32 [#allocation16], 4
      %s108 = int_to_ptr.vmem [resolvable:$true] %s107
      %110 = dma.hbm_to_vmem [thread:$0]  %s8, 48, %s108, [#allocation15]
    $region37: #{tpu_custom_call.1} parent=1 // pred_fallthru
      _
    // Predicated region
    $region38: #{tpu_custom_call.1} parent=1 // pred_check
      _
    $region39: #{tpu_custom_call.1} parent=1 // pred_check_branch
      %112 = sbr.rel (0) target = $region41
    $region40: #{tpu_custom_call.1} parent=1 // pred_region
      %s114 = ssub.s32 16, 16
      %115 = vsyncadd [#allocation18], %s114
      %s117 = sshll.u32 [#allocation17], 4
      %s118 = int_to_ptr.vmem [resolvable:$true] %s117
      %120 = dma.hbm_to_vmem [thread:$0]  %s9, 16, %s118, [#allocation18]
    $region41: #{tpu_custom_call.1} parent=1 // pred_fallthru
      _
    // Predicated region
    $region42: #{tpu_custom_call.1} parent=1 // pred_check
      _
    $region43: #{tpu_custom_call.1} parent=1 // pred_check_branch
      %122 = sbr.rel (0) target = $region45
    $region44: #{tpu_custom_call.1} parent=1 // pred_region
      %s124 = ssub.s32 16, 16
      %125 = vsyncadd [#allocation18], %s124
      %s127 = sshll.u32 [#allocation19], 4
      %s128 = int_to_ptr.vmem [resolvable:$true] %s127
      %130 = dma.hbm_to_vmem [thread:$0]  %s10, 16, %s128, [#allocation18]
    $region45: #{tpu_custom_call.1} parent=1 // pred_fallthru
      _
    // Predicated region
    $region46: #{tpu_custom_call.1} parent=1 // pred_check
      _
    $region47: #{tpu_custom_call.1} parent=1 // pred_check_branch
      %132 = sbr.rel (0) target = $region49
    $region48: #{tpu_custom_call.1} parent=1 // pred_region
      %s134 = ssub.s32 41472, 41472
      %135 = vsyncadd [#allocation21], %s134
      %s136 = sshll.u32 [#allocation20], 4
      %s137 = int_to_ptr.vmem [resolvable:$true] %s136
      %142 = dma.hbm_to_vmem [thread:$0]  %s11, 41472, %s137, [#allocation21], 384, 384, 24
    $region49: #{tpu_custom_call.1} parent=1 // pred_fallthru
      _
    // Predicated region
    $region50: #{tpu_custom_call.1} parent=1 // pred_check
      _
    $region51: #{tpu_custom_call.1} parent=1 // pred_check_branch
      %144 = sbr.rel (0) target = $region53
    $region52: #{tpu_custom_call.1} parent=1 // pred_region
      %s146 = ssub.s32 48, 48
      %147 = vsyncadd [#allocation21], %s146
      %s149 = sshll.u32 [#allocation22], 4
      %s150 = int_to_ptr.vmem [resolvable:$true] %s149
      %152 = dma.hbm_to_vmem [thread:$0]  %s12, 48, %s150, [#allocation21]
    $region53: #{tpu_custom_call.1} parent=1 // pred_fallthru
      _
    // Predicated region
    $region54: #{tpu_custom_call.1} parent=1 // pred_check
      _
    $region55: #{tpu_custom_call.1} parent=1 // pred_check_branch
      %154 = sbr.rel (0) target = $region57
    $region56: #{tpu_custom_call.1} parent=1 // pred_region
      %s156 = ssub.s32 16, 16
      %157 = vsyncadd [#allocation24], %s156
      %s159 = sshll.u32 [#allocation23], 4
      %s160 = int_to_ptr.vmem [resolvable:$true] %s159
      %162 = dma.hbm_to_vmem [thread:$0]  %s13, 16, %s160, [#allocation24]
    $region57: #{tpu_custom_call.1} parent=1 // pred_fallthru
      _
    // Predicated region
    $region58: #{tpu_custom_call.1} parent=1 // pred_check
      _
    $region59: #{tpu_custom_call.1} parent=1 // pred_check_branch
      %164 = sbr.rel (0) target = $region61
    $region60: #{tpu_custom_call.1} parent=1 // pred_region
      %s166 = ssub.s32 16, 16
      %167 = vsyncadd [#allocation24], %s166
      %s169 = sshll.u32 [#allocation25], 4
      %s170 = int_to_ptr.vmem [resolvable:$true] %s169
      %172 = dma.hbm_to_vmem [thread:$0]  %s14, 16, %s170, [#allocation24]
    $region61: #{tpu_custom_call.1} parent=1 // pred_fallthru
      _
    // Predicated region
    $region62: #{tpu_custom_call.1} parent=1 // pred_check
      _
    $region63: #{tpu_custom_call.1} parent=1 // pred_check_branch
      %174 = sbr.rel (0) target = $region65
    $region64: #{tpu_custom_call.1} parent=1 // pred_region
      _
    $region65: #{tpu_custom_call.1} parent=1 // pred_fallthru
      _
    // Predicated region
    $region66: #{tpu_custom_call.1} parent=1 // pred_check
      _
    $region67: #{tpu_custom_call.1} parent=1 // pred_check_branch
      %176 = sbr.rel (0) target = $region69
    $region68: #{tpu_custom_call.1} parent=1 // pred_region
      %s178 = ssub.s32 16, 16
      %179 = vsyncadd [#allocation27], %s178
      %s181 = sshll.u32 [#allocation26], 4
      %s182 = int_to_ptr.vmem [resolvable:$true] %s181
      %184 = dma.hbm_to_vmem [thread:$0]  %s16, 16, %s182, [#allocation27]
    $region69: #{tpu_custom_call.1} parent=1 // pred_fallthru
      _
    // Predicated region
    $region70: #{tpu_custom_call.1} parent=1 // pred_check
      _
    $region71: #{tpu_custom_call.1} parent=1 // pred_check_branch
      %186 = sbr.rel (0) target = $region73
    $region72: #{tpu_custom_call.1} parent=1 // pred_region
      %187 = dma.done [#allocation6], 512
    $region73: #{tpu_custom_call.1} parent=1 // pred_fallthru
      _
    // Predicated region
    $region74: #{tpu_custom_call.1} parent=1 // pred_check
      _
    $region75: #{tpu_custom_call.1} parent=1 // pred_check_branch
      %189 = sbr.rel (0) target = $region77
    $region76: #{tpu_custom_call.1} parent=1 // pred_region
      %190 = dma.done [#allocation9], 64
    $region77: #{tpu_custom_call.1} parent=1 // pred_fallthru
      _
    // Predicated region
    $region78: #{tpu_custom_call.1} parent=1 // pred_check
      _
    $region79: #{tpu_custom_call.1} parent=1 // pred_check_branch
      %192 = sbr.rel (0) target = $region81
    $region80: #{tpu_custom_call.1} parent=1 // pred_region
      %193 = dma.done [#allocation9], 16
    $region81: #{tpu_custom_call.1} parent=1 // pred_fallthru
      _
    // Predicated region
    $region82: #{tpu_custom_call.1} parent=1 // pred_check
      _
    $region83: #{tpu_custom_call.1} parent=1 // pred_check_branch
      %195 = sbr.rel (0) target = $region85
    $region84: #{tpu_custom_call.1} parent=1 // pred_region
      %196 = dma.done [#allocation12], 16
    $region85: #{tpu_custom_call.1} parent=1 // pred_fallthru
      _
    // Predicated region
    $region86: #{tpu_custom_call.1} parent=1 // pred_check
      _
    $region87: #{tpu_custom_call.1} parent=1 // pred_check_branch
      %198 = sbr.rel (0) target = $region89
    $region88: #{tpu_custom_call.1} parent=1 // pred_region
      %199 = dma.done [#allocation12], 768
    $region89: #{tpu_custom_call.1} parent=1 // pred_fallthru
      _
    // Predicated region
    $region90: #{tpu_custom_call.1} parent=1 // pred_check
      _
    $region91: #{tpu_custom_call.1} parent=1 // pred_check_branch
      %201 = sbr.rel (0) target = $region93
    $region92: #{tpu_custom_call.1} parent=1 // pred_region
      %202 = dma.done [#allocation15], 10368
    $region93: #{tpu_custom_call.1} parent=1 // pred_fallthru
      _
    // Predicated region
    $region94: #{tpu_custom_call.1} parent=1 // pred_check
      _
    $region95: #{tpu_custom_call.1} parent=1 // pred_check_branch
      %204 = sbr.rel (0) target = $region97
    $region96: #{tpu_custom_call.1} parent=1 // pred_region
      %205 = dma.done [#allocation15], 48
    $region97: #{tpu_custom_call.1} parent=1 // pred_fallthru
      _
    // Predicated region
    $region98: #{tpu_custom_call.1} parent=1 // pred_check
      _
    $region99: #{tpu_custom_call.1} parent=1 // pred_check_branch
      %207 = sbr.rel (0) target = $region101
    $region100: #{tpu_custom_call.1} parent=1 // pred_region
      %208 = dma.done [#allocation18], 16
    $region101: #{tpu_custom_call.1} parent=1 // pred_fallthru
      _
    // Predicated region
    $region102: #{tpu_custom_call.1} parent=1 // pred_check
      _
    $region103: #{tpu_custom_call.1} parent=1 // pred_check_branch
      %210 = sbr.rel (0) target = $region105
    $region104: #{tpu_custom_call.1} parent=1 // pred_region
      %211 = dma.done [#allocation18], 16
    $region105: #{tpu_custom_call.1} parent=1 // pred_fallthru
      _
    // Predicated region
    $region106: #{tpu_custom_call.1} parent=1 // pred_check
      _
    $region107: #{tpu_custom_call.1} parent=1 // pred_check_branch
      %213 = sbr.rel (0) target = $region109
    $region108: #{tpu_custom_call.1} parent=1 // pred_region
      %214 = dma.done [#allocation21], 41472
    $region109: #{tpu_custom_call.1} parent=1 // pred_fallthru
      _
    // Predicated region
    $region110: #{tpu_custom_call.1} parent=1 // pred_check
      _
    $region111: #{tpu_custom_call.1} parent=1 // pred_check_branch
      %216 = sbr.rel (0) target = $region113
    $region112: #{tpu_custom_call.1} parent=1 // pred_region
      %217 = dma.done [#allocation21], 48
    $region113: #{tpu_custom_call.1} parent=1 // pred_fallthru
      _
    // Predicated region
    $region114: #{tpu_custom_call.1} parent=1 // pred_check
      _
    $region115: #{tpu_custom_call.1} parent=1 // pred_check_branch
      %219 = sbr.rel (0) target = $region117
    $region116: #{tpu_custom_call.1} parent=1 // pred_region
      %220 = dma.done [#allocation24], 16
    $region117: #{tpu_custom_call.1} parent=1 // pred_fallthru
      _
    // Predicated region
    $region118: #{tpu_custom_call.1} parent=1 // pred_check
      _
    $region119: #{tpu_custom_call.1} parent=1 // pred_check_branch
      %222 = sbr.rel (0) target = $region121
    $region120: #{tpu_custom_call.1} parent=1 // pred_region
      %223 = dma.done [#allocation24], 16
    $region121: #{tpu_custom_call.1} parent=1 // pred_fallthru
      _
    // Predicated region
    $region122: #{tpu_custom_call.1} parent=1 // pred_check
      _
    $region123: #{tpu_custom_call.1} parent=1 // pred_check_branch
      %225 = sbr.rel (0) target = $region125
    $region124: #{tpu_custom_call.1} parent=1 // pred_region
      %226 = dma.done [#allocation27], 16
    $region125: #{tpu_custom_call.1} parent=1 // pred_fallthru
      _
    %vm227 = vcmask 581632
    %228 = vst.msk [vmem:[#allocation2] sm:$0x1] %vm227, 0.0
    %229 = vst.msk [vmem:[#allocation2 + $0x18] sm:$0x1] %vm227, 0.0
    %230 = vst.msk [vmem:[#allocation2 + $0x11] sm:$0x1] %vm227, 0.0
    %231 = vst.msk [vmem:[#allocation2 + $0x29] sm:$0x1] %vm227, 0.0
    %v232 = vlaneseq
    %vm233 = vcmp.ge.s32.totalorder %v232, 0
    %vm234 = vcmp.lt.s32.totalorder %v232, 288
    %vm235 = vmand %vm233, %vm234
    %236 = vst.msk [vmem:[#allocation3] ss:$8 sm:$0x7] %vm235, 0.0
    %237 = vst.msk [vmem:[#allocation3] ss:$8 sm:$0x0] %vm235, 0.0
    %s238 = scalar_lea.vmem [#allocation3], 72
    %239 = vst.msk [vmem:[%s238] ss:$8 sm:$0x7] %vm235, 0.0
    %240 = vst.msk [vmem:[%s238] ss:$8 sm:$0x0] %vm235, 0.0
    %s241 = scalar_lea.vmem [#allocation3], 49
    %242 = vst.msk [vmem:[%s241] ss:$8 sm:$0x7] %vm235, 0.0
    %243 = vst.msk [vmem:[%s241] ss:$8 sm:$0x0] %vm235, 0.0
    %s244 = scalar_lea.vmem [#allocation3], 121
    %245 = vst.msk [vmem:[%s244] ss:$8 sm:$0x7] %vm235, 0.0
    %246 = vst.msk [vmem:[%s244] ss:$8 sm:$0x0] %vm235, 0.0
    %247 = vst.msk [vmem:[#allocation4] ss:$8 sm:$0x7] %vm235, 0.0
    %248 = vst.msk [vmem:[#allocation4] ss:$8 sm:$0x0] %vm235, 0.0
    %s249 = scalar_lea.vmem [#allocation4], 72
    %250 = vst.msk [vmem:[%s249] ss:$8 sm:$0x7] %vm235, 0.0
    %251 = vst.msk [vmem:[%s249] ss:$8 sm:$0x0] %vm235, 0.0
    %s252 = scalar_lea.vmem [#allocation4], 49
    %253 = vst.msk [vmem:[%s252] ss:$8 sm:$0x7] %vm235, 0.0
    %254 = vst.msk [vmem:[%s252] ss:$8 sm:$0x0] %vm235, 0.0
    %s255 = scalar_lea.vmem [#allocation4], 121
    %256 = vst.msk [vmem:[%s255] ss:$8 sm:$0x7] %vm235, 0.0
    %257 = vst.msk [vmem:[%s255] ss:$8 sm:$0x0] %vm235, 0.0
    %v258 = vld [vmem:[#allocation5] sm:$0xff]
    %v259 = vld [vmem:[#allocation5 + $0x8] sm:$0xff]
    %v260 = vld [vmem:[#allocation5 + $0x10] sm:$0xff]
    %v261 = vld [vmem:[#allocation5 + $0x18] sm:$0xff]
    %vm262 = vcmask 588800
    %v263 = vsel %vm262, %v258, 0.0
    %v264 = vsel %vm262, %v259, 0.0
    %v265 = vadd.f32 %v263, %v264
    %v266 = vsel %vm262, %v260, 0.0
    %v267 = vadd.f32 %v265, %v266
    %v268 = vsel %vm262, %v261, 0.0
    %v269 = vadd.f32 %v267, %v268
    %v270 = vrot.slane %v269, 4
    %v271 = vadd.f32 %v269, %v270
    %v272 = vrot.slane %v271, 2
    %v273 = vadd.f32 %v271, %v272
    %v274 = vrot.slane %v273, 1
    %v275 = vadd.f32 %v273, %v274
    %v276 = vmul.f32 %v258, %v258
    %v277 = vmul.f32 %v259, %v259
    %v278 = vmul.f32 %v260, %v260
    %v279 = vmul.f32 %v261, %v261
    %v280 = vsel %vm262, %v276, 0.0
    %v281 = vsel %vm262, %v277, 0.0
    %v282 = vadd.f32 %v280, %v281
    %v283 = vsel %vm262, %v278, 0.0
    %v284 = vadd.f32 %v282, %v283
    %v285 = vsel %vm262, %v279, 0.0
    %v286 = vadd.f32 %v284, %v285
    %v287 = vrot.slane %v286, 4
    %v288 = vadd.f32 %v286, %v287
    %v289 = vrot.slane %v288, 2
    %v290 = vadd.f32 %v288, %v289
    %v291 = vrot.slane %v290, 1
    %v292 = vadd.f32 %v290, %v291
    %v293 = vld [vmem:[%s1] sm:$0xff]
    %v294 = vld [vmem:[%s1 + $0x8] sm:$0xff]
    %v295 = vld [vmem:[%s1 + $0x10] sm:$0xff]
    %v296 = vld [vmem:[%s1 + $0x18] sm:$0xff]
    %v297 = vld [vmem:[%s1 + $0x20] sm:$0xff]
    %v298 = vld [vmem:[%s1 + $0x28] sm:$0xff]
    %v299 = vld [vmem:[%s1 + $0x30] sm:$0xff]
    %v300 = vld [vmem:[%s1 + $0x38] sm:$0xff]
    %v301 = vld [vmem:[%s1 + $0x40] sm:$0xff]
    %v303 = vsel %vm262, %v275, 0
    %305 = vmatprep.subr.mxu0 0.0
    %306 = vmatpush1.msra.mxu0 0.0
    %307 = vmatprep.subr.mxu0 0.0
    %308 = vmatpush1.msra.mxu0 0.0
    %309 = vmatprep.subr.mxu0 0.0
    %310 = vmatpush1.msra.mxu0 0.0
    %311 = vmatprep.subr.mxu0 0.0
    %312 = vmatpush1.msra.mxu0 0.0
    %313 = vmatprep.subr.mxu0 0.0
    %314 = vmatpush1.msra.mxu0 0.0
    %315 = vmatprep.subr.mxu0 0.0
    %316 = vmatpush1.msra.mxu0 0.0
    %317 = vmatprep.subr.mxu0 0.0
    %318 = vmatpush1.msra.mxu0 0.0
    %319 = vmatprep.subr.mxu0 0.0
    %320 = vmatpush1.msra.mxu0 %v301
    %321 = vmatprep.subr.mxu0 0.0
    %322 = vmatpush1.msra.mxu0 %v300
    %323 = vmatprep.subr.mxu0 0.0
    %324 = vmatpush1.msra.mxu0 %v299
    %325 = vmatprep.subr.mxu0 0.0
    %326 = vmatpush1.msra.mxu0 %v298
    %327 = vmatprep.subr.mxu0 0.0
    %328 = vmatpush1.msra.mxu0 %v297
    %329 = vmatprep.subr.mxu0 0.0
    %330 = vmatpush1.msra.mxu0 %v296
    %331 = vmatprep.subr.mxu0 0.0
    %332 = vmatpush1.msra.mxu0 %v295
    %333 = vmatprep.subr.mxu0 0.0
    %334 = vmatpush1.msra.mxu0 %v294
    %335 = vmatprep.subr.mxu0 0.0
    %336 = vmatpush1.msra.mxu0 %v293
    %337 = vmatprep.subr.mxu0 0.0
    %338 = vmatpush2.msra.mxu0 0.0
    %339 = vmatprep.subr.mxu0 0.0
    %340 = vmatpush2.msra.mxu0 0.0
    %341 = vmatprep.subr.mxu0 0.0
    %342 = vmatpush2.msra.mxu0 0.0
    %343 = vmatprep.subr.mxu0 0.0
    %344 = vmatpush2.msra.mxu0 0.0
    %345 = vmatprep.subr.mxu0 0.0
    %346 = vmatpush2.msra.mxu0 0.0
    %347 = vmatprep.subr.mxu0 0.0
    %348 = vmatpush2.msra.mxu0 0.0
    %349 = vmatprep.subr.mxu0 0.0
    %350 = vmatpush2.msra.mxu0 0.0
    %351 = vmatprep.subr.mxu0 0.0
    %352 = vmatpush2.msra.mxu0 0.0
    %353 = vmatprep.subr.mxu0 0.0
    %354 = vmatpush2.msra.mxu0 0.0
    %355 = vmatprep.subr.mxu0 0.0
    %356 = vmatpush2.msra.mxu0 0.0
    %357 = vmatprep.subr.mxu0 0.0
    %358 = vmatpush2.msra.mxu0 0.0
    %359 = vmatprep.subr.mxu0 0.0
    %360 = vmatpush2.msra.mxu0 0.0
    %361 = vmatprep.subr.mxu0 0.0
    %362 = vmatpush2.msra.mxu0 0.0
    %363 = vmatprep.subr.mxu0 0.0
    %364 = vmatpush2.msra.mxu0 0.0
    %365 = vmatprep.subr.mxu0 0.0
    %366 = vmatpush2.msra.mxu0 0.0
    %367 = vmatprep.subr.mxu0 0.0
    %368 = vmatpush2.msra.mxu0 0.0
    %369 = vmatprep.mubr.f32.mxu0 0.0
    %370 = vmatmul.mubr.f32.gmra.mxu0 %v303
    %v371 = vpop.f32.mrf.mxu0
    %v372 = vadd.f32 0.0, %v371
    %v373 = vpop.f32.mrf.mxu0
    %374 = vdwg.mxu0
    %v375 = vmul.f32 %v372, 0.001953125
    %v377 = vsel %vm262, %v292, 0
    %379 = vmatprep.subr.mxu0 0.0
    %380 = vmatpush1.msra.mxu0 0.0
    %381 = vmatprep.subr.mxu0 0.0
    %382 = vmatpush1.msra.mxu0 0.0
    %383 = vmatprep.subr.mxu0 0.0
    %384 = vmatpush1.msra.mxu0 0.0
    %385 = vmatprep.subr.mxu0 0.0
    %386 = vmatpush1.msra.mxu0 0.0
    %387 = vmatprep.subr.mxu0 0.0
    %388 = vmatpush1.msra.mxu0 0.0
    %389 = vmatprep.subr.mxu0 0.0
    %390 = vmatpush1.msra.mxu0 0.0
    %391 = vmatprep.subr.mxu0 0.0
    %392 = vmatpush1.msra.mxu0 0.0
    %393 = vmatprep.subr.mxu0 0.0
    %394 = vmatpush1.msra.mxu0 %v301
    %395 = vmatprep.subr.mxu0 0.0
    %396 = vmatpush1.msra.mxu0 %v300
    %397 = vmatprep.subr.mxu0 0.0
    %398 = vmatpush1.msra.mxu0 %v299
    %399 = vmatprep.subr.mxu0 0.0
    %400 = vmatpush1.msra.mxu0 %v298
    %401 = vmatprep.subr.mxu0 0.0
    %402 = vmatpush1.msra.mxu0 %v297
    %403 = vmatprep.subr.mxu0 0.0
    %404 = vmatpush1.msra.mxu0 %v296
    %405 = vmatprep.subr.mxu0 0.0
    %406 = vmatpush1.msra.mxu0 %v295
    %407 = vmatprep.subr.mxu0 0.0
    %408 = vmatpush1.msra.mxu0 %v294
    %409 = vmatprep.subr.mxu0 0.0
    %410 = vmatpush1.msra.mxu0 %v293
    %411 = vmatprep.subr.mxu0 0.0
    %412 = vmatpush2.msra.mxu0 0.0
    %413 = vmatprep.subr.mxu0 0.0
    %414 = vmatpush2.msra.mxu0 0.0
    %415 = vmatprep.subr.mxu0 0.0
    %416 = vmatpush2.msra.mxu0 0.0
    %417 = vmatprep.subr.mxu0 0.0
    %418 = vmatpush2.msra.mxu0 0.0
    %419 = vmatprep.subr.mxu0 0.0
    %420 = vmatpush2.msra.mxu0 0.0
    %421 = vmatprep.subr.mxu0 0.0
    %422 = vmatpush2.msra.mxu0 0.0
    %423 = vmatprep.subr.mxu0 0.0
    %424 = vmatpush2.msra.mxu0 0.0
    %425 = vmatprep.subr.mxu0 0.0
    %426 = vmatpush2.msra.mxu0 0.0
    %427 = vmatprep.subr.mxu0 0.0
    %428 = vmatpush2.msra.mxu0 0.0
    %429 = vmatprep.subr.mxu0 0.0
    %430 = vmatpush2.msra.mxu0 0.0
    %431 = vmatprep.subr.mxu0 0.0
    %432 = vmatpush2.msra.mxu0 0.0
    %433 = vmatprep.subr.mxu0 0.0
    %434 = vmatpush2.msra.mxu0 0.0
    %435 = vmatprep.subr.mxu0 0.0
    %436 = vmatpush2.msra.mxu0 0.0
    %437 = vmatprep.subr.mxu0 0.0
    %438 = vmatpush2.msra.mxu0 0.0
    %439 = vmatprep.subr.mxu0 0.0
    %440 = vmatpush2.msra.mxu0 0.0
    %441 = vmatprep.subr.mxu0 0.0
    %442 = vmatpush2.msra.mxu0 0.0
    %443 = vmatprep.mubr.f32.mxu0 0.0
    %444 = vmatmul.mubr.f32.gmra.mxu0 %v377
    %v445 = vpop.f32.mrf.mxu0
    %v446 = vadd.f32 0.0, %v445
    %v447 = vpop.f32.mrf.mxu0
    %448 = vdwg.mxu0
    %v449 = vmul.f32 %v446, 0.001953125
    %v450 = vmul.f32 %v375, %v375
    %v451 = vsub.f32 %v449, %v450
    %v452 = vmax.f32 %v451, 0.0
    %v453 = vld [vmem:[#allocation10] sm:$0x1]
    %v454 = vadd.f32 %v452, 1e-05
    %v455 = vrsqrt.pop %v454
    %v456 = vmul.f32 %v453, %v455
    %v457 = vld [vmem:[#allocation11] sm:$0x1]
    %v458 = vmul.f32 %v375, %v456
    %v459 = vsub.f32 %v457, %v458
    %v460 = vld [vmem:[#allocation8] sm:$0xf]
    %vm461 = vcmask 31744
    %v463 = vsel %vm461, %v456, 0
    %vm465 = vcmask 1043456
    %v467 = vsel %vm465, %v460, 0
    %469 = vmatprep.subr.mxu0 0.0
    %470 = vmatpush1.msra.mxu0 0.0
    %471 = vmatprep.subr.mxu0 0.0
    %472 = vmatpush1.msra.mxu0 0.0
    %473 = vmatprep.subr.mxu0 0.0
    %474 = vmatpush1.msra.mxu0 0.0
    %475 = vmatprep.subr.mxu0 0.0
    %476 = vmatpush1.msra.mxu0 0.0
    %477 = vmatprep.subr.mxu0 0.0
    %478 = vmatpush1.msra.mxu0 0.0
    %479 = vmatprep.subr.mxu0 0.0
    %480 = vmatpush1.msra.mxu0 0.0
    %481 = vmatprep.subr.mxu0 0.0
    %482 = vmatpush1.msra.mxu0 0.0
    %483 = vmatprep.subr.mxu0 0.0
    %484 = vmatpush1.msra.mxu0 0.0
    %485 = vmatprep.subr.mxu0 0.0
    %486 = vmatpush1.msra.mxu0 0.0
    %487 = vmatprep.subr.mxu0 0.0
    %488 = vmatpush1.msra.mxu0 0.0
    %489 = vmatprep.subr.mxu0 0.0
    %490 = vmatpush1.msra.mxu0 0.0
    %491 = vmatprep.subr.mxu0 0.0
    %492 = vmatpush1.msra.mxu0 0.0
    %493 = vmatprep.subr.mxu0 0.0
    %494 = vmatpush1.msra.mxu0 0.0
    %495 = vmatprep.subr.mxu0 0.0
    %496 = vmatpush1.msra.mxu0 0.0
    %497 = vmatprep.subr.mxu0 0.0
    %498 = vmatpush1.msra.mxu0 0.0
    %499 = vmatprep.subr.mxu0 0.0
    %500 = vmatpush1.msra.mxu0 %v467
    %501 = vmatprep.subr.mxu0 0.0
    %502 = vmatpush2.msra.mxu0 0.0
    %503 = vmatprep.subr.mxu0 0.0
    %504 = vmatpush2.msra.mxu0 0.0
    %505 = vmatprep.subr.mxu0 0.0
    %506 = vmatpush2.msra.mxu0 0.0
    %507 = vmatprep.subr.mxu0 0.0
    %508 = vmatpush2.msra.mxu0 0.0
    %509 = vmatprep.subr.mxu0 0.0
    %510 = vmatpush2.msra.mxu0 0.0
    %511 = vmatprep.subr.mxu0 0.0
    %512 = vmatpush2.msra.mxu0 0.0
    %513 = vmatprep.subr.mxu0 0.0
    %514 = vmatpush2.msra.mxu0 0.0
    %515 = vmatprep.subr.mxu0 0.0
    %516 = vmatpush2.msra.mxu0 0.0
    %517 = vmatprep.subr.mxu0 0.0
    %518 = vmatpush2.msra.mxu0 0.0
    %519 = vmatprep.subr.mxu0 0.0
    %520 = vmatpush2.msra.mxu0 0.0
    %521 = vmatprep.subr.mxu0 0.0
    %522 = vmatpush2.msra.mxu0 0.0
    %523 = vmatprep.subr.mxu0 0.0
    %524 = vmatpush2.msra.mxu0 0.0
    %525 = vmatprep.subr.mxu0 0.0
    %526 = vmatpush2.msra.mxu0 0.0
    %527 = vmatprep.subr.mxu0 0.0
    %528 = vmatpush2.msra.mxu0 0.0
    %529 = vmatprep.subr.mxu0 0.0
    %530 = vmatpush2.msra.mxu0 0.0
    %531 = vmatprep.subr.mxu0 0.0
    %532 = vmatpush2.msra.mxu0 0.0
    %533 = vmatprep.mubr.f32.mxu0 0.0
    %534 = vmatmul.mubr.f32.gmra.mxu0 %v463
    %v535 = vpop.f32.mrf.mxu0
    %v536 = vadd.f32 0.0, %v535
    %v537 = vpop.f32.mrf.mxu0
    %538 = vdwg.mxu0
    %v540 = vsel %vm461, %v459, 0
    %542 = vmatprep.subr.mxu0 0.0
    %543 = vmatpush1.msra.mxu0 0.0
    %544 = vmatprep.subr.mxu0 0.0
    %545 = vmatpush1.msra.mxu0 0.0
    %546 = vmatprep.subr.mxu0 0.0
    %547 = vmatpush1.msra.mxu0 0.0
    %548 = vmatprep.subr.mxu0 0.0
    %549 = vmatpush1.msra.mxu0 0.0
    %550 = vmatprep.subr.mxu0 0.0
    %551 = vmatpush1.msra.mxu0 0.0
    %552 = vmatprep.subr.mxu0 0.0
    %553 = vmatpush1.msra.mxu0 0.0
    %554 = vmatprep.subr.mxu0 0.0
    %555 = vmatpush1.msra.mxu0 0.0
    %556 = vmatprep.subr.mxu0 0.0
    %557 = vmatpush1.msra.mxu0 0.0
    %558 = vmatprep.subr.mxu0 0.0
    %559 = vmatpush1.msra.mxu0 0.0
    %560 = vmatprep.subr.mxu0 0.0
    %561 = vmatpush1.msra.mxu0 0.0
    %562 = vmatprep.subr.mxu0 0.0
    %563 = vmatpush1.msra.mxu0 0.0
    %564 = vmatprep.subr.mxu0 0.0
    %565 = vmatpush1.msra.mxu0 0.0
    %566 = vmatprep.subr.mxu0 0.0
    %567 = vmatpush1.msra.mxu0 0.0
    %568 = vmatprep.subr.mxu0 0.0
    %569 = vmatpush1.msra.mxu0 0.0
    %570 = vmatprep.subr.mxu0 0.0
    %571 = vmatpush1.msra.mxu0 0.0
    %572 = vmatprep.subr.mxu0 0.0
    %573 = vmatpush1.msra.mxu0 %v467
    %574 = vmatprep.subr.mxu0 0.0
    %575 = vmatpush2.msra.mxu0 0.0
    %576 = vmatprep.subr.mxu0 0.0
    %577 = vmatpush2.msra.mxu0 0.0
    %578 = vmatprep.subr.mxu0 0.0
    %579 = vmatpush2.msra.mxu0 0.0
    %580 = vmatprep.subr.mxu0 0.0
    %581 = vmatpush2.msra.mxu0 0.0
    %582 = vmatprep.subr.mxu0 0.0
    %583 = vmatpush2.msra.mxu0 0.0
    %584 = vmatprep.subr.mxu0 0.0
    %585 = vmatpush2.msra.mxu0 0.0
    %586 = vmatprep.subr.mxu0 0.0
    %587 = vmatpush2.msra.mxu0 0.0
    %588 = vmatprep.subr.mxu0 0.0
    %589 = vmatpush2.msra.mxu0 0.0
    %590 = vmatprep.subr.mxu0 0.0
    %591 = vmatpush2.msra.mxu0 0.0
    %592 = vmatprep.subr.mxu0 0.0
    %593 = vmatpush2.msra.mxu0 0.0
    %594 = vmatprep.subr.mxu0 0.0
    %595 = vmatpush2.msra.mxu0 0.0
    %596 = vmatprep.subr.mxu0 0.0
    %597 = vmatpush2.msra.mxu0 0.0
    %598 = vmatprep.subr.mxu0 0.0
    %599 = vmatpush2.msra.mxu0 0.0
    %600 = vmatprep.subr.mxu0 0.0
    %601 = vmatpush2.msra.mxu0 0.0
    %602 = vmatprep.subr.mxu0 0.0
    %603 = vmatpush2.msra.mxu0 0.0
    %604 = vmatprep.subr.mxu0 0.0
    %605 = vmatpush2.msra.mxu0 0.0
    %606 = vmatprep.mubr.f32.mxu0 0.0
    %607 = vmatmul.mubr.f32.gmra.mxu0 %v540
    %v608 = vpop.f32.mrf.mxu0
    %v609 = vadd.f32 0.0, %v608
    %v610 = vpop.f32.mrf.mxu0
    %611 = vdwg.mxu0
    %v612 = vlaneseq
    %v613 = vshrl.u32 %v612, 7
    %v614 = vsub.s32 0, %v613
    %v615 = vrot.slane %v536, %v614
    %v616 = vmul.f32 %v258, %v615
    %v617 = vmul.f32 %v259, %v615
    %v618 = vmul.f32 %v260, %v615
    %v619 = vmul.f32 %v261, %v615
    %v620 = vlaneseq
    %v621 = vshrl.u32 %v620, 7
    %v622 = vsub.s32 0, %v621
    %v623 = vrot.slane %v609, %v622
    %v624 = vadd.f32 %v616, %v623
    %v625 = vadd.f32 %v617, %v623
    %v626 = vadd.f32 %v618, %v623
    %v627 = vadd.f32 %v619, %v623
    %628 = vst.msk [vmem:[#allocation2 + $0x1] sm:$0xff] %vm262, %v624
    %629 = vst.msk [vmem:[#allocation2 + $0x9] sm:$0xff] %vm262, %v625
    %630 = vst.msk [vmem:[#allocation2 + $0x19] sm:$0xff] %vm262, %v626
    %631 = vst.msk [vmem:[#allocation2 + $0x21] sm:$0xff] %vm262, %v627
    %v632 = vld [vmem:[#allocation2] sm:$0xff]
    %v633 = vld [vmem:[#allocation2 + $0x8] sm:$0xff]
    %v634 = vld [vmem:[#allocation2 + $0x18] sm:$0xff]
    %v635 = vld [vmem:[#allocation2 + $0x20] sm:$0xff]
    %v636 = vld [vmem:[#allocation14] sm:$0xff]
    %v637 = vld [vmem:[#allocation14 + $0x8] sm:$0xff]
    %v638 = vld [vmem:[#allocation14 + $0x10] sm:$0xff]
    %v639 = vld [vmem:[#allocation14 + $0x18] sm:$0xff]
    %v640 = vld [vmem:[#allocation14 + $0x20] sm:$0xff]
    %v641 = vld [vmem:[#allocation14 + $0x28] sm:$0xff]
    %v642 = vld [vmem:[#allocation14 + $0x30] sm:$0xff]
    %v643 = vld [vmem:[#allocation14 + $0x38] sm:$0xff]
    %v644 = vld [vmem:[#allocation14 + $0x40] sm:$0xff]
    %v645 = vld [vmem:[#allocation14 + $0x48] sm:$0xff]
    %v646 = vld [vmem:[#allocation14 + $0x50] sm:$0xff]
    %v647 = vld [vmem:[#allocation14 + $0x58] sm:$0xff]
    %v648 = vld [vmem:[#allocation14 + $0x60] sm:$0xff]
    %v649 = vld [vmem:[#allocation14 + $0x68] sm:$0xff]
    %v650 = vld [vmem:[#allocation14 + $0x70] sm:$0xff]
    %v651 = vld [vmem:[#allocation14 + $0x78] sm:$0xff]
    %v652 = vld [vmem:[#allocation14 + $0x80] sm:$0xff]
    %v653 = vld [vmem:[#allocation14 + $0x88] sm:$0xff]
    %v654 = vld [vmem:[#allocation14 + $0x90] sm:$0xff]
    %v655 = vld [vmem:[#allocation14 + $0x98] sm:$0xff]
    %v656 = vld [vmem:[#allocation14 + $0xa0] sm:$0xff]
    %v657 = vld [vmem:[#allocation14 + $0xa8] sm:$0xff]
    %v658 = vld [vmem:[#allocation14 + $0xb0] sm:$0xff]
    %v659 = vld [vmem:[#allocation14 + $0xb8] sm:$0xff]
    %v660 = vld [vmem:[#allocation14 + $0xc0] sm:$0xff]
    %v661 = vld [vmem:[#allocation14 + $0xc8] sm:$0xff]
    %v662 = vld [vmem:[#allocation14 + $0xd0] sm:$0xff]
    %v663 = vld [vmem:[#allocation2 + $0x1] sm:$0xff]
    %v664 = vld [vmem:[#allocation2 + $0x9] sm:$0xff]
    %v665 = vld [vmem:[#allocation2 + $0x19] sm:$0xff]
    %v666 = vld [vmem:[#allocation2 + $0x21] sm:$0xff]
    %s667 = scalar_lea.vmem [#allocation14], 216
    %v668 = vld [vmem:[%s667] sm:$0xff]
    %v669 = vld [vmem:[%s667 + $0x8] sm:$0xff]
    %v670 = vld [vmem:[%s667 + $0x10] sm:$0xff]
    %v671 = vld [vmem:[%s667 + $0x18] sm:$0xff]
    %v672 = vld [vmem:[%s667 + $0x20] sm:$0xff]
    %v673 = vld [vmem:[%s667 + $0x28] sm:$0xff]
    %v674 = vld [vmem:[%s667 + $0x30] sm:$0xff]
    %v675 = vld [vmem:[%s667 + $0x38] sm:$0xff]
    %v676 = vld [vmem:[%s667 + $0x40] sm:$0xff]
    %v677 = vld [vmem:[%s667 + $0x48] sm:$0xff]
    %v678 = vld [vmem:[%s667 + $0x50] sm:$0xff]
    %v679 = vld [vmem:[%s667 + $0x58] sm:$0xff]
    %v680 = vld [vmem:[%s667 + $0x60] sm:$0xff]
    %v681 = vld [vmem:[%s667 + $0x68] sm:$0xff]
    %v682 = vld [vmem:[%s667 + $0x70] sm:$0xff]
    %v683 = vld [vmem:[%s667 + $0x78] sm:$0xff]
    %v684 = vld [vmem:[%s667 + $0x80] sm:$0xff]
    %v685 = vld [vmem:[%s667 + $0x88] sm:$0xff]
    %v686 = vld [vmem:[%s667 + $0x90] sm:$0xff]
    %v687 = vld [vmem:[%s667 + $0x98] sm:$0xff]
    %v688 = vld [vmem:[%s667 + $0xa0] sm:$0xff]
    %v689 = vld [vmem:[%s667 + $0xa8] sm:$0xff]
    %v690 = vld [vmem:[%s667 + $0xb0] sm:$0xff]
    %v691 = vld [vmem:[%s667 + $0xb8] sm:$0xff]
    %v692 = vld [vmem:[%s667 + $0xc0] sm:$0xff]
    %v693 = vld [vmem:[%s667 + $0xc8] sm:$0xff]
    %v694 = vld [vmem:[%s667 + $0xd0] sm:$0xff]
    %v696 = vsel %vm262, %v663, 0
    %v699 = vsel %vm262, %v664, 0
    %v702 = vsel %vm262, %v665, 0
    %v705 = vsel %vm262, %v666, 0
    %707 = vmatprep.subr.mxu0 0.0
    %708 = vmatpush1.msra.mxu0 0.0
    %709 = vmatprep.subr.mxu0 0.0
    %710 = vmatpush1.msra.mxu0 0.0
    %711 = vmatprep.subr.mxu0 0.0
    %712 = vmatpush1.msra.mxu0 0.0
    %713 = vmatprep.subr.mxu0 0.0
    %714 = vmatpush1.msra.mxu0 0.0
    %715 = vmatprep.subr.mxu0 0.0
    %716 = vmatpush1.msra.mxu0 0.0
    %717 = vmatprep.subr.mxu0 0.0
    %718 = vmatpush1.msra.mxu0 0.0
    %719 = vmatprep.subr.mxu0 0.0
    %720 = vmatpush1.msra.mxu0 0.0
    %721 = vmatprep.subr.mxu0 %v693
    %722 = vmatpush1.msra.mxu0 %v692
    %723 = vmatprep.subr.mxu0 %v690
    %724 = vmatpush1.msra.mxu0 %v689
    %725 = vmatprep.subr.mxu0 %v687
    %726 = vmatpush1.msra.mxu0 %v686
    %727 = vmatprep.subr.mxu0 %v684
    %728 = vmatpush1.msra.mxu0 %v683
    %729 = vmatprep.subr.mxu0 %v681
    %730 = vmatpush1.msra.mxu0 %v680
    %731 = vmatprep.subr.mxu0 %v678
    %732 = vmatpush1.msra.mxu0 %v677
    %733 = vmatprep.subr.mxu0 %v675
    %734 = vmatpush1.msra.mxu0 %v674
    %735 = vmatprep.subr.mxu0 %v672
    %736 = vmatpush1.msra.mxu0 %v671
    %737 = vmatprep.subr.mxu0 %v669
    %738 = vmatpush1.msra.mxu0 %v668
    %739 = vmatprep.subr.mxu0 0.0
    %740 = vmatpush2.msra.mxu0 0.0
    %741 = vmatprep.subr.mxu0 0.0
    %742 = vmatpush2.msra.mxu0 0.0
    %743 = vmatprep.subr.mxu0 0.0
    %744 = vmatpush2.msra.mxu0 0.0
    %745 = vmatprep.subr.mxu0 0.0
    %746 = vmatpush2.msra.mxu0 0.0
    %747 = vmatprep.subr.mxu0 0.0
    %748 = vmatpush2.msra.mxu0 0.0
    %749 = vmatprep.subr.mxu0 0.0
    %750 = vmatpush2.msra.mxu0 0.0
    %751 = vmatprep.subr.mxu0 0.0
    %752 = vmatpush2.msra.mxu0 0.0
    %753 = vmatprep.subr.mxu0 0.0
    %754 = vmatpush2.msra.mxu0 0.0
    %755 = vmatprep.subr.mxu0 0.0
    %756 = vmatpush2.msra.mxu0 0.0
    %757 = vmatprep.subr.mxu0 0.0
    %758 = vmatpush2.msra.mxu0 0.0
    %759 = vmatprep.subr.mxu0 0.0
    %760 = vmatpush2.msra.mxu0 0.0
    %761 = vmatprep.subr.mxu0 0.0
    %762 = vmatpush2.msra.mxu0 0.0
    %763 = vmatprep.subr.mxu0 0.0
    %764 = vmatpush2.msra.mxu0 0.0
    %765 = vmatprep.subr.mxu0 0.0
    %766 = vmatpush2.msra.mxu0 0.0
    %767 = vmatprep.subr.mxu0 0.0
    %768 = vmatpush2.msra.mxu0 0.0
    %769 = vmatprep.subr.mxu0 0.0
    %770 = vmatpush2.msra.mxu0 0.0
    %771 = vmatprep.mubr.f32.mxu0 0.0
    %772 = vmatmul.mubr.f32.gmra.mxu0 %v696
    %v773 = vpop.f32.mrf.mxu0
    %v774 = vadd.f32 0.0, %v773
    %v775 = vpop.f32.mrf.mxu0
    %v776 = vadd.f32 0.0, %v775
    %777 = vmatprep.mubr.f32.mxu0 0.0
    %778 = vmatmul.mubr.f32.gmra.mxu0 %v699
    %v779 = vpop.f32.mrf.mxu0
    %v780 = vadd.f32 0.0, %v779
    %v781 = vpop.f32.mrf.mxu0
    %v782 = vadd.f32 0.0, %v781
    %783 = vmatprep.mubr.f32.mxu0 0.0
    %784 = vmatmul.mubr.f32.gmra.mxu0 %v702
    %v785 = vpop.f32.mrf.mxu0
    %v786 = vadd.f32 0.0, %v785
    %v787 = vpop.f32.mrf.mxu0
    %v788 = vadd.f32 0.0, %v787
    %789 = vmatprep.mubr.f32.mxu0 0.0
    %790 = vmatmul.mubr.f32.gmra.mxu0 %v705
    %v791 = vpop.f32.mrf.mxu0
    %v792 = vadd.f32 0.0, %v791
    %v793 = vpop.f32.mrf.mxu0
    %v794 = vadd.f32 0.0, %v793
    %795 = vdwg.mxu0
    %796 = vmatprep.subr.mxu0 0.0
    %797 = vmatpush1.msra.mxu0 0.0
    %798 = vmatprep.subr.mxu0 0.0
    %799 = vmatpush1.msra.mxu0 0.0
    %800 = vmatprep.subr.mxu0 0.0
    %801 = vmatpush1.msra.mxu0 0.0
    %802 = vmatprep.subr.mxu0 0.0
    %803 = vmatpush1.msra.mxu0 0.0
    %804 = vmatprep.subr.mxu0 0.0
    %805 = vmatpush1.msra.mxu0 0.0
    %806 = vmatprep.subr.mxu0 0.0
    %807 = vmatpush1.msra.mxu0 0.0
    %808 = vmatprep.subr.mxu0 0.0
    %809 = vmatpush1.msra.mxu0 0.0
    %810 = vmatprep.subr.mxu0 0.0
    %811 = vmatpush1.msra.mxu0 %v694
    %812 = vmatprep.subr.mxu0 0.0
    %813 = vmatpush1.msra.mxu0 %v691
    %814 = vmatprep.subr.mxu0 0.0
    %815 = vmatpush1.msra.mxu0 %v688
    %816 = vmatprep.subr.mxu0 0.0
    %817 = vmatpush1.msra.mxu0 %v685
    %818 = vmatprep.subr.mxu0 0.0
    %819 = vmatpush1.msra.mxu0 %v682
    %820 = vmatprep.subr.mxu0 0.0
    %821 = vmatpush1.msra.mxu0 %v679
    %822 = vmatprep.subr.mxu0 0.0
    %823 = vmatpush1.msra.mxu0 %v676
    %824 = vmatprep.subr.mxu0 0.0
    %825 = vmatpush1.msra.mxu0 %v673
    %826 = vmatprep.subr.mxu0 0.0
    %827 = vmatpush1.msra.mxu0 %v670
    %828 = vmatprep.subr.mxu0 0.0
    %829 = vmatpush2.msra.mxu0 0.0
    %830 = vmatprep.subr.mxu0 0.0
    %831 = vmatpush2.msra.mxu0 0.0
    %832 = vmatprep.subr.mxu0 0.0
    %833 = vmatpush2.msra.mxu0 0.0
    %834 = vmatprep.subr.mxu0 0.0
    %835 = vmatpush2.msra.mxu0 0.0
    %836 = vmatprep.subr.mxu0 0.0
    %837 = vmatpush2.msra.mxu0 0.0
    %838 = vmatprep.subr.mxu0 0.0
    %839 = vmatpush2.msra.mxu0 0.0
    %840 = vmatprep.subr.mxu0 0.0
    %841 = vmatpush2.msra.mxu0 0.0
    %842 = vmatprep.subr.mxu0 0.0
    %843 = vmatpush2.msra.mxu0 0.0
    %844 = vmatprep.subr.mxu0 0.0
    %845 = vmatpush2.msra.mxu0 0.0
    %846 = vmatprep.subr.mxu0 0.0
    %847 = vmatpush2.msra.mxu0 0.0
    %848 = vmatprep.subr.mxu0 0.0
    %849 = vmatpush2.msra.mxu0 0.0
    %850 = vmatprep.subr.mxu0 0.0
    %851 = vmatpush2.msra.mxu0 0.0
    %852 = vmatprep.subr.mxu0 0.0
    %853 = vmatpush2.msra.mxu0 0.0
    %854 = vmatprep.subr.mxu0 0.0
    %855 = vmatpush2.msra.mxu0 0.0
    %856 = vmatprep.subr.mxu0 0.0
    %857 = vmatpush2.msra.mxu0 0.0
    %858 = vmatprep.subr.mxu0 0.0
    %859 = vmatpush2.msra.mxu0 0.0
    %860 = vmatprep.mubr.f32.mxu0 0.0
    %861 = vmatmul.mubr.f32.gmra.mxu0 %v696
    %v862 = vpop.f32.mrf.mxu0
    %v863 = vadd.f32 0.0, %v862
    %v864 = vpop.f32.mrf.mxu0
    %865 = vmatprep.mubr.f32.mxu0 0.0
    %866 = vmatmul.mubr.f32.gmra.mxu0 %v699
    %v867 = vpop.f32.mrf.mxu0
    %v868 = vadd.f32 0.0, %v867
    %v869 = vpop.f32.mrf.mxu0
    %870 = vmatprep.mubr.f32.mxu0 0.0
    %871 = vmatmul.mubr.f32.gmra.mxu0 %v702
    %v872 = vpop.f32.mrf.mxu0
    %v873 = vadd.f32 0.0, %v872
    %v874 = vpop.f32.mrf.mxu0
    %875 = vmatprep.mubr.f32.mxu0 0.0
    %876 = vmatmul.mubr.f32.gmra.mxu0 %v705
    %v877 = vpop.f32.mrf.mxu0
    %v878 = vadd.f32 0.0, %v877
    %v879 = vpop.f32.mrf.mxu0
    %880 = vdwg.mxu0
    %v882 = vsel %vm262, %v632, 0
    %v885 = vsel %vm262, %v633, 0
    %v888 = vsel %vm262, %v634, 0
    %v891 = vsel %vm262, %v635, 0
    %893 = vmatprep.subr.mxu0 0.0
    %894 = vmatpush1.msra.mxu0 0.0
    %895 = vmatprep.subr.mxu0 0.0
    %896 = vmatpush1.msra.mxu0 0.0
    %897 = vmatprep.subr.mxu0 0.0
    %898 = vmatpush1.msra.mxu0 0.0
    %899 = vmatprep.subr.mxu0 0.0
    %900 = vmatpush1.msra.mxu0 0.0
    %901 = vmatprep.subr.mxu0 0.0
    %902 = vmatpush1.msra.mxu0 0.0
    %903 = vmatprep.subr.mxu0 0.0
    %904 = vmatpush1.msra.mxu0 0.0
    %905 = vmatprep.subr.mxu0 0.0
    %906 = vmatpush1.msra.mxu0 0.0
    %907 = vmatprep.subr.mxu0 %v661
    %908 = vmatpush1.msra.mxu0 %v660
    %909 = vmatprep.subr.mxu0 %v658
    %910 = vmatpush1.msra.mxu0 %v657
    %911 = vmatprep.subr.mxu0 %v655
    %912 = vmatpush1.msra.mxu0 %v654
    %913 = vmatprep.subr.mxu0 %v652
    %914 = vmatpush1.msra.mxu0 %v651
    %915 = vmatprep.subr.mxu0 %v649
    %916 = vmatpush1.msra.mxu0 %v648
    %917 = vmatprep.subr.mxu0 %v646
    %918 = vmatpush1.msra.mxu0 %v645
    %919 = vmatprep.subr.mxu0 %v643
    %920 = vmatpush1.msra.mxu0 %v642
    %921 = vmatprep.subr.mxu0 %v640
    %922 = vmatpush1.msra.mxu0 %v639
    %923 = vmatprep.subr.mxu0 %v637
    %924 = vmatpush1.msra.mxu0 %v636
    %925 = vmatprep.subr.mxu0 0.0
    %926 = vmatpush2.msra.mxu0 0.0
    %927 = vmatprep.subr.mxu0 0.0
    %928 = vmatpush2.msra.mxu0 0.0
    %929 = vmatprep.subr.mxu0 0.0
    %930 = vmatpush2.msra.mxu0 0.0
    %931 = vmatprep.subr.mxu0 0.0
    %932 = vmatpush2.msra.mxu0 0.0
    %933 = vmatprep.subr.mxu0 0.0
    %934 = vmatpush2.msra.mxu0 0.0
    %935 = vmatprep.subr.mxu0 0.0
    %936 = vmatpush2.msra.mxu0 0.0
    %937 = vmatprep.subr.mxu0 0.0
    %938 = vmatpush2.msra.mxu0 0.0
    %939 = vmatprep.subr.mxu0 0.0
    %940 = vmatpush2.msra.mxu0 0.0
    %941 = vmatprep.subr.mxu0 0.0
    %942 = vmatpush2.msra.mxu0 0.0
    %943 = vmatprep.subr.mxu0 0.0
    %944 = vmatpush2.msra.mxu0 0.0
    %945 = vmatprep.subr.mxu0 0.0
    %946 = vmatpush2.msra.mxu0 0.0
    %947 = vmatprep.subr.mxu0 0.0
    %948 = vmatpush2.msra.mxu0 0.0
    %949 = vmatprep.subr.mxu0 0.0
    %950 = vmatpush2.msra.mxu0 0.0
    %951 = vmatprep.subr.mxu0 0.0
    %952 = vmatpush2.msra.mxu0 0.0
    %953 = vmatprep.subr.mxu0 0.0
    %954 = vmatpush2.msra.mxu0 0.0
    %955 = vmatprep.subr.mxu0 0.0
    %956 = vmatpush2.msra.mxu0 0.0
    %957 = vmatprep.mubr.f32.mxu0 0.0
    %958 = vmatmul.mubr.f32.gmra.mxu0 %v882
    %v959 = vpop.f32.mrf.mxu0
    %v960 = vadd.f32 %v774, %v959
    %v961 = vpop.f32.mrf.mxu0
    %v962 = vadd.f32 %v776, %v961
    %963 = vmatprep.mubr.f32.mxu0 0.0
    %964 = vmatmul.mubr.f32.gmra.mxu0 %v885
    %v965 = vpop.f32.mrf.mxu0
    %v966 = vadd.f32 %v780, %v965
    %v967 = vpop.f32.mrf.mxu0
    %v968 = vadd.f32 %v782, %v967
    %969 = vmatprep.mubr.f32.mxu0 0.0
    %970 = vmatmul.mubr.f32.gmra.mxu0 %v888
    %v971 = vpop.f32.mrf.mxu0
    %v972 = vadd.f32 %v786, %v971
    %v973 = vpop.f32.mrf.mxu0
    %v974 = vadd.f32 %v788, %v973
    %975 = vmatprep.mubr.f32.mxu0 0.0
    %976 = vmatmul.mubr.f32.gmra.mxu0 %v891
    %v977 = vpop.f32.mrf.mxu0
    %v978 = vadd.f32 %v792, %v977
    %v979 = vpop.f32.mrf.mxu0
    %v980 = vadd.f32 %v794, %v979
    %981 = vdwg.mxu0
    %982 = vmatprep.subr.mxu0 0.0
    %983 = vmatpush1.msra.mxu0 0.0
    %984 = vmatprep.subr.mxu0 0.0
    %985 = vmatpush1.msra.mxu0 0.0
    %986 = vmatprep.subr.mxu0 0.0
    %987 = vmatpush1.msra.mxu0 0.0
    %988 = vmatprep.subr.mxu0 0.0
    %989 = vmatpush1.msra.mxu0 0.0
    %990 = vmatprep.subr.mxu0 0.0
    %991 = vmatpush1.msra.mxu0 0.0
    %992 = vmatprep.subr.mxu0 0.0
    %993 = vmatpush1.msra.mxu0 0.0
    %994 = vmatprep.subr.mxu0 0.0
    %995 = vmatpush1.msra.mxu0 0.0
    %996 = vmatprep.subr.mxu0 0.0
    %997 = vmatpush1.msra.mxu0 %v662
    %998 = vmatprep.subr.mxu0 0.0
    %999 = vmatpush1.msra.mxu0 %v659
    %1000 = vmatprep.subr.mxu0 0.0
    %1001 = vmatpush1.msra.mxu0 %v656
    %1002 = vmatprep.subr.mxu0 0.0
    %1003 = vmatpush1.msra.mxu0 %v653
    %1004 = vmatprep.subr.mxu0 0.0
    %1005 = vmatpush1.msra.mxu0 %v650
    %1006 = vmatprep.subr.mxu0 0.0
    %1007 = vmatpush1.msra.mxu0 %v647
    %1008 = vmatprep.subr.mxu0 0.0
    %1009 = vmatpush1.msra.mxu0 %v644
    %1010 = vmatprep.subr.mxu0 0.0
    %1011 = vmatpush1.msra.mxu0 %v641
    %1012 = vmatprep.subr.mxu0 0.0
    %1013 = vmatpush1.msra.mxu0 %v638
    %1014 = vmatprep.subr.mxu0 0.0
    %1015 = vmatpush2.msra.mxu0 0.0
    %1016 = vmatprep.subr.mxu0 0.0
    %1017 = vmatpush2.msra.mxu0 0.0
    %1018 = vmatprep.subr.mxu0 0.0
    %1019 = vmatpush2.msra.mxu0 0.0
    %1020 = vmatprep.subr.mxu0 0.0
    %1021 = vmatpush2.msra.mxu0 0.0
    %1022 = vmatprep.subr.mxu0 0.0
    %1023 = vmatpush2.msra.mxu0 0.0
    %1024 = vmatprep.subr.mxu0 0.0
    %1025 = vmatpush2.msra.mxu0 0.0
    %1026 = vmatprep.subr.mxu0 0.0
    %1027 = vmatpush2.msra.mxu0 0.0
    %1028 = vmatprep.subr.mxu0 0.0
    %1029 = vmatpush2.msra.mxu0 0.0
    %1030 = vmatprep.subr.mxu0 0.0
    %1031 = vmatpush2.msra.mxu0 0.0
    %1032 = vmatprep.subr.mxu0 0.0
    %1033 = vmatpush2.msra.mxu0 0.0
    %1034 = vmatprep.subr.mxu0 0.0
    %1035 = vmatpush2.msra.mxu0 0.0
    %1036 = vmatprep.subr.mxu0 0.0
    %1037 = vmatpush2.msra.mxu0 0.0
    %1038 = vmatprep.subr.mxu0 0.0
    %1039 = vmatpush2.msra.mxu0 0.0
    %1040 = vmatprep.subr.mxu0 0.0
    %1041 = vmatpush2.msra.mxu0 0.0
    %1042 = vmatprep.subr.mxu0 0.0
    %1043 = vmatpush2.msra.mxu0 0.0
    %1044 = vmatprep.subr.mxu0 0.0
    %1045 = vmatpush2.msra.mxu0 0.0
    %1046 = vmatprep.mubr.f32.mxu0 0.0
    %1047 = vmatmul.mubr.f32.gmra.mxu0 %v882
    %v1048 = vpop.f32.mrf.mxu0
    %v1049 = vadd.f32 %v863, %v1048
    %v1050 = vpop.f32.mrf.mxu0
    %1051 = vmatprep.mubr.f32.mxu0 0.0
    %1052 = vmatmul.mubr.f32.gmra.mxu0 %v885
    %v1053 = vpop.f32.mrf.mxu0
    %v1054 = vadd.f32 %v868, %v1053
    %v1055 = vpop.f32.mrf.mxu0
    %1056 = vmatprep.mubr.f32.mxu0 0.0
    %1057 = vmatmul.mubr.f32.gmra.mxu0 %v888
    %v1058 = vpop.f32.mrf.mxu0
    %v1059 = vadd.f32 %v873, %v1058
    %v1060 = vpop.f32.mrf.mxu0
    %1061 = vmatprep.mubr.f32.mxu0 0.0
    %1062 = vmatmul.mubr.f32.gmra.mxu0 %v891
    %v1063 = vpop.f32.mrf.mxu0
    %v1064 = vadd.f32 %v878, %v1063
    %v1065 = vpop.f32.mrf.mxu0
    %1066 = vdwg.mxu0
    %v1067 = vld [vmem:[#allocation2 + $0x2] sm:$0xff]
    %v1068 = vld [vmem:[#allocation2 + $0xa] sm:$0xff]
    %v1069 = vld [vmem:[#allocation2 + $0x1a] sm:$0xff]
    %v1070 = vld [vmem:[#allocation2 + $0x22] sm:$0xff]
    %s1071 = scalar_lea.vmem [#allocation14], 432
    %v1072 = vld [vmem:[%s1071] sm:$0xff]
    %v1073 = vld [vmem:[%s1071 + $0x8] sm:$0xff]
    %v1074 = vld [vmem:[%s1071 + $0x10] sm:$0xff]
    %v1075 = vld [vmem:[%s1071 + $0x18] sm:$0xff]
    %v1076 = vld [vmem:[%s1071 + $0x20] sm:$0xff]
    %v1077 = vld [vmem:[%s1071 + $0x28] sm:$0xff]
    %v1078 = vld [vmem:[%s1071 + $0x30] sm:$0xff]
    %v1079 = vld [vmem:[%s1071 + $0x38] sm:$0xff]
    %v1080 = vld [vmem:[%s1071 + $0x40] sm:$0xff]
    %v1081 = vld [vmem:[%s1071 + $0x48] sm:$0xff]
    %v1082 = vld [vmem:[%s1071 + $0x50] sm:$0xff]
    %v1083 = vld [vmem:[%s1071 + $0x58] sm:$0xff]
    %v1084 = vld [vmem:[%s1071 + $0x60] sm:$0xff]
    %v1085 = vld [vmem:[%s1071 + $0x68] sm:$0xff]
    %v1086 = vld [vmem:[%s1071 + $0x70] sm:$0xff]
    %v1087 = vld [vmem:[%s1071 + $0x78] sm:$0xff]
    %v1088 = vld [vmem:[%s1071 + $0x80] sm:$0xff]
    %v1089 = vld [vmem:[%s1071 + $0x88] sm:$0xff]
    %v1090 = vld [vmem:[%s1071 + $0x90] sm:$0xff]
    %v1091 = vld [vmem:[%s1071 + $0x98] sm:$0xff]
    %v1092 = vld [vmem:[%s1071 + $0xa0] sm:$0xff]
    %v1093 = vld [vmem:[%s1071 + $0xa8] sm:$0xff]
    %v1094 = vld [vmem:[%s1071 + $0xb0] sm:$0xff]
    %v1095 = vld [vmem:[%s1071 + $0xb8] sm:$0xff]
    %v1096 = vld [vmem:[%s1071 + $0xc0] sm:$0xff]
    %v1097 = vld [vmem:[%s1071 + $0xc8] sm:$0xff]
    %v1098 = vld [vmem:[%s1071 + $0xd0] sm:$0xff]
    %v1100 = vsel %vm262, %v1067, 0
    %v1103 = vsel %vm262, %v1068, 0
    %v1106 = vsel %vm262, %v1069, 0
    %v1109 = vsel %vm262, %v1070, 0
    %1111 = vmatprep.subr.mxu0 0.0
    %1112 = vmatpush1.msra.mxu0 0.0
    %1113 = vmatprep.subr.mxu0 0.0
    %1114 = vmatpush1.msra.mxu0 0.0
    %1115 = vmatprep.subr.mxu0 0.0
    %1116 = vmatpush1.msra.mxu0 0.0
    %1117 = vmatprep.subr.mxu0 0.0
    %1118 = vmatpush1.msra.mxu0 0.0
    %1119 = vmatprep.subr.mxu0 0.0
    %1120 = vmatpush1.msra.mxu0 0.0
    %1121 = vmatprep.subr.mxu0 0.0
    %1122 = vmatpush1.msra.mxu0 0.0
    %1123 = vmatprep.subr.mxu0 0.0
    %1124 = vmatpush1.msra.mxu0 0.0
    %1125 = vmatprep.subr.mxu0 %v1097
    %1126 = vmatpush1.msra.mxu0 %v1096
    %1127 = vmatprep.subr.mxu0 %v1094
    %1128 = vmatpush1.msra.mxu0 %v1093
    %1129 = vmatprep.subr.mxu0 %v1091
    %1130 = vmatpush1.msra.mxu0 %v1090
    %1131 = vmatprep.subr.mxu0 %v1088
    %1132 = vmatpush1.msra.mxu0 %v1087
    %1133 = vmatprep.subr.mxu0 %v1085
    %1134 = vmatpush1.msra.mxu0 %v1084
    %1135 = vmatprep.subr.mxu0 %v1082
    %1136 = vmatpush1.msra.mxu0 %v1081
    %1137 = vmatprep.subr.mxu0 %v1079
    %1138 = vmatpush1.msra.mxu0 %v1078
    %1139 = vmatprep.subr.mxu0 %v1076
    %1140 = vmatpush1.msra.mxu0 %v1075
    %1141 = vmatprep.subr.mxu0 %v1073
    %1142 = vmatpush1.msra.mxu0 %v1072
    %1143 = vmatprep.subr.mxu0 0.0
    %1144 = vmatpush2.msra.mxu0 0.0
    %1145 = vmatprep.subr.mxu0 0.0
    %1146 = vmatpush2.msra.mxu0 0.0
    %1147 = vmatprep.subr.mxu0 0.0
    %1148 = vmatpush2.msra.mxu0 0.0
    %1149 = vmatprep.subr.mxu0 0.0
    %1150 = vmatpush2.msra.mxu0 0.0
    %1151 = vmatprep.subr.mxu0 0.0
    %1152 = vmatpush2.msra.mxu0 0.0
    %1153 = vmatprep.subr.mxu0 0.0
    %1154 = vmatpush2.msra.mxu0 0.0
    %1155 = vmatprep.subr.mxu0 0.0
    %1156 = vmatpush2.msra.mxu0 0.0
    %1157 = vmatprep.subr.mxu0 0.0
    %1158 = vmatpush2.msra.mxu0 0.0
    %1159 = vmatprep.subr.mxu0 0.0
    %1160 = vmatpush2.msra.mxu0 0.0
    %1161 = vmatprep.subr.mxu0 0.0
    %1162 = vmatpush2.msra.mxu0 0.0
    %1163 = vmatprep.subr.mxu0 0.0
    %1164 = vmatpush2.msra.mxu0 0.0
    %1165 = vmatprep.subr.mxu0 0.0
    %1166 = vmatpush2.msra.mxu0 0.0
    %1167 = vmatprep.subr.mxu0 0.0
    %1168 = vmatpush2.msra.mxu0 0.0
    %1169 = vmatprep.subr.mxu0 0.0
    %1170 = vmatpush2.msra.mxu0 0.0
    %1171 = vmatprep.subr.mxu0 0.0
    %1172 = vmatpush2.msra.mxu0 0.0
    %1173 = vmatprep.subr.mxu0 0.0
    %1174 = vmatpush2.msra.mxu0 0.0
    %1175 = vmatprep.mubr.f32.mxu0 0.0
    %1176 = vmatmul.mubr.f32.gmra.mxu0 %v1100
    %v1177 = vpop.f32.mrf.mxu0
    %v1178 = vadd.f32 0.0, %v1177
    %v1179 = vpop.f32.mrf.mxu0
    %v1180 = vadd.f32 0.0, %v1179
    %1181 = vmatprep.mubr.f32.mxu0 0.0
    %1182 = vmatmul.mubr.f32.gmra.mxu0 %v1103
    %v1183 = vpop.f32.mrf.mxu0
    %v1184 = vadd.f32 0.0, %v1183
    %v1185 = vpop.f32.mrf.mxu0
    %v1186 = vadd.f32 0.0, %v1185
    %1187 = vmatprep.mubr.f32.mxu0 0.0
    %1188 = vmatmul.mubr.f32.gmra.mxu0 %v1106
    %v1189 = vpop.f32.mrf.mxu0
    %v1190 = vadd.f32 0.0, %v1189
    %v1191 = vpop.f32.mrf.mxu0
    %v1192 = vadd.f32 0.0, %v1191
    %1193 = vmatprep.mubr.f32.mxu0 0.0
    %1194 = vmatmul.mubr.f32.gmra.mxu0 %v1109
    %v1195 = vpop.f32.mrf.mxu0
    %v1196 = vadd.f32 0.0, %v1195
    %v1197 = vpop.f32.mrf.mxu0
    %v1198 = vadd.f32 0.0, %v1197
    %1199 = vdwg.mxu0
    %1200 = vmatprep.subr.mxu0 0.0
    %1201 = vmatpush1.msra.mxu0 0.0
    %1202 = vmatprep.subr.mxu0 0.0
    %1203 = vmatpush1.msra.mxu0 0.0
    %1204 = vmatprep.subr.mxu0 0.0
    %1205 = vmatpush1.msra.mxu0 0.0
    %1206 = vmatprep.subr.mxu0 0.0
    %1207 = vmatpush1.msra.mxu0 0.0
    %1208 = vmatprep.subr.mxu0 0.0
    %1209 = vmatpush1.msra.mxu0 0.0
    %1210 = vmatprep.subr.mxu0 0.0
    %1211 = vmatpush1.msra.mxu0 0.0
    %1212 = vmatprep.subr.mxu0 0.0
    %1213 = vmatpush1.msra.mxu0 0.0
    %1214 = vmatprep.subr.mxu0 0.0
    %1215 = vmatpush1.msra.mxu0 %v1098
    %1216 = vmatprep.subr.mxu0 0.0
    %1217 = vmatpush1.msra.mxu0 %v1095
    %1218 = vmatprep.subr.mxu0 0.0
    %1219 = vmatpush1.msra.mxu0 %v1092
    %1220 = vmatprep.subr.mxu0 0.0
    %1221 = vmatpush1.msra.mxu0 %v1089
    %1222 = vmatprep.subr.mxu0 0.0
    %1223 = vmatpush1.msra.mxu0 %v1086
    %1224 = vmatprep.subr.mxu0 0.0
    %1225 = vmatpush1.msra.mxu0 %v1083
    %1226 = vmatprep.subr.mxu0 0.0
    %1227 = vmatpush1.msra.mxu0 %v1080
    %1228 = vmatprep.subr.mxu0 0.0
    %1229 = vmatpush1.msra.mxu0 %v1077
    %1230 = vmatprep.subr.mxu0 0.0
    %1231 = vmatpush1.msra.mxu0 %v1074
    %1232 = vmatprep.subr.mxu0 0.0
    %1233 = vmatpush2.msra.mxu0 0.0
    %1234 = vmatprep.subr.mxu0 0.0
    %1235 = vmatpush2.msra.mxu0 0.0
    %1236 = vmatprep.subr.mxu0 0.0
    %1237 = vmatpush2.msra.mxu0 0.0
    %1238 = vmatprep.subr.mxu0 0.0
    %1239 = vmatpush2.msra.mxu0 0.0
    %1240 = vmatprep.subr.mxu0 0.0
    %1241 = vmatpush2.msra.mxu0 0.0
    %1242 = vmatprep.subr.mxu0 0.0
    %1243 = vmatpush2.msra.mxu0 0.0
    %1244 = vmatprep.subr.mxu0 0.0
    %1245 = vmatpush2.msra.mxu0 0.0
    %1246 = vmatprep.subr.mxu0 0.0
    %1247 = vmatpush2.msra.mxu0 0.0
    %1248 = vmatprep.subr.mxu0 0.0
    %1249 = vmatpush2.msra.mxu0 0.0
    %1250 = vmatprep.subr.mxu0 0.0
    %1251 = vmatpush2.msra.mxu0 0.0
    %1252 = vmatprep.subr.mxu0 0.0
    %1253 = vmatpush2.msra.mxu0 0.0
    %1254 = vmatprep.subr.mxu0 0.0
    %1255 = vmatpush2.msra.mxu0 0.0
    %1256 = vmatprep.subr.mxu0 0.0
    %1257 = vmatpush2.msra.mxu0 0.0
    %1258 = vmatprep.subr.mxu0 0.0
    %1259 = vmatpush2.msra.mxu0 0.0
    %1260 = vmatprep.subr.mxu0 0.0
    %1261 = vmatpush2.msra.mxu0 0.0
    %1262 = vmatprep.subr.mxu0 0.0
    %1263 = vmatpush2.msra.mxu0 0.0
    %1264 = vmatprep.mubr.f32.mxu0 0.0
    %1265 = vmatmul.mubr.f32.gmra.mxu0 %v1100
    %v1266 = vpop.f32.mrf.mxu0
    %v1267 = vadd.f32 0.0, %v1266
    %v1268 = vpop.f32.mrf.mxu0
    %1269 = vmatprep.mubr.f32.mxu0 0.0
    %1270 = vmatmul.mubr.f32.gmra.mxu0 %v1103
    %v1271 = vpop.f32.mrf.mxu0
    %v1272 = vadd.f32 0.0, %v1271
    %v1273 = vpop.f32.mrf.mxu0
    %1274 = vmatprep.mubr.f32.mxu0 0.0
    %1275 = vmatmul.mubr.f32.gmra.mxu0 %v1106
    %v1276 = vpop.f32.mrf.mxu0
    %v1277 = vadd.f32 0.0, %v1276
    %v1278 = vpop.f32.mrf.mxu0
    %1279 = vmatprep.mubr.f32.mxu0 0.0
    %1280 = vmatmul.mubr.f32.gmra.mxu0 %v1109
    %v1281 = vpop.f32.mrf.mxu0
    %v1282 = vadd.f32 0.0, %v1281
    %v1283 = vpop.f32.mrf.mxu0
    %1284 = vdwg.mxu0
    %v1285 = vadd.f32 %v960, %v1178
    %v1286 = vadd.f32 %v962, %v1180
    %v1287 = vadd.f32 %v1049, %v1267
    %v1288 = vadd.f32 %v966, %v1184
    %v1289 = vadd.f32 %v968, %v1186
    %v1290 = vadd.f32 %v1054, %v1272
    %v1291 = vadd.f32 %v972, %v1190
    %v1292 = vadd.f32 %v974, %v1192
    %v1293 = vadd.f32 %v1059, %v1277
    %v1294 = vadd.f32 %v978, %v1196
    %v1295 = vadd.f32 %v980, %v1198
    %v1296 = vadd.f32 %v1064, %v1282
    %v1297 = vld [vmem:[#allocation16] sm:$0x7]
    %v1299 = vlaneseq
    %v1300 = vshrl.u32 %v1299, 7
    %v1301 = vsub.s32 0, %v1300
    %v1302 = vrot.slane %v1297, %v1301
    %v1303 = vlaneseq
    %v1304 = vshrl.u32 %v1303, 7
    %v1305 = vsub.s32 1, %v1304
    %v1306 = vrot.slane %v1297, %v1305
    %v1307 = vlaneseq
    %v1308 = vshrl.u32 %v1307, 7
    %v1309 = vsub.s32 2, %v1308
    %v1310 = vrot.slane %v1297, %v1309
    %v1314 = vadd.f32 %v1285, %v1302
    %v1315 = vadd.f32 %v1286, %v1306
    %v1316 = vadd.f32 %v1287, %v1310
    %v1317 = vadd.f32 %v1288, %v1302
    %v1318 = vadd.f32 %v1289, %v1306
    %v1319 = vadd.f32 %v1290, %v1310
    %v1320 = vadd.f32 %v1291, %v1302
    %v1321 = vadd.f32 %v1292, %v1306
    %v1322 = vadd.f32 %v1293, %v1310
    %v1323 = vadd.f32 %v1294, %v1302
    %v1324 = vadd.f32 %v1295, %v1306
    %v1325 = vadd.f32 %v1296, %v1310
    %v1326 = vmax.f32 %v1314, 0.0
    %v1327 = vmax.f32 %v1315, 0.0
    %v1328 = vmax.f32 %v1316, 0.0
    %v1329 = vmax.f32 %v1317, 0.0
    %v1330 = vmax.f32 %v1318, 0.0
    %v1331 = vmax.f32 %v1319, 0.0
    %v1332 = vmax.f32 %v1320, 0.0
    %v1333 = vmax.f32 %v1321, 0.0
    %v1334 = vmax.f32 %v1322, 0.0
    %v1335 = vmax.f32 %v1323, 0.0
    %v1336 = vmax.f32 %v1324, 0.0
    %v1337 = vmax.f32 %v1325, 0.0
    %v1338 = vadd.f32 %v1326, %v1329
    %v1339 = vadd.f32 %v1338, %v1332
    %v1340 = vadd.f32 %v1339, %v1335
    %v1341 = vrot.slane %v1340, 4
    %v1342 = vadd.f32 %v1340, %v1341
    %v1343 = vrot.slane %v1342, 2
    %v1344 = vadd.f32 %v1342, %v1343
    %v1345 = vrot.slane %v1344, 1
    %v1346 = vadd.f32 %v1344, %v1345
    %v1347 = vadd.f32 %v1327, %v1330
    %v1348 = vadd.f32 %v1347, %v1333
    %v1349 = vadd.f32 %v1348, %v1336
    %v1350 = vrot.slane %v1349, 4
    %v1351 = vadd.f32 %v1349, %v1350
    %v1352 = vrot.slane %v1351, 2
    %v1353 = vadd.f32 %v1351, %v1352
    %v1354 = vrot.slane %v1353, 1
    %v1355 = vadd.f32 %v1353, %v1354
    %vm1356 = vcmask 261120
    %v1357 = vsel %vm1356, %v1328, 0.0
    %v1358 = vsel %vm1356, %v1331, 0.0
    %v1359 = vadd.f32 %v1357, %v1358
    %v1360 = vsel %vm1356, %v1334, 0.0
    %v1361 = vadd.f32 %v1359, %v1360
    %v1362 = vsel %vm1356, %v1337, 0.0
    %v1363 = vadd.f32 %v1361, %v1362
    %v1364 = vrot.slane %v1363, 4
    %v1365 = vadd.f32 %v1363, %v1364
    %v1366 = vrot.slane %v1365, 2
    %v1367 = vadd.f32 %v1365, %v1366
    %v1368 = vrot.slane %v1367, 1
    %v1369 = vadd.f32 %v1367, %v1368
    %v1370 = vmul.f32 %v1326, %v1326
    %v1371 = vmul.f32 %v1327, %v1327
    %v1372 = vmul.f32 %v1328, %v1328
    %v1373 = vmul.f32 %v1329, %v1329
    %v1374 = vmul.f32 %v1330, %v1330
    %v1375 = vmul.f32 %v1331, %v1331
    %v1376 = vmul.f32 %v1332, %v1332
    %v1377 = vmul.f32 %v1333, %v1333
    %v1378 = vmul.f32 %v1334, %v1334
    %v1379 = vmul.f32 %v1335, %v1335
    %v1380 = vmul.f32 %v1336, %v1336
    %v1381 = vmul.f32 %v1337, %v1337
    %v1382 = vadd.f32 %v1370, %v1373
    %v1383 = vadd.f32 %v1382, %v1376
    %v1384 = vadd.f32 %v1383, %v1379
    %v1385 = vrot.slane %v1384, 4
    %v1386 = vadd.f32 %v1384, %v1385
    %v1387 = vrot.slane %v1386, 2
    %v1388 = vadd.f32 %v1386, %v1387
    %v1389 = vrot.slane %v1388, 1
    %v1390 = vadd.f32 %v1388, %v1389
    %v1391 = vadd.f32 %v1371, %v1374
    %v1392 = vadd.f32 %v1391, %v1377
    %v1393 = vadd.f32 %v1392, %v1380
    %v1394 = vrot.slane %v1393, 4
    %v1395 = vadd.f32 %v1393, %v1394
    %v1396 = vrot.slane %v1395, 2
    %v1397 = vadd.f32 %v1395, %v1396
    %v1398 = vrot.slane %v1397, 1
    %v1399 = vadd.f32 %v1397, %v1398
    %v1400 = vsel %vm1356, %v1372, 0.0
    %v1401 = vsel %vm1356, %v1375, 0.0
    %v1402 = vadd.f32 %v1400, %v1401
    %v1403 = vsel %vm1356, %v1378, 0.0
    %v1404 = vadd.f32 %v1402, %v1403
    %v1405 = vsel %vm1356, %v1381, 0.0
    %v1406 = vadd.f32 %v1404, %v1405
    %v1407 = vrot.slane %v1406, 4
    %v1408 = vadd.f32 %v1406, %v1407
    %v1409 = vrot.slane %v1408, 2
    %v1410 = vadd.f32 %v1408, %v1409
    %v1411 = vrot.slane %v1410, 1
    %v1412 = vadd.f32 %v1410, %v1411
    %v1413 = vld [vmem:[%s5] sm:$0xff]
    %v1414 = vld [vmem:[%s5 + $0x8] sm:$0xff]
    %v1415 = vld [vmem:[%s5 + $0x10] sm:$0xff]
    %v1416 = vld [vmem:[%s5 + $0x18] sm:$0xff]
    %v1417 = vld [vmem:[%s5 + $0x20] sm:$0xff]
    %v1418 = vld [vmem:[%s5 + $0x28] sm:$0xff]
    %v1419 = vld [vmem:[%s5 + $0x30] sm:$0xff]
    %v1420 = vld [vmem:[%s5 + $0x38] sm:$0xff]
    %v1421 = vld [vmem:[%s5 + $0x40] sm:$0xff]
    %v1422 = vld [vmem:[%s5 + $0x48] sm:$0xff]
    %v1423 = vld [vmem:[%s5 + $0x50] sm:$0xff]
    %v1424 = vld [vmem:[%s5 + $0x58] sm:$0xff]
    %v1425 = vld [vmem:[%s5 + $0x60] sm:$0xff]
    %v1426 = vld [vmem:[%s5 + $0x68] sm:$0xff]
    %v1427 = vld [vmem:[%s5 + $0x70] sm:$0xff]
    %v1428 = vld [vmem:[%s5 + $0x78] sm:$0xff]
    %v1429 = vld [vmem:[%s5 + $0x80] sm:$0xff]
    %v1430 = vld [vmem:[%s5 + $0x88] sm:$0xff]
    %v1431 = vld [vmem:[%s5 + $0x90] sm:$0xff]
    %v1432 = vld [vmem:[%s5 + $0x98] sm:$0xff]
    %v1433 = vld [vmem:[%s5 + $0xa0] sm:$0xff]
    %v1434 = vld [vmem:[%s5 + $0xa8] sm:$0xff]
    %v1435 = vld [vmem:[%s5 + $0xb0] sm:$0xff]
    %v1436 = vld [vmem:[%s5 + $0xb8] sm:$0xff]
    %v1437 = vld [vmem:[%s5 + $0xc0] sm:$0xff]
    %v1438 = vld [vmem:[%s5 + $0xc8] sm:$0xff]
    %v1439 = vld [vmem:[%s5 + $0xd0] sm:$0xff]
    %v1440 = vld [vmem:[%s5 + $0xd8] sm:$0xff]
    %v1441 = vld [vmem:[%s5 + $0xe0] sm:$0xff]
    %v1442 = vld [vmem:[%s5 + $0xe8] sm:$0xff]
    %v1443 = vld [vmem:[%s5 + $0xf0] sm:$0xff]
    %v1444 = vld [vmem:[%s5 + $0xf8] sm:$0xff]
    %v1445 = vld [vmem:[%s5 + $0x100] sm:$0xff]
    %v1446 = vld [vmem:[%s5 + $0x108] sm:$0xff]
    %v1447 = vld [vmem:[%s5 + $0x110] sm:$0xff]
    %v1448 = vld [vmem:[%s5 + $0x118] sm:$0xff]
    %v1450 = vsel %vm1356, %v1369, 0
    %1452 = vmatprep.subr.mxu0 0.0
    %1453 = vmatpush1.msra.mxu0 %v1428
    %1454 = vmatprep.subr.mxu0 0.0
    %1455 = vmatpush1.msra.mxu0 %v1427
    %1456 = vmatprep.subr.mxu0 0.0
    %1457 = vmatpush1.msra.mxu0 %v1426
    %1458 = vmatprep.subr.mxu0 0.0
    %1459 = vmatpush1.msra.mxu0 %v1425
    %1460 = vmatprep.subr.mxu0 0.0
    %1461 = vmatpush1.msra.mxu0 %v1424
    %1462 = vmatprep.subr.mxu0 0.0
    %1463 = vmatpush1.msra.mxu0 %v1423
    %1464 = vmatprep.subr.mxu0 0.0
    %1465 = vmatpush1.msra.mxu0 %v1422
    %1466 = vmatprep.subr.mxu0 0.0
    %1467 = vmatpush1.msra.mxu0 %v1421
    %1468 = vmatprep.subr.mxu0 0.0
    %1469 = vmatpush1.msra.mxu0 %v1420
    %1470 = vmatprep.subr.mxu0 0.0
    %1471 = vmatpush1.msra.mxu0 %v1419
    %1472 = vmatprep.subr.mxu0 0.0
    %1473 = vmatpush1.msra.mxu0 %v1418
    %1474 = vmatprep.subr.mxu0 0.0
    %1475 = vmatpush1.msra.mxu0 %v1417
    %1476 = vmatprep.subr.mxu0 0.0
    %1477 = vmatpush1.msra.mxu0 %v1416
    %1478 = vmatprep.subr.mxu0 0.0
    %1479 = vmatpush1.msra.mxu0 %v1415
    %1480 = vmatprep.subr.mxu0 0.0
    %1481 = vmatpush1.msra.mxu0 %v1414
    %1482 = vmatprep.subr.mxu0 0.0
    %1483 = vmatpush1.msra.mxu0 %v1413
    %1484 = vmatprep.subr.mxu0 0.0
    %1485 = vmatpush2.msra.mxu0 %v1444
    %1486 = vmatprep.subr.mxu0 0.0
    %1487 = vmatpush2.msra.mxu0 %v1443
    %1488 = vmatprep.subr.mxu0 0.0
    %1489 = vmatpush2.msra.mxu0 %v1442
    %1490 = vmatprep.subr.mxu0 0.0
    %1491 = vmatpush2.msra.mxu0 %v1441
    %1492 = vmatprep.subr.mxu0 0.0
    %1493 = vmatpush2.msra.mxu0 %v1440
    %1494 = vmatprep.subr.mxu0 0.0
    %1495 = vmatpush2.msra.mxu0 %v1439
    %1496 = vmatprep.subr.mxu0 0.0
    %1497 = vmatpush2.msra.mxu0 %v1438
    %1498 = vmatprep.subr.mxu0 0.0
    %1499 = vmatpush2.msra.mxu0 %v1437
    %1500 = vmatprep.subr.mxu0 0.0
    %1501 = vmatpush2.msra.mxu0 %v1436
    %1502 = vmatprep.subr.mxu0 0.0
    %1503 = vmatpush2.msra.mxu0 %v1435
    %1504 = vmatprep.subr.mxu0 0.0
    %1505 = vmatpush2.msra.mxu0 %v1434
    %1506 = vmatprep.subr.mxu0 0.0
    %1507 = vmatpush2.msra.mxu0 %v1433
    %1508 = vmatprep.subr.mxu0 0.0
    %1509 = vmatpush2.msra.mxu0 %v1432
    %1510 = vmatprep.subr.mxu0 0.0
    %1511 = vmatpush2.msra.mxu0 %v1431
    %1512 = vmatprep.subr.mxu0 0.0
    %1513 = vmatpush2.msra.mxu0 %v1430
    %1514 = vmatprep.subr.mxu0 0.0
    %1515 = vmatpush2.msra.mxu0 %v1429
    %1516 = vmatprep.mubr.f32.mxu0 %v1355
    %1517 = vmatmul.mubr.f32.gmra.mxu0 %v1346
    %v1518 = vpop.f32.mrf.mxu0
    %v1519 = vadd.f32 0.0, %v1518
    %v1520 = vpop.f32.mrf.mxu0
    %1521 = vdwg.mxu0
    %1522 = vmatprep.subr.mxu0 0.0
    %1523 = vmatpush1.msra.mxu0 0.0
    %1524 = vmatprep.subr.mxu0 0.0
    %1525 = vmatpush1.msra.mxu0 0.0
    %1526 = vmatprep.subr.mxu0 0.0
    %1527 = vmatpush1.msra.mxu0 0.0
    %1528 = vmatprep.subr.mxu0 0.0
    %1529 = vmatpush1.msra.mxu0 0.0
    %1530 = vmatprep.subr.mxu0 0.0
    %1531 = vmatpush1.msra.mxu0 0.0
    %1532 = vmatprep.subr.mxu0 0.0
    %1533 = vmatpush1.msra.mxu0 0.0
    %1534 = vmatprep.subr.mxu0 0.0
    %1535 = vmatpush1.msra.mxu0 0.0
    %1536 = vmatprep.subr.mxu0 0.0
    %1537 = vmatpush1.msra.mxu0 0.0
    %1538 = vmatprep.subr.mxu0 0.0
    %1539 = vmatpush1.msra.mxu0 0.0
    %1540 = vmatprep.subr.mxu0 0.0
    %1541 = vmatpush1.msra.mxu0 0.0
    %1542 = vmatprep.subr.mxu0 0.0
    %1543 = vmatpush1.msra.mxu0 0.0
    %1544 = vmatprep.subr.mxu0 0.0
    %1545 = vmatpush1.msra.mxu0 0.0
    %1546 = vmatprep.subr.mxu0 0.0
    %1547 = vmatpush1.msra.mxu0 %v1448
    %1548 = vmatprep.subr.mxu0 0.0
    %1549 = vmatpush1.msra.mxu0 %v1447
    %1550 = vmatprep.subr.mxu0 0.0
    %1551 = vmatpush1.msra.mxu0 %v1446
    %1552 = vmatprep.subr.mxu0 0.0
    %1553 = vmatpush1.msra.mxu0 %v1445
    %1554 = vmatprep.subr.mxu0 0.0
    %1555 = vmatpush2.msra.mxu0 0.0
    %1556 = vmatprep.subr.mxu0 0.0
    %1557 = vmatpush2.msra.mxu0 0.0
    %1558 = vmatprep.subr.mxu0 0.0
    %1559 = vmatpush2.msra.mxu0 0.0
    %1560 = vmatprep.subr.mxu0 0.0
    %1561 = vmatpush2.msra.mxu0 0.0
    %1562 = vmatprep.subr.mxu0 0.0
    %1563 = vmatpush2.msra.mxu0 0.0
    %1564 = vmatprep.subr.mxu0 0.0
    %1565 = vmatpush2.msra.mxu0 0.0
    %1566 = vmatprep.subr.mxu0 0.0
    %1567 = vmatpush2.msra.mxu0 0.0
    %1568 = vmatprep.subr.mxu0 0.0
    %1569 = vmatpush2.msra.mxu0 0.0
    %1570 = vmatprep.subr.mxu0 0.0
    %1571 = vmatpush2.msra.mxu0 0.0
    %1572 = vmatprep.subr.mxu0 0.0
    %1573 = vmatpush2.msra.mxu0 0.0
    %1574 = vmatprep.subr.mxu0 0.0
    %1575 = vmatpush2.msra.mxu0 0.0
    %1576 = vmatprep.subr.mxu0 0.0
    %1577 = vmatpush2.msra.mxu0 0.0
    %1578 = vmatprep.subr.mxu0 0.0
    %1579 = vmatpush2.msra.mxu0 0.0
    %1580 = vmatprep.subr.mxu0 0.0
    %1581 = vmatpush2.msra.mxu0 0.0
    %1582 = vmatprep.subr.mxu0 0.0
    %1583 = vmatpush2.msra.mxu0 0.0
    %1584 = vmatprep.subr.mxu0 0.0
    %1585 = vmatpush2.msra.mxu0 0.0
    %1586 = vmatprep.mubr.f32.mxu0 0.0
    %1587 = vmatmul.mubr.f32.gmra.mxu0 %v1450
    %v1588 = vpop.f32.mrf.mxu0
    %v1589 = vadd.f32 %v1519, %v1588
    %v1590 = vpop.f32.mrf.mxu0
    %1591 = vdwg.mxu0
    %v1592 = vmul.f32 %v1589, 0.001953125
    %v1594 = vsel %vm1356, %v1412, 0
    %1596 = vmatprep.subr.mxu0 0.0
    %1597 = vmatpush1.msra.mxu0 %v1428
    %1598 = vmatprep.subr.mxu0 0.0
    %1599 = vmatpush1.msra.mxu0 %v1427
    %1600 = vmatprep.subr.mxu0 0.0
    %1601 = vmatpush1.msra.mxu0 %v1426
    %1602 = vmatprep.subr.mxu0 0.0
    %1603 = vmatpush1.msra.mxu0 %v1425
    %1604 = vmatprep.subr.mxu0 0.0
    %1605 = vmatpush1.msra.mxu0 %v1424
    %1606 = vmatprep.subr.mxu0 0.0
    %1607 = vmatpush1.msra.mxu0 %v1423
    %1608 = vmatprep.subr.mxu0 0.0
    %1609 = vmatpush1.msra.mxu0 %v1422
    %1610 = vmatprep.subr.mxu0 0.0
    %1611 = vmatpush1.msra.mxu0 %v1421
    %1612 = vmatprep.subr.mxu0 0.0
    %1613 = vmatpush1.msra.mxu0 %v1420
    %1614 = vmatprep.subr.mxu0 0.0
    %1615 = vmatpush1.msra.mxu0 %v1419
    %1616 = vmatprep.subr.mxu0 0.0
    %1617 = vmatpush1.msra.mxu0 %v1418
    %1618 = vmatprep.subr.mxu0 0.0
    %1619 = vmatpush1.msra.mxu0 %v1417
    %1620 = vmatprep.subr.mxu0 0.0
    %1621 = vmatpush1.msra.mxu0 %v1416
    %1622 = vmatprep.subr.mxu0 0.0
    %1623 = vmatpush1.msra.mxu0 %v1415
    %1624 = vmatprep.subr.mxu0 0.0
    %1625 = vmatpush1.msra.mxu0 %v1414
    %1626 = vmatprep.subr.mxu0 0.0
    %1627 = vmatpush1.msra.mxu0 %v1413
    %1628 = vmatprep.subr.mxu0 0.0
    %1629 = vmatpush2.msra.mxu0 %v1444
    %1630 = vmatprep.subr.mxu0 0.0
    %1631 = vmatpush2.msra.mxu0 %v1443
    %1632 = vmatprep.subr.mxu0 0.0
    %1633 = vmatpush2.msra.mxu0 %v1442
    %1634 = vmatprep.subr.mxu0 0.0
    %1635 = vmatpush2.msra.mxu0 %v1441
    %1636 = vmatprep.subr.mxu0 0.0
    %1637 = vmatpush2.msra.mxu0 %v1440
    %1638 = vmatprep.subr.mxu0 0.0
    %1639 = vmatpush2.msra.mxu0 %v1439
    %1640 = vmatprep.subr.mxu0 0.0
    %1641 = vmatpush2.msra.mxu0 %v1438
    %1642 = vmatprep.subr.mxu0 0.0
    %1643 = vmatpush2.msra.mxu0 %v1437
    %1644 = vmatprep.subr.mxu0 0.0
    %1645 = vmatpush2.msra.mxu0 %v1436
    %1646 = vmatprep.subr.mxu0 0.0
    %1647 = vmatpush2.msra.mxu0 %v1435
    %1648 = vmatprep.subr.mxu0 0.0
    %1649 = vmatpush2.msra.mxu0 %v1434
    %1650 = vmatprep.subr.mxu0 0.0
    %1651 = vmatpush2.msra.mxu0 %v1433
    %1652 = vmatprep.subr.mxu0 0.0
    %1653 = vmatpush2.msra.mxu0 %v1432
    %1654 = vmatprep.subr.mxu0 0.0
    %1655 = vmatpush2.msra.mxu0 %v1431
    %1656 = vmatprep.subr.mxu0 0.0
    %1657 = vmatpush2.msra.mxu0 %v1430
    %1658 = vmatprep.subr.mxu0 0.0
    %1659 = vmatpush2.msra.mxu0 %v1429
    %1660 = vmatprep.mubr.f32.mxu0 %v1399
    %1661 = vmatmul.mubr.f32.gmra.mxu0 %v1390
    %v1662 = vpop.f32.mrf.mxu0
    %v1663 = vadd.f32 0.0, %v1662
    %v1664 = vpop.f32.mrf.mxu0
    %1665 = vdwg.mxu0
    %1666 = vmatprep.subr.mxu0 0.0
    %1667 = vmatpush1.msra.mxu0 0.0
    %1668 = vmatprep.subr.mxu0 0.0
    %1669 = vmatpush1.msra.mxu0 0.0
    %1670 = vmatprep.subr.mxu0 0.0
    %1671 = vmatpush1.msra.mxu0 0.0
    %1672 = vmatprep.subr.mxu0 0.0
    %1673 = vmatpush1.msra.mxu0 0.0
    %1674 = vmatprep.subr.mxu0 0.0
    %1675 = vmatpush1.msra.mxu0 0.0
    %1676 = vmatprep.subr.mxu0 0.0
    %1677 = vmatpush1.msra.mxu0 0.0
    %1678 = vmatprep.subr.mxu0 0.0
    %1679 = vmatpush1.msra.mxu0 0.0
    %1680 = vmatprep.subr.mxu0 0.0
    %1681 = vmatpush1.msra.mxu0 0.0
    %1682 = vmatprep.subr.mxu0 0.0
    %1683 = vmatpush1.msra.mxu0 0.0
    %1684 = vmatprep.subr.mxu0 0.0
    %1685 = vmatpush1.msra.mxu0 0.0
    %1686 = vmatprep.subr.mxu0 0.0
    %1687 = vmatpush1.msra.mxu0 0.0
    %1688 = vmatprep.subr.mxu0 0.0
    %1689 = vmatpush1.msra.mxu0 0.0
    %1690 = vmatprep.subr.mxu0 0.0
    %1691 = vmatpush1.msra.mxu0 %v1448
    %1692 = vmatprep.subr.mxu0 0.0
    %1693 = vmatpush1.msra.mxu0 %v1447
    %1694 = vmatprep.subr.mxu0 0.0
    %1695 = vmatpush1.msra.mxu0 %v1446
    %1696 = vmatprep.subr.mxu0 0.0
    %1697 = vmatpush1.msra.mxu0 %v1445
    %1698 = vmatprep.subr.mxu0 0.0
    %1699 = vmatpush2.msra.mxu0 0.0
    %1700 = vmatprep.subr.mxu0 0.0
    %1701 = vmatpush2.msra.mxu0 0.0
    %1702 = vmatprep.subr.mxu0 0.0
    %1703 = vmatpush2.msra.mxu0 0.0
    %1704 = vmatprep.subr.mxu0 0.0
    %1705 = vmatpush2.msra.mxu0 0.0
    %1706 = vmatprep.subr.mxu0 0.0
    %1707 = vmatpush2.msra.mxu0 0.0
    %1708 = vmatprep.subr.mxu0 0.0
    %1709 = vmatpush2.msra.mxu0 0.0
    %1710 = vmatprep.subr.mxu0 0.0
    %1711 = vmatpush2.msra.mxu0 0.0
    %1712 = vmatprep.subr.mxu0 0.0
    %1713 = vmatpush2.msra.mxu0 0.0
    %1714 = vmatprep.subr.mxu0 0.0
    %1715 = vmatpush2.msra.mxu0 0.0
    %1716 = vmatprep.subr.mxu0 0.0
    %1717 = vmatpush2.msra.mxu0 0.0
    %1718 = vmatprep.subr.mxu0 0.0
    %1719 = vmatpush2.msra.mxu0 0.0
    %1720 = vmatprep.subr.mxu0 0.0
    %1721 = vmatpush2.msra.mxu0 0.0
    %1722 = vmatprep.subr.mxu0 0.0
    %1723 = vmatpush2.msra.mxu0 0.0
    %1724 = vmatprep.subr.mxu0 0.0
    %1725 = vmatpush2.msra.mxu0 0.0
    %1726 = vmatprep.subr.mxu0 0.0
    %1727 = vmatpush2.msra.mxu0 0.0
    %1728 = vmatprep.subr.mxu0 0.0
    %1729 = vmatpush2.msra.mxu0 0.0
    %1730 = vmatprep.mubr.f32.mxu0 0.0
    %1731 = vmatmul.mubr.f32.gmra.mxu0 %v1594
    %v1732 = vpop.f32.mrf.mxu0
    %v1733 = vadd.f32 %v1663, %v1732
    %v1734 = vpop.f32.mrf.mxu0
    %1735 = vdwg.mxu0
    %v1736 = vmul.f32 %v1733, 0.001953125
    %v1737 = vmul.f32 %v1592, %v1592
    %v1738 = vsub.f32 %v1736, %v1737
    %v1739 = vmax.f32 %v1738, 0.0
    %v1740 = vld [vmem:[#allocation17] sm:$0x1]
    %v1741 = vadd.f32 %v1739, 1e-05
    %v1742 = vrsqrt.pop %v1741
    %v1743 = vmul.f32 %v1740, %v1742
    %v1744 = vld [vmem:[#allocation19] sm:$0x1]
    %v1745 = vmul.f32 %v1592, %v1743
    %v1746 = vsub.f32 %v1744, %v1745
    %v1747 = vld [vmem:[#allocation13] sm:$0xff]
    %v1748 = vld [vmem:[#allocation13 + $0x8] sm:$0xff]
    %v1749 = vld [vmem:[#allocation13 + $0x10] sm:$0xff]
    %v1750 = vld [vmem:[#allocation13 + $0x18] sm:$0xff]
    %v1751 = vld [vmem:[#allocation13 + $0x20] sm:$0xff]
    %v1752 = vld [vmem:[#allocation13 + $0x28] sm:$0xff]
    %vm1753 = vcmask 130048
    %v1755 = vsel %vm1753, %v1743, 0
    %1757 = vmatprep.subr.mxu0 0.0
    %1758 = vmatpush1.msra.mxu0 0.0
    %1759 = vmatprep.subr.mxu0 0.0
    %1760 = vmatpush1.msra.mxu0 0.0
    %1761 = vmatprep.subr.mxu0 0.0
    %1762 = vmatpush1.msra.mxu0 0.0
    %1763 = vmatprep.subr.mxu0 0.0
    %1764 = vmatpush1.msra.mxu0 0.0
    %1765 = vmatprep.subr.mxu0 0.0
    %1766 = vmatpush1.msra.mxu0 0.0
    %1767 = vmatprep.subr.mxu0 0.0
    %1768 = vmatpush1.msra.mxu0 0.0
    %1769 = vmatprep.subr.mxu0 0.0
    %1770 = vmatpush1.msra.mxu0 0.0
    %1771 = vmatprep.subr.mxu0 0.0
    %1772 = vmatpush1.msra.mxu0 0.0
    %1773 = vmatprep.subr.mxu0 0.0
    %1774 = vmatpush1.msra.mxu0 0.0
    %1775 = vmatprep.subr.mxu0 0.0
    %1776 = vmatpush1.msra.mxu0 0.0
    %1777 = vmatprep.subr.mxu0 0.0
    %1778 = vmatpush1.msra.mxu0 0.0
    %1779 = vmatprep.subr.mxu0 0.0
    %1780 = vmatpush1.msra.mxu0 0.0
    %1781 = vmatprep.subr.mxu0 0.0
    %1782 = vmatpush1.msra.mxu0 0.0
    %1783 = vmatprep.subr.mxu0 0.0
    %1784 = vmatpush1.msra.mxu0 0.0
    %1785 = vmatprep.subr.mxu0 %v1751
    %1786 = vmatpush1.msra.mxu0 %v1750
    %1787 = vmatprep.subr.mxu0 %v1748
    %1788 = vmatpush1.msra.mxu0 %v1747
    %1789 = vmatprep.subr.mxu0 0.0
    %1790 = vmatpush2.msra.mxu0 0.0
    %1791 = vmatprep.subr.mxu0 0.0
    %1792 = vmatpush2.msra.mxu0 0.0
    %1793 = vmatprep.subr.mxu0 0.0
    %1794 = vmatpush2.msra.mxu0 0.0
    %1795 = vmatprep.subr.mxu0 0.0
    %1796 = vmatpush2.msra.mxu0 0.0
    %1797 = vmatprep.subr.mxu0 0.0
    %1798 = vmatpush2.msra.mxu0 0.0
    %1799 = vmatprep.subr.mxu0 0.0
    %1800 = vmatpush2.msra.mxu0 0.0
    %1801 = vmatprep.subr.mxu0 0.0
    %1802 = vmatpush2.msra.mxu0 0.0
    %1803 = vmatprep.subr.mxu0 0.0
    %1804 = vmatpush2.msra.mxu0 0.0
    %1805 = vmatprep.subr.mxu0 0.0
    %1806 = vmatpush2.msra.mxu0 0.0
    %1807 = vmatprep.subr.mxu0 0.0
    %1808 = vmatpush2.msra.mxu0 0.0
    %1809 = vmatprep.subr.mxu0 0.0
    %1810 = vmatpush2.msra.mxu0 0.0
    %1811 = vmatprep.subr.mxu0 0.0
    %1812 = vmatpush2.msra.mxu0 0.0
    %1813 = vmatprep.subr.mxu0 0.0
    %1814 = vmatpush2.msra.mxu0 0.0
    %1815 = vmatprep.subr.mxu0 0.0
    %1816 = vmatpush2.msra.mxu0 0.0
    %1817 = vmatprep.subr.mxu0 0.0
    %1818 = vmatpush2.msra.mxu0 0.0
    %1819 = vmatprep.subr.mxu0 0.0
    %1820 = vmatpush2.msra.mxu0 0.0
    %1821 = vmatprep.mubr.f32.mxu0 0.0
    %1822 = vmatmul.mubr.f32.gmra.mxu0 %v1755
    %v1823 = vpop.f32.mrf.mxu0
    %v1824 = vadd.f32 0.0, %v1823
    %v1825 = vpop.f32.mrf.mxu0
    %v1826 = vadd.f32 0.0, %v1825
    %1827 = vdwg.mxu0
    %1828 = vmatprep.subr.mxu0 0.0
    %1829 = vmatpush1.msra.mxu0 0.0
    %1830 = vmatprep.subr.mxu0 0.0
    %1831 = vmatpush1.msra.mxu0 0.0
    %1832 = vmatprep.subr.mxu0 0.0
    %1833 = vmatpush1.msra.mxu0 0.0
    %1834 = vmatprep.subr.mxu0 0.0
    %1835 = vmatpush1.msra.mxu0 0.0
    %1836 = vmatprep.subr.mxu0 0.0
    %1837 = vmatpush1.msra.mxu0 0.0
    %1838 = vmatprep.subr.mxu0 0.0
    %1839 = vmatpush1.msra.mxu0 0.0
    %1840 = vmatprep.subr.mxu0 0.0
    %1841 = vmatpush1.msra.mxu0 0.0
    %1842 = vmatprep.subr.mxu0 0.0
    %1843 = vmatpush1.msra.mxu0 0.0
    %1844 = vmatprep.subr.mxu0 0.0
    %1845 = vmatpush1.msra.mxu0 0.0
    %1846 = vmatprep.subr.mxu0 0.0
    %1847 = vmatpush1.msra.mxu0 0.0
    %1848 = vmatprep.subr.mxu0 0.0
    %1849 = vmatpush1.msra.mxu0 0.0
    %1850 = vmatprep.subr.mxu0 0.0
    %1851 = vmatpush1.msra.mxu0 0.0
    %1852 = vmatprep.subr.mxu0 0.0
    %1853 = vmatpush1.msra.mxu0 0.0
    %1854 = vmatprep.subr.mxu0 0.0
    %1855 = vmatpush1.msra.mxu0 0.0
    %1856 = vmatprep.subr.mxu0 0.0
    %1857 = vmatpush1.msra.mxu0 %v1752
    %1858 = vmatprep.subr.mxu0 0.0
    %1859 = vmatpush1.msra.mxu0 %v1749
    %1860 = vmatprep.subr.mxu0 0.0
    %1861 = vmatpush2.msra.mxu0 0.0
    %1862 = vmatprep.subr.mxu0 0.0
    %1863 = vmatpush2.msra.mxu0 0.0
    %1864 = vmatprep.subr.mxu0 0.0
    %1865 = vmatpush2.msra.mxu0 0.0
    %1866 = vmatprep.subr.mxu0 0.0
    %1867 = vmatpush2.msra.mxu0 0.0
    %1868 = vmatprep.subr.mxu0 0.0
    %1869 = vmatpush2.msra.mxu0 0.0
    %1870 = vmatprep.subr.mxu0 0.0
    %1871 = vmatpush2.msra.mxu0 0.0
    %1872 = vmatprep.subr.mxu0 0.0
    %1873 = vmatpush2.msra.mxu0 0.0
    %1874 = vmatprep.subr.mxu0 0.0
    %1875 = vmatpush2.msra.mxu0 0.0
    %1876 = vmatprep.subr.mxu0 0.0
    %1877 = vmatpush2.msra.mxu0 0.0
    %1878 = vmatprep.subr.mxu0 0.0
    %1879 = vmatpush2.msra.mxu0 0.0
    %1880 = vmatprep.subr.mxu0 0.0
    %1881 = vmatpush2.msra.mxu0 0.0
    %1882 = vmatprep.subr.mxu0 0.0
    %1883 = vmatpush2.msra.mxu0 0.0
    %1884 = vmatprep.subr.mxu0 0.0
    %1885 = vmatpush2.msra.mxu0 0.0
    %1886 = vmatprep.subr.mxu0 0.0
    %1887 = vmatpush2.msra.mxu0 0.0
    %1888 = vmatprep.subr.mxu0 0.0
    %1889 = vmatpush2.msra.mxu0 0.0
    %1890 = vmatprep.subr.mxu0 0.0
    %1891 = vmatpush2.msra.mxu0 0.0
    %1892 = vmatprep.mubr.f32.mxu0 0.0
    %1893 = vmatmul.mubr.f32.gmra.mxu0 %v1755
    %v1894 = vpop.f32.mrf.mxu0
    %v1895 = vadd.f32 0.0, %v1894
    %v1896 = vpop.f32.mrf.mxu0
    %1897 = vdwg.mxu0
    %v1899 = vsel %vm1753, %v1746, 0
    %1901 = vmatprep.subr.mxu0 0.0
    %1902 = vmatpush1.msra.mxu0 0.0
    %1903 = vmatprep.subr.mxu0 0.0
    %1904 = vmatpush1.msra.mxu0 0.0
    %1905 = vmatprep.subr.mxu0 0.0
    %1906 = vmatpush1.msra.mxu0 0.0
    %1907 = vmatprep.subr.mxu0 0.0
    %1908 = vmatpush1.msra.mxu0 0.0
    %1909 = vmatprep.subr.mxu0 0.0
    %1910 = vmatpush1.msra.mxu0 0.0
    %1911 = vmatprep.subr.mxu0 0.0
    %1912 = vmatpush1.msra.mxu0 0.0
    %1913 = vmatprep.subr.mxu0 0.0
    %1914 = vmatpush1.msra.mxu0 0.0
    %1915 = vmatprep.subr.mxu0 0.0
    %1916 = vmatpush1.msra.mxu0 0.0
    %1917 = vmatprep.subr.mxu0 0.0
    %1918 = vmatpush1.msra.mxu0 0.0
    %1919 = vmatprep.subr.mxu0 0.0
    %1920 = vmatpush1.msra.mxu0 0.0
    %1921 = vmatprep.subr.mxu0 0.0
    %1922 = vmatpush1.msra.mxu0 0.0
    %1923 = vmatprep.subr.mxu0 0.0
    %1924 = vmatpush1.msra.mxu0 0.0
    %1925 = vmatprep.subr.mxu0 0.0
    %1926 = vmatpush1.msra.mxu0 0.0
    %1927 = vmatprep.subr.mxu0 0.0
    %1928 = vmatpush1.msra.mxu0 0.0
    %1929 = vmatprep.subr.mxu0 %v1751
    %1930 = vmatpush1.msra.mxu0 %v1750
    %1931 = vmatprep.subr.mxu0 %v1748
    %1932 = vmatpush1.msra.mxu0 %v1747
    %1933 = vmatprep.subr.mxu0 0.0
    %1934 = vmatpush2.msra.mxu0 0.0
    %1935 = vmatprep.subr.mxu0 0.0
    %1936 = vmatpush2.msra.mxu0 0.0
    %1937 = vmatprep.subr.mxu0 0.0
    %1938 = vmatpush2.msra.mxu0 0.0
    %1939 = vmatprep.subr.mxu0 0.0
    %1940 = vmatpush2.msra.mxu0 0.0
    %1941 = vmatprep.subr.mxu0 0.0
    %1942 = vmatpush2.msra.mxu0 0.0
    %1943 = vmatprep.subr.mxu0 0.0
    %1944 = vmatpush2.msra.mxu0 0.0
    %1945 = vmatprep.subr.mxu0 0.0
    %1946 = vmatpush2.msra.mxu0 0.0
    %1947 = vmatprep.subr.mxu0 0.0
    %1948 = vmatpush2.msra.mxu0 0.0
    %1949 = vmatprep.subr.mxu0 0.0
    %1950 = vmatpush2.msra.mxu0 0.0
    %1951 = vmatprep.subr.mxu0 0.0
    %1952 = vmatpush2.msra.mxu0 0.0
    %1953 = vmatprep.subr.mxu0 0.0
    %1954 = vmatpush2.msra.mxu0 0.0
    %1955 = vmatprep.subr.mxu0 0.0
    %1956 = vmatpush2.msra.mxu0 0.0
    %1957 = vmatprep.subr.mxu0 0.0
    %1958 = vmatpush2.msra.mxu0 0.0
    %1959 = vmatprep.subr.mxu0 0.0
    %1960 = vmatpush2.msra.mxu0 0.0
    %1961 = vmatprep.subr.mxu0 0.0
    %1962 = vmatpush2.msra.mxu0 0.0
    %1963 = vmatprep.subr.mxu0 0.0
    %1964 = vmatpush2.msra.mxu0 0.0
    %1965 = vmatprep.mubr.f32.mxu0 0.0
    %1966 = vmatmul.mubr.f32.gmra.mxu0 %v1899
    %v1967 = vpop.f32.mrf.mxu0
    %v1968 = vadd.f32 0.0, %v1967
    %v1969 = vpop.f32.mrf.mxu0
    %v1970 = vadd.f32 0.0, %v1969
    %1971 = vdwg.mxu0
    %1972 = vmatprep.subr.mxu0 0.0
    %1973 = vmatpush1.msra.mxu0 0.0
    %1974 = vmatprep.subr.mxu0 0.0
    %1975 = vmatpush1.msra.mxu0 0.0
    %1976 = vmatprep.subr.mxu0 0.0
    %1977 = vmatpush1.msra.mxu0 0.0
    %1978 = vmatprep.subr.mxu0 0.0
    %1979 = vmatpush1.msra.mxu0 0.0
    %1980 = vmatprep.subr.mxu0 0.0
    %1981 = vmatpush1.msra.mxu0 0.0
    %1982 = vmatprep.subr.mxu0 0.0
    %1983 = vmatpush1.msra.mxu0 0.0
    %1984 = vmatprep.subr.mxu0 0.0
    %1985 = vmatpush1.msra.mxu0 0.0
    %1986 = vmatprep.subr.mxu0 0.0
    %1987 = vmatpush1.msra.mxu0 0.0
    %1988 = vmatprep.subr.mxu0 0.0
    %1989 = vmatpush1.msra.mxu0 0.0
    %1990 = vmatprep.subr.mxu0 0.0
    %1991 = vmatpush1.msra.mxu0 0.0
    %1992 = vmatprep.subr.mxu0 0.0
    %1993 = vmatpush1.msra.mxu0 0.0
    %1994 = vmatprep.subr.mxu0 0.0
    %1995 = vmatpush1.msra.mxu0 0.0
    %1996 = vmatprep.subr.mxu0 0.0
    %1997 = vmatpush1.msra.mxu0 0.0
    %1998 = vmatprep.subr.mxu0 0.0
    %1999 = vmatpush1.msra.mxu0 0.0
    %2000 = vmatprep.subr.mxu0 0.0
    %2001 = vmatpush1.msra.mxu0 %v1752
    %2002 = vmatprep.subr.mxu0 0.0
    %2003 = vmatpush1.msra.mxu0 %v1749
    %2004 = vmatprep.subr.mxu0 0.0
    %2005 = vmatpush2.msra.mxu0 0.0
    %2006 = vmatprep.subr.mxu0 0.0
    %2007 = vmatpush2.msra.mxu0 0.0
    %2008 = vmatprep.subr.mxu0 0.0
    %2009 = vmatpush2.msra.mxu0 0.0
    %2010 = vmatprep.subr.mxu0 0.0
    %2011 = vmatpush2.msra.mxu0 0.0
    %2012 = vmatprep.subr.mxu0 0.0
    %2013 = vmatpush2.msra.mxu0 0.0
    %2014 = vmatprep.subr.mxu0 0.0
    %2015 = vmatpush2.msra.mxu0 0.0
    %2016 = vmatprep.subr.mxu0 0.0
    %2017 = vmatpush2.msra.mxu0 0.0
    %2018 = vmatprep.subr.mxu0 0.0
    %2019 = vmatpush2.msra.mxu0 0.0
    %2020 = vmatprep.subr.mxu0 0.0
    %2021 = vmatpush2.msra.mxu0 0.0
    %2022 = vmatprep.subr.mxu0 0.0
    %2023 = vmatpush2.msra.mxu0 0.0
    %2024 = vmatprep.subr.mxu0 0.0
    %2025 = vmatpush2.msra.mxu0 0.0
    %2026 = vmatprep.subr.mxu0 0.0
    %2027 = vmatpush2.msra.mxu0 0.0
    %2028 = vmatprep.subr.mxu0 0.0
    %2029 = vmatpush2.msra.mxu0 0.0
    %2030 = vmatprep.subr.mxu0 0.0
    %2031 = vmatpush2.msra.mxu0 0.0
    %2032 = vmatprep.subr.mxu0 0.0
    %2033 = vmatpush2.msra.mxu0 0.0
    %2034 = vmatprep.subr.mxu0 0.0
    %2035 = vmatpush2.msra.mxu0 0.0
    %2036 = vmatprep.mubr.f32.mxu0 0.0
    %2037 = vmatmul.mubr.f32.gmra.mxu0 %v1899
    %v2038 = vpop.f32.mrf.mxu0
    %v2039 = vadd.f32 0.0, %v2038
    %v2040 = vpop.f32.mrf.mxu0
    %2041 = vdwg.mxu0
    %v2042 = vlaneseq
    %v2043 = vshrl.u32 %v2042, 7
    %v2044 = vsub.s32 0, %v2043
    %v2045 = vrot.slane %v1824, %v2044
    %v2046 = vlaneseq
    %v2047 = vshrl.u32 %v2046, 7
    %v2048 = vsub.s32 0, %v2047
    %v2049 = vrot.slane %v1826, %v2048
    %v2050 = vlaneseq
    %v2051 = vshrl.u32 %v2050, 7
    %v2052 = vsub.s32 0, %v2051
    %v2053 = vrot.slane %v1895, %v2052
    %v2054 = vmul.f32 %v1326, %v2045
    %v2055 = vmul.f32 %v1327, %v2049
    %v2056 = vmul.f32 %v1328, %v2053
    %v2057 = vmul.f32 %v1329, %v2045
    %v2058 = vmul.f32 %v1330, %v2049
    %v2059 = vmul.f32 %v1331, %v2053
    %v2060 = vmul.f32 %v1332, %v2045
    %v2061 = vmul.f32 %v1333, %v2049
    %v2062 = vmul.f32 %v1334, %v2053
    %v2063 = vmul.f32 %v1335, %v2045
    %v2064 = vmul.f32 %v1336, %v2049
    %v2065 = vmul.f32 %v1337, %v2053
    %v2066 = vlaneseq
    %v2067 = vshrl.u32 %v2066, 7
    %v2068 = vsub.s32 0, %v2067
    %v2069 = vrot.slane %v1968, %v2068
    %v2070 = vlaneseq
    %v2071 = vshrl.u32 %v2070, 7
    %v2072 = vsub.s32 0, %v2071
    %v2073 = vrot.slane %v1970, %v2072
    %v2074 = vlaneseq
    %v2075 = vshrl.u32 %v2074, 7
    %v2076 = vsub.s32 0, %v2075
    %v2077 = vrot.slane %v2039, %v2076
    %v2078 = vadd.f32 %v2054, %v2069
    %v2079 = vadd.f32 %v2055, %v2073
    %v2080 = vadd.f32 %v2056, %v2077
    %v2081 = vadd.f32 %v2057, %v2069
    %v2082 = vadd.f32 %v2058, %v2073
    %v2083 = vadd.f32 %v2059, %v2077
    %v2084 = vadd.f32 %v2060, %v2069
    %v2085 = vadd.f32 %v2061, %v2073
    %v2086 = vadd.f32 %v2062, %v2077
    %v2087 = vadd.f32 %v2063, %v2069
    %v2088 = vadd.f32 %v2064, %v2073
    %v2089 = vadd.f32 %v2065, %v2077
    %vm2102 = vcmask 1040384
    %v2103 = vrot.slane %v2078, 7
    %v2104 = vrot.slane %v2079, 7
    %v2105 = vrot.slane %v2080, 7
    %v2106 = vrot.slane %v2081, 7
    %v2107 = vsel %vm2102, %v2103, %v2106
    %v2108 = vrot.slane %v2082, 7
    %v2109 = vsel %vm2102, %v2104, %v2108
    %v2110 = vrot.slane %v2083, 7
    %v2111 = vsel %vm2102, %v2105, %v2110
    %v2112 = vrot.slane %v2084, 7
    %v2113 = vrot.slane %v2085, 7
    %v2114 = vrot.slane %v2086, 7
    %v2115 = vrot.slane %v2087, 7
    %v2116 = vsel %vm2102, %v2112, %v2115
    %v2117 = vrot.slane %v2088, 7
    %v2118 = vsel %vm2102, %v2113, %v2117
    %v2119 = vrot.slane %v2089, 7
    %v2120 = vsel %vm2102, %v2114, %v2119
    %2139 = vst [vmem:[#allocation3] sm:$0xfe] %v2103
    %2140 = vst [vmem:[#allocation3 + $0x8] sm:$0xfe] %v2104
    %vm2141 = vcmask 261121
    %2142 = vst.msk [vmem:[#allocation3 + $0x10] sm:$0xfe] %vm2141, %v2105
    %2143 = vst [vmem:[#allocation3 + $0x18] sm:$0xff] %v2107
    %2144 = vst [vmem:[#allocation3 + $0x20] sm:$0xff] %v2109
    %2145 = vst.msk [vmem:[#allocation3 + $0x28] sm:$0xff] %vm1356, %v2111
    %2146 = vst [vmem:[#allocation3 + $0x30] sm:$0x1] %v2106
    %2147 = vst [vmem:[#allocation3 + $0x38] sm:$0x1] %v2108
    %vm2148 = vcmask 253952
    %2149 = vst.msk [vmem:[#allocation3 + $0x40] sm:$0x1] %vm2148, %v2110
    %2150 = vst [vmem:[#allocation3 + $0x48] sm:$0xfe] %v2112
    %2151 = vst [vmem:[#allocation3 + $0x50] sm:$0xfe] %v2113
    %2152 = vst.msk [vmem:[#allocation3 + $0x58] sm:$0xfe] %vm2141, %v2114
    %2153 = vst [vmem:[#allocation3 + $0x60] sm:$0xff] %v2116
    %2154 = vst [vmem:[#allocation3 + $0x68] sm:$0xff] %v2118
    %2155 = vst.msk [vmem:[#allocation3 + $0x70] sm:$0xff] %vm1356, %v2120
    %2156 = vst [vmem:[#allocation3 + $0x78] sm:$0x1] %v2115
    %2157 = vst [vmem:[#allocation3 + $0x80] sm:$0x1] %v2117
    %2158 = vst.msk [vmem:[#allocation3 + $0x88] sm:$0x1] %vm2148, %v2119
    %v2159 = vld [vmem:[#allocation3] sm:$0xff]
    %v2160 = vld [vmem:[#allocation3 + $0x8] sm:$0xff]
    %v2161 = vld [vmem:[#allocation3 + $0x10] sm:$0xff]
    %v2162 = vld [vmem:[#allocation3 + $0x18] sm:$0xff]
    %v2163 = vld [vmem:[#allocation3 + $0x20] sm:$0xff]
    %v2164 = vld [vmem:[#allocation3 + $0x28] sm:$0xff]
    %v2165 = vld [vmem:[#allocation3 + $0x48] sm:$0xff]
    %v2166 = vld [vmem:[#allocation3 + $0x50] sm:$0xff]
    %v2167 = vld [vmem:[#allocation3 + $0x58] sm:$0xff]
    %v2168 = vld [vmem:[#allocation3 + $0x60] sm:$0xff]
    %v2169 = vld [vmem:[#allocation3 + $0x68] sm:$0xff]
    %v2170 = vld [vmem:[#allocation3 + $0x70] sm:$0xff]
    %v2171 = vld [vmem:[#allocation20] sm:$0xff]
    %v2172 = vld [vmem:[#allocation20 + $0x8] sm:$0xff]
    %v2173 = vld [vmem:[#allocation20 + $0x10] sm:$0xff]
    %v2174 = vld [vmem:[#allocation20 + $0x18] sm:$0xff]
    %v2175 = vld [vmem:[#allocation20 + $0x20] sm:$0xff]
    %v2176 = vld [vmem:[#allocation20 + $0x28] sm:$0xff]
    %v2177 = vld [vmem:[#allocation20 + $0x30] sm:$0xff]
    %v2178 = vld [vmem:[#allocation20 + $0x38] sm:$0xff]
    %v2179 = vld [vmem:[#allocation20 + $0x40] sm:$0xff]
    %v2180 = vld [vmem:[#allocation20 + $0x48] sm:$0xff]
    %v2181 = vld [vmem:[#allocation20 + $0x50] sm:$0xff]
    %v2182 = vld [vmem:[#allocation20 + $0x58] sm:$0xff]
    %v2183 = vld [vmem:[#allocation20 + $0x60] sm:$0xff]
    %v2184 = vld [vmem:[#allocation20 + $0x68] sm:$0xff]
    %v2185 = vld [vmem:[#allocation20 + $0x70] sm:$0xff]
    %v2186 = vld [vmem:[#allocation20 + $0x78] sm:$0xff]
    %v2187 = vld [vmem:[#allocation20 + $0x80] sm:$0xff]
    %v2188 = vld [vmem:[#allocation20 + $0x88] sm:$0xff]
    %v2189 = vld [vmem:[#allocation20 + $0x90] sm:$0xff]
    %v2190 = vld [vmem:[#allocation20 + $0x98] sm:$0xff]
    %v2191 = vld [vmem:[#allocation20 + $0xa0] sm:$0xff]
    %v2192 = vld [vmem:[#allocation20 + $0xa8] sm:$0xff]
    %v2193 = vld [vmem:[#allocation20 + $0xb0] sm:$0xff]
    %v2194 = vld [vmem:[#allocation20 + $0xb8] sm:$0xff]
    %v2195 = vld [vmem:[#allocation20 + $0xc0] sm:$0xff]
    %v2196 = vld [vmem:[#allocation20 + $0xc8] sm:$0xff]
    %v2197 = vld [vmem:[#allocation20 + $0xd0] sm:$0xff]
    %v2198 = vld [vmem:[#allocation20 + $0xd8] sm:$0xff]
    %v2199 = vld [vmem:[#allocation20 + $0xe0] sm:$0xff]
    %v2200 = vld [vmem:[#allocation20 + $0xe8] sm:$0xff]
    %v2201 = vld [vmem:[#allocation20 + $0xf0] sm:$0xff]
    %v2202 = vld [vmem:[#allocation20 + $0xf8] sm:$0xff]
    %v2203 = vld [vmem:[#allocation20 + $0x100] sm:$0xff]
    %v2204 = vld [vmem:[#allocation20 + $0x108] sm:$0xff]
    %v2205 = vld [vmem:[#allocation20 + $0x110] sm:$0xff]
    %v2206 = vld [vmem:[#allocation20 + $0x118] sm:$0xff]
    %v2207 = vld [vmem:[#allocation20 + $0x120] sm:$0xff]
    %v2208 = vld [vmem:[#allocation20 + $0x128] sm:$0xff]
    %v2209 = vld [vmem:[#allocation20 + $0x130] sm:$0xff]
    %v2210 = vld [vmem:[#allocation20 + $0x138] sm:$0xff]
    %v2211 = vld [vmem:[#allocation20 + $0x140] sm:$0xff]
    %v2212 = vld [vmem:[#allocation20 + $0x148] sm:$0xff]
    %v2213 = vld [vmem:[#allocation20 + $0x150] sm:$0xff]
    %v2214 = vld [vmem:[#allocation20 + $0x158] sm:$0xff]
    %v2215 = vld [vmem:[#allocation20 + $0x160] sm:$0xff]
    %v2216 = vld [vmem:[#allocation20 + $0x168] sm:$0xff]
    %v2217 = vld [vmem:[#allocation20 + $0x170] sm:$0xff]
    %v2218 = vld [vmem:[#allocation20 + $0x178] sm:$0xff]
    %v2219 = vld [vmem:[#allocation20 + $0x180] sm:$0xff]
    %v2220 = vld [vmem:[#allocation20 + $0x188] sm:$0xff]
    %v2221 = vld [vmem:[#allocation20 + $0x190] sm:$0xff]
    %v2222 = vld [vmem:[#allocation20 + $0x198] sm:$0xff]
    %v2223 = vld [vmem:[#allocation20 + $0x1a0] sm:$0xff]
    %v2224 = vld [vmem:[#allocation20 + $0x1a8] sm:$0xff]
    %v2225 = vld [vmem:[#allocation20 + $0x1b0] sm:$0xff]
    %v2226 = vld [vmem:[#allocation20 + $0x1b8] sm:$0xff]
    %v2227 = vld [vmem:[#allocation20 + $0x1c0] sm:$0xff]
    %v2228 = vld [vmem:[#allocation20 + $0x1c8] sm:$0xff]
    %v2229 = vld [vmem:[#allocation20 + $0x1d0] sm:$0xff]
    %v2230 = vld [vmem:[#allocation20 + $0x1d8] sm:$0xff]
    %v2231 = vld [vmem:[#allocation20 + $0x1e0] sm:$0xff]
    %v2232 = vld [vmem:[#allocation20 + $0x1e8] sm:$0xff]
    %v2233 = vld [vmem:[#allocation20 + $0x1f0] sm:$0xff]
    %v2234 = vld [vmem:[#allocation20 + $0x1f8] sm:$0xff]
    %v2235 = vld [vmem:[#allocation20 + $0x200] sm:$0xff]
    %v2236 = vld [vmem:[#allocation20 + $0x208] sm:$0xff]
    %v2237 = vld [vmem:[#allocation20 + $0x210] sm:$0xff]
    %v2238 = vld [vmem:[#allocation20 + $0x218] sm:$0xff]
    %v2239 = vld [vmem:[#allocation20 + $0x220] sm:$0xff]
    %v2240 = vld [vmem:[#allocation20 + $0x228] sm:$0xff]
    %v2241 = vld [vmem:[#allocation20 + $0x230] sm:$0xff]
    %v2242 = vld [vmem:[#allocation20 + $0x238] sm:$0xff]
    %v2243 = vld [vmem:[#allocation20 + $0x240] sm:$0xff]
    %v2244 = vld [vmem:[#allocation20 + $0x248] sm:$0xff]
    %v2245 = vld [vmem:[#allocation20 + $0x250] sm:$0xff]
    %v2246 = vld [vmem:[#allocation20 + $0x258] sm:$0xff]
    %v2247 = vld [vmem:[#allocation20 + $0x260] sm:$0xff]
    %v2248 = vld [vmem:[#allocation20 + $0x268] sm:$0xff]
    %v2249 = vld [vmem:[#allocation20 + $0x270] sm:$0xff]
    %v2250 = vld [vmem:[#allocation20 + $0x278] sm:$0xff]
    %v2251 = vld [vmem:[#allocation20 + $0x280] sm:$0xff]
    %v2252 = vld [vmem:[#allocation20 + $0x288] sm:$0xff]
    %v2253 = vld [vmem:[#allocation20 + $0x290] sm:$0xff]
    %v2254 = vld [vmem:[#allocation20 + $0x298] sm:$0xff]
    %v2255 = vld [vmem:[#allocation20 + $0x2a0] sm:$0xff]
    %v2256 = vld [vmem:[#allocation20 + $0x2a8] sm:$0xff]
    %v2257 = vld [vmem:[#allocation20 + $0x2b0] sm:$0xff]
    %v2258 = vld [vmem:[#allocation20 + $0x2b8] sm:$0xff]
    %v2259 = vld [vmem:[#allocation20 + $0x2c0] sm:$0xff]
    %v2260 = vld [vmem:[#allocation20 + $0x2c8] sm:$0xff]
    %v2261 = vld [vmem:[#allocation20 + $0x2d0] sm:$0xff]
    %v2262 = vld [vmem:[#allocation20 + $0x2d8] sm:$0xff]
    %v2263 = vld [vmem:[#allocation20 + $0x2e0] sm:$0xff]
    %v2264 = vld [vmem:[#allocation20 + $0x2e8] sm:$0xff]
    %v2265 = vld [vmem:[#allocation20 + $0x2f0] sm:$0xff]
    %v2266 = vld [vmem:[#allocation20 + $0x2f8] sm:$0xff]
    %v2267 = vld [vmem:[#allocation20 + $0x300] sm:$0xff]
    %v2268 = vld [vmem:[#allocation20 + $0x308] sm:$0xff]
    %v2269 = vld [vmem:[#allocation20 + $0x310] sm:$0xff]
    %v2270 = vld [vmem:[#allocation20 + $0x318] sm:$0xff]
    %v2271 = vld [vmem:[#allocation20 + $0x320] sm:$0xff]
    %v2272 = vld [vmem:[#allocation20 + $0x328] sm:$0xff]
    %v2273 = vld [vmem:[#allocation20 + $0x330] sm:$0xff]
    %v2274 = vld [vmem:[#allocation20 + $0x338] sm:$0xff]
    %v2275 = vld [vmem:[#allocation20 + $0x340] sm:$0xff]
    %v2276 = vld [vmem:[#allocation20 + $0x348] sm:$0xff]
    %v2277 = vld [vmem:[#allocation20 + $0x350] sm:$0xff]
    %v2278 = vld [vmem:[#allocation20 + $0x358] sm:$0xff]
    %v2279 = vld [vmem:[#allocation3] sm:$0xfe]
    %v2280 = vld [vmem:[#allocation3 + $0x8] sm:$0xfe]
    %v2281 = vld [vmem:[#allocation3 + $0x10] sm:$0xfe]
    %v2282 = vld [vmem:[#allocation3 + $0x30] sm:$0x1]
    %v2283 = vld [vmem:[#allocation3 + $0x38] sm:$0x1]
    %v2284 = vld [vmem:[#allocation3 + $0x40] sm:$0x1]
    %v2285 = vld [vmem:[#allocation3 + $0x48] sm:$0xfe]
    %v2286 = vld [vmem:[#allocation3 + $0x50] sm:$0xfe]
    %v2287 = vld [vmem:[#allocation3 + $0x58] sm:$0xfe]
    %v2288 = vld [vmem:[#allocation3 + $0x78] sm:$0x1]
    %v2289 = vld [vmem:[#allocation3 + $0x80] sm:$0x1]
    %v2290 = vld [vmem:[#allocation3 + $0x88] sm:$0x1]
    %vm2309 = vcmask 1046528
    %v2310 = vrot.slane %v2279, 1
    %v2311 = vrot.slane %v2162, 1
    %v2312 = vsel %vm2309, %v2310, %v2311
    %v2313 = vrot.slane %v2280, 1
    %v2314 = vrot.slane %v2163, 1
    %v2315 = vsel %vm2309, %v2313, %v2314
    %v2316 = vrot.slane %v2281, 1
    %v2317 = vrot.slane %v2164, 1
    %v2318 = vsel %vm2309, %v2316, %v2317
    %v2319 = vrot.slane %v2282, 1
    %v2320 = vsel %vm2309, %v2311, %v2319
    %v2321 = vrot.slane %v2283, 1
    %v2322 = vsel %vm2309, %v2314, %v2321
    %v2323 = vrot.slane %v2284, 1
    %v2324 = vsel %vm2309, %v2317, %v2323
    %v2325 = vrot.slane %v2285, 1
    %v2326 = vrot.slane %v2168, 1
    %v2327 = vsel %vm2309, %v2325, %v2326
    %v2328 = vrot.slane %v2286, 1
    %v2329 = vrot.slane %v2169, 1
    %v2330 = vsel %vm2309, %v2328, %v2329
    %v2331 = vrot.slane %v2287, 1
    %v2332 = vrot.slane %v2170, 1
    %v2333 = vsel %vm2309, %v2331, %v2332
    %v2334 = vrot.slane %v2288, 1
    %v2335 = vsel %vm2309, %v2326, %v2334
    %v2336 = vrot.slane %v2289, 1
    %v2337 = vsel %vm2309, %v2329, %v2336
    %v2338 = vrot.slane %v2290, 1
    %v2339 = vsel %vm2309, %v2332, %v2338
    %s2348 = scalar_lea.vmem [#allocation20], 864
    %v2349 = vld [vmem:[%s2348] sm:$0xff]
    %v2350 = vld [vmem:[%s2348 + $0x8] sm:$0xff]
    %v2351 = vld [vmem:[%s2348 + $0x10] sm:$0xff]
    %v2352 = vld [vmem:[%s2348 + $0x18] sm:$0xff]
    %v2353 = vld [vmem:[%s2348 + $0x20] sm:$0xff]
    %v2354 = vld [vmem:[%s2348 + $0x28] sm:$0xff]
    %v2355 = vld [vmem:[%s2348 + $0x30] sm:$0xff]
    %v2356 = vld [vmem:[%s2348 + $0x38] sm:$0xff]
    %v2357 = vld [vmem:[%s2348 + $0x40] sm:$0xff]
    %v2358 = vld [vmem:[%s2348 + $0x48] sm:$0xff]
    %v2359 = vld [vmem:[%s2348 + $0x50] sm:$0xff]
    %v2360 = vld [vmem:[%s2348 + $0x58] sm:$0xff]
    %v2361 = vld [vmem:[%s2348 + $0x60] sm:$0xff]
    %v2362 = vld [vmem:[%s2348 + $0x68] sm:$0xff]
    %v2363 = vld [vmem:[%s2348 + $0x70] sm:$0xff]
    %v2364 = vld [vmem:[%s2348 + $0x78] sm:$0xff]
    %v2365 = vld [vmem:[%s2348 + $0x80] sm:$0xff]
    %v2366 = vld [vmem:[%s2348 + $0x88] sm:$0xff]
    %v2367 = vld [vmem:[%s2348 + $0x90] sm:$0xff]
    %v2368 = vld [vmem:[%s2348 + $0x98] sm:$0xff]
    %v2369 = vld [vmem:[%s2348 + $0xa0] sm:$0xff]
    %v2370 = vld [vmem:[%s2348 + $0xa8] sm:$0xff]
    %v2371 = vld [vmem:[%s2348 + $0xb0] sm:$0xff]
    %v2372 = vld [vmem:[%s2348 + $0xb8] sm:$0xff]
    %v2373 = vld [vmem:[%s2348 + $0xc0] sm:$0xff]
    %v2374 = vld [vmem:[%s2348 + $0xc8] sm:$0xff]
    %v2375 = vld [vmem:[%s2348 + $0xd0] sm:$0xff]
    %v2376 = vld [vmem:[%s2348 + $0xd8] sm:$0xff]
    %v2377 = vld [vmem:[%s2348 + $0xe0] sm:$0xff]
    %v2378 = vld [vmem:[%s2348 + $0xe8] sm:$0xff]
    %v2379 = vld [vmem:[%s2348 + $0xf0] sm:$0xff]
    %v2380 = vld [vmem:[%s2348 + $0xf8] sm:$0xff]
    %v2381 = vld [vmem:[%s2348 + $0x100] sm:$0xff]
    %v2382 = vld [vmem:[%s2348 + $0x108] sm:$0xff]
    %v2383 = vld [vmem:[%s2348 + $0x110] sm:$0xff]
    %v2384 = vld [vmem:[%s2348 + $0x118] sm:$0xff]
    %v2385 = vld [vmem:[%s2348 + $0x120] sm:$0xff]
    %v2386 = vld [vmem:[%s2348 + $0x128] sm:$0xff]
    %v2387 = vld [vmem:[%s2348 + $0x130] sm:$0xff]
    %v2388 = vld [vmem:[%s2348 + $0x138] sm:$0xff]
    %v2389 = vld [vmem:[%s2348 + $0x140] sm:$0xff]
    %v2390 = vld [vmem:[%s2348 + $0x148] sm:$0xff]
    %v2391 = vld [vmem:[%s2348 + $0x150] sm:$0xff]
    %v2392 = vld [vmem:[%s2348 + $0x158] sm:$0xff]
    %v2393 = vld [vmem:[%s2348 + $0x160] sm:$0xff]
    %v2394 = vld [vmem:[%s2348 + $0x168] sm:$0xff]
    %v2395 = vld [vmem:[%s2348 + $0x170] sm:$0xff]
    %v2396 = vld [vmem:[%s2348 + $0x178] sm:$0xff]
    %v2397 = vld [vmem:[%s2348 + $0x180] sm:$0xff]
    %v2398 = vld [vmem:[%s2348 + $0x188] sm:$0xff]
    %v2399 = vld [vmem:[%s2348 + $0x190] sm:$0xff]
    %v2400 = vld [vmem:[%s2348 + $0x198] sm:$0xff]
    %v2401 = vld [vmem:[%s2348 + $0x1a0] sm:$0xff]
    %v2402 = vld [vmem:[%s2348 + $0x1a8] sm:$0xff]
    %v2403 = vld [vmem:[%s2348 + $0x1b0] sm:$0xff]
    %v2404 = vld [vmem:[%s2348 + $0x1b8] sm:$0xff]
    %v2405 = vld [vmem:[%s2348 + $0x1c0] sm:$0xff]
    %v2406 = vld [vmem:[%s2348 + $0x1c8] sm:$0xff]
    %v2407 = vld [vmem:[%s2348 + $0x1d0] sm:$0xff]
    %v2408 = vld [vmem:[%s2348 + $0x1d8] sm:$0xff]
    %v2409 = vld [vmem:[%s2348 + $0x1e0] sm:$0xff]
    %v2410 = vld [vmem:[%s2348 + $0x1e8] sm:$0xff]
    %v2411 = vld [vmem:[%s2348 + $0x1f0] sm:$0xff]
    %v2412 = vld [vmem:[%s2348 + $0x1f8] sm:$0xff]
    %v2413 = vld [vmem:[%s2348 + $0x200] sm:$0xff]
    %v2414 = vld [vmem:[%s2348 + $0x208] sm:$0xff]
    %v2415 = vld [vmem:[%s2348 + $0x210] sm:$0xff]
    %v2416 = vld [vmem:[%s2348 + $0x218] sm:$0xff]
    %v2417 = vld [vmem:[%s2348 + $0x220] sm:$0xff]
    %v2418 = vld [vmem:[%s2348 + $0x228] sm:$0xff]
    %v2419 = vld [vmem:[%s2348 + $0x230] sm:$0xff]
    %v2420 = vld [vmem:[%s2348 + $0x238] sm:$0xff]
    %v2421 = vld [vmem:[%s2348 + $0x240] sm:$0xff]
    %v2422 = vld [vmem:[%s2348 + $0x248] sm:$0xff]
    %v2423 = vld [vmem:[%s2348 + $0x250] sm:$0xff]
    %v2424 = vld [vmem:[%s2348 + $0x258] sm:$0xff]
    %v2425 = vld [vmem:[%s2348 + $0x260] sm:$0xff]
    %v2426 = vld [vmem:[%s2348 + $0x268] sm:$0xff]
    %v2427 = vld [vmem:[%s2348 + $0x270] sm:$0xff]
    %v2428 = vld [vmem:[%s2348 + $0x278] sm:$0xff]
    %v2429 = vld [vmem:[%s2348 + $0x280] sm:$0xff]
    %v2430 = vld [vmem:[%s2348 + $0x288] sm:$0xff]
    %v2431 = vld [vmem:[%s2348 + $0x290] sm:$0xff]
    %v2432 = vld [vmem:[%s2348 + $0x298] sm:$0xff]
    %v2433 = vld [vmem:[%s2348 + $0x2a0] sm:$0xff]
    %v2434 = vld [vmem:[%s2348 + $0x2a8] sm:$0xff]
    %v2435 = vld [vmem:[%s2348 + $0x2b0] sm:$0xff]
    %v2436 = vld [vmem:[%s2348 + $0x2b8] sm:$0xff]
    %v2437 = vld [vmem:[%s2348 + $0x2c0] sm:$0xff]
    %v2438 = vld [vmem:[%s2348 + $0x2c8] sm:$0xff]
    %v2439 = vld [vmem:[%s2348 + $0x2d0] sm:$0xff]
    %v2440 = vld [vmem:[%s2348 + $0x2d8] sm:$0xff]
    %v2441 = vld [vmem:[%s2348 + $0x2e0] sm:$0xff]
    %v2442 = vld [vmem:[%s2348 + $0x2e8] sm:$0xff]
    %v2443 = vld [vmem:[%s2348 + $0x2f0] sm:$0xff]
    %v2444 = vld [vmem:[%s2348 + $0x2f8] sm:$0xff]
    %v2445 = vld [vmem:[%s2348 + $0x300] sm:$0xff]
    %v2446 = vld [vmem:[%s2348 + $0x308] sm:$0xff]
    %v2447 = vld [vmem:[%s2348 + $0x310] sm:$0xff]
    %v2448 = vld [vmem:[%s2348 + $0x318] sm:$0xff]
    %v2449 = vld [vmem:[%s2348 + $0x320] sm:$0xff]
    %v2450 = vld [vmem:[%s2348 + $0x328] sm:$0xff]
    %v2451 = vld [vmem:[%s2348 + $0x330] sm:$0xff]
    %v2452 = vld [vmem:[%s2348 + $0x338] sm:$0xff]
    %v2453 = vld [vmem:[%s2348 + $0x340] sm:$0xff]
    %v2454 = vld [vmem:[%s2348 + $0x348] sm:$0xff]
    %v2455 = vld [vmem:[%s2348 + $0x350] sm:$0xff]
    %v2456 = vld [vmem:[%s2348 + $0x358] sm:$0xff]
    %v2457 = vsel %vm1356, %v2318, 0
    %v2459 = vsel %vm1356, %v2324, 0
    %v2461 = vsel %vm1356, %v2333, 0
    %v2463 = vsel %vm1356, %v2339, 0
    %2465 = vmatprep.subr.mxu0 %v2395
    %2466 = vmatpush1.msra.mxu0 %v2394
    %2467 = vmatprep.subr.mxu0 %v2392
    %2468 = vmatpush1.msra.mxu0 %v2391
    %2469 = vmatprep.subr.mxu0 %v2389
    %2470 = vmatpush1.msra.mxu0 %v2388
    %2471 = vmatprep.subr.mxu0 %v2386
    %2472 = vmatpush1.msra.mxu0 %v2385
    %2473 = vmatprep.subr.mxu0 %v2383
    %2474 = vmatpush1.msra.mxu0 %v2382
    %2475 = vmatprep.subr.mxu0 %v2380
    %2476 = vmatpush1.msra.mxu0 %v2379
    %2477 = vmatprep.subr.mxu0 %v2377
    %2478 = vmatpush1.msra.mxu0 %v2376
    %2479 = vmatprep.subr.mxu0 %v2374
    %2480 = vmatpush1.msra.mxu0 %v2373
    %2481 = vmatprep.subr.mxu0 %v2371
    %2482 = vmatpush1.msra.mxu0 %v2370
    %2483 = vmatprep.subr.mxu0 %v2368
    %2484 = vmatpush1.msra.mxu0 %v2367
    %2485 = vmatprep.subr.mxu0 %v2365
    %2486 = vmatpush1.msra.mxu0 %v2364
    %2487 = vmatprep.subr.mxu0 %v2362
    %2488 = vmatpush1.msra.mxu0 %v2361
    %2489 = vmatprep.subr.mxu0 %v2359
    %2490 = vmatpush1.msra.mxu0 %v2358
    %2491 = vmatprep.subr.mxu0 %v2356
    %2492 = vmatpush1.msra.mxu0 %v2355
    %2493 = vmatprep.subr.mxu0 %v2353
    %2494 = vmatpush1.msra.mxu0 %v2352
    %2495 = vmatprep.subr.mxu0 %v2350
    %2496 = vmatpush1.msra.mxu0 %v2349
    %2497 = vmatprep.subr.mxu0 %v2443
    %2498 = vmatpush2.msra.mxu0 %v2442
    %2499 = vmatprep.subr.mxu0 %v2440
    %2500 = vmatpush2.msra.mxu0 %v2439
    %2501 = vmatprep.subr.mxu0 %v2437
    %2502 = vmatpush2.msra.mxu0 %v2436
    %2503 = vmatprep.subr.mxu0 %v2434
    %2504 = vmatpush2.msra.mxu0 %v2433
    %2505 = vmatprep.subr.mxu0 %v2431
    %2506 = vmatpush2.msra.mxu0 %v2430
    %2507 = vmatprep.subr.mxu0 %v2428
    %2508 = vmatpush2.msra.mxu0 %v2427
    %2509 = vmatprep.subr.mxu0 %v2425
    %2510 = vmatpush2.msra.mxu0 %v2424
    %2511 = vmatprep.subr.mxu0 %v2422
    %2512 = vmatpush2.msra.mxu0 %v2421
    %2513 = vmatprep.subr.mxu0 %v2419
    %2514 = vmatpush2.msra.mxu0 %v2418
    %2515 = vmatprep.subr.mxu0 %v2416
    %2516 = vmatpush2.msra.mxu0 %v2415
    %2517 = vmatprep.subr.mxu0 %v2413
    %2518 = vmatpush2.msra.mxu0 %v2412
    %2519 = vmatprep.subr.mxu0 %v2410
    %2520 = vmatpush2.msra.mxu0 %v2409
    %2521 = vmatprep.subr.mxu0 %v2407
    %2522 = vmatpush2.msra.mxu0 %v2406
    %2523 = vmatprep.subr.mxu0 %v2404
    %2524 = vmatpush2.msra.mxu0 %v2403
    %2525 = vmatprep.subr.mxu0 %v2401
    %2526 = vmatpush2.msra.mxu0 %v2400
    %2527 = vmatprep.subr.mxu0 %v2398
    %2528 = vmatpush2.msra.mxu0 %v2397
    %2529 = vmatprep.mubr.f32.mxu0 %v2315
    %2530 = vmatmul.mubr.f32.gmra.mxu0 %v2312
    %v2531 = vpop.f32.mrf.mxu0
    %v2532 = vadd.f32 0.0, %v2531
    %v2533 = vpop.f32.mrf.mxu0
    %v2534 = vadd.f32 0.0, %v2533
    %2535 = vmatprep.mubr.f32.mxu0 %v2322
    %2536 = vmatmul.mubr.f32.gmra.mxu0 %v2320
    %v2537 = vpop.f32.mrf.mxu0
    %v2538 = vadd.f32 0.0, %v2537
    %v2539 = vpop.f32.mrf.mxu0
    %v2540 = vadd.f32 0.0, %v2539
    %2541 = vmatprep.mubr.f32.mxu0 %v2330
    %2542 = vmatmul.mubr.f32.gmra.mxu0 %v2327
    %v2543 = vpop.f32.mrf.mxu0
    %v2544 = vadd.f32 0.0, %v2543
    %v2545 = vpop.f32.mrf.mxu0
    %v2546 = vadd.f32 0.0, %v2545
    %2547 = vmatprep.mubr.f32.mxu0 %v2337
    %2548 = vmatmul.mubr.f32.gmra.mxu0 %v2335
    %v2549 = vpop.f32.mrf.mxu0
    %v2550 = vadd.f32 0.0, %v2549
    %v2551 = vpop.f32.mrf.mxu0
    %v2552 = vadd.f32 0.0, %v2551
    %2553 = vdwg.mxu0
    %2554 = vmatprep.subr.mxu0 0.0
    %2555 = vmatpush1.msra.mxu0 0.0
    %2556 = vmatprep.subr.mxu0 0.0
    %2557 = vmatpush1.msra.mxu0 0.0
    %2558 = vmatprep.subr.mxu0 0.0
    %2559 = vmatpush1.msra.mxu0 0.0
    %2560 = vmatprep.subr.mxu0 0.0
    %2561 = vmatpush1.msra.mxu0 0.0
    %2562 = vmatprep.subr.mxu0 0.0
    %2563 = vmatpush1.msra.mxu0 0.0
    %2564 = vmatprep.subr.mxu0 0.0
    %2565 = vmatpush1.msra.mxu0 0.0
    %2566 = vmatprep.subr.mxu0 0.0
    %2567 = vmatpush1.msra.mxu0 0.0
    %2568 = vmatprep.subr.mxu0 0.0
    %2569 = vmatpush1.msra.mxu0 0.0
    %2570 = vmatprep.subr.mxu0 0.0
    %2571 = vmatpush1.msra.mxu0 0.0
    %2572 = vmatprep.subr.mxu0 0.0
    %2573 = vmatpush1.msra.mxu0 0.0
    %2574 = vmatprep.subr.mxu0 0.0
    %2575 = vmatpush1.msra.mxu0 0.0
    %2576 = vmatprep.subr.mxu0 0.0
    %2577 = vmatpush1.msra.mxu0 0.0
    %2578 = vmatprep.subr.mxu0 %v2455
    %2579 = vmatpush1.msra.mxu0 %v2454
    %2580 = vmatprep.subr.mxu0 %v2452
    %2581 = vmatpush1.msra.mxu0 %v2451
    %2582 = vmatprep.subr.mxu0 %v2449
    %2583 = vmatpush1.msra.mxu0 %v2448
    %2584 = vmatprep.subr.mxu0 %v2446
    %2585 = vmatpush1.msra.mxu0 %v2445
    %2586 = vmatprep.subr.mxu0 0.0
    %2587 = vmatpush2.msra.mxu0 0.0
    %2588 = vmatprep.subr.mxu0 0.0
    %2589 = vmatpush2.msra.mxu0 0.0
    %2590 = vmatprep.subr.mxu0 0.0
    %2591 = vmatpush2.msra.mxu0 0.0
    %2592 = vmatprep.subr.mxu0 0.0
    %2593 = vmatpush2.msra.mxu0 0.0
    %2594 = vmatprep.subr.mxu0 0.0
    %2595 = vmatpush2.msra.mxu0 0.0
    %2596 = vmatprep.subr.mxu0 0.0
    %2597 = vmatpush2.msra.mxu0 0.0
    %2598 = vmatprep.subr.mxu0 0.0
    %2599 = vmatpush2.msra.mxu0 0.0
    %2600 = vmatprep.subr.mxu0 0.0
    %2601 = vmatpush2.msra.mxu0 0.0
    %2602 = vmatprep.subr.mxu0 0.0
    %2603 = vmatpush2.msra.mxu0 0.0
    %2604 = vmatprep.subr.mxu0 0.0
    %2605 = vmatpush2.msra.mxu0 0.0
    %2606 = vmatprep.subr.mxu0 0.0
    %2607 = vmatpush2.msra.mxu0 0.0
    %2608 = vmatprep.subr.mxu0 0.0
    %2609 = vmatpush2.msra.mxu0 0.0
    %2610 = vmatprep.subr.mxu0 0.0
    %2611 = vmatpush2.msra.mxu0 0.0
    %2612 = vmatprep.subr.mxu0 0.0
    %2613 = vmatpush2.msra.mxu0 0.0
    %2614 = vmatprep.subr.mxu0 0.0
    %2615 = vmatpush2.msra.mxu0 0.0
    %2616 = vmatprep.subr.mxu0 0.0
    %2617 = vmatpush2.msra.mxu0 0.0
    %2618 = vmatprep.mubr.f32.mxu0 0.0
    %2619 = vmatmul.mubr.f32.gmra.mxu0 %v2457
    %v2620 = vpop.f32.mrf.mxu0
    %v2621 = vadd.f32 %v2532, %v2620
    %v2622 = vpop.f32.mrf.mxu0
    %v2623 = vadd.f32 %v2534, %v2622
    %2624 = vmatprep.mubr.f32.mxu0 0.0
    %2625 = vmatmul.mubr.f32.gmra.mxu0 %v2459
    %v2626 = vpop.f32.mrf.mxu0
    %v2627 = vadd.f32 %v2538, %v2626
    %v2628 = vpop.f32.mrf.mxu0
    %v2629 = vadd.f32 %v2540, %v2628
    %2630 = vmatprep.mubr.f32.mxu0 0.0
    %2631 = vmatmul.mubr.f32.gmra.mxu0 %v2461
    %v2632 = vpop.f32.mrf.mxu0
    %v2633 = vadd.f32 %v2544, %v2632
    %v2634 = vpop.f32.mrf.mxu0
    %v2635 = vadd.f32 %v2546, %v2634
    %2636 = vmatprep.mubr.f32.mxu0 0.0
    %2637 = vmatmul.mubr.f32.gmra.mxu0 %v2463
    %v2638 = vpop.f32.mrf.mxu0
    %v2639 = vadd.f32 %v2550, %v2638
    %v2640 = vpop.f32.mrf.mxu0
    %v2641 = vadd.f32 %v2552, %v2640
    %2642 = vdwg.mxu0
    %2643 = vmatprep.subr.mxu0 0.0
    %2644 = vmatpush1.msra.mxu0 %v2396
    %2645 = vmatprep.subr.mxu0 0.0
    %2646 = vmatpush1.msra.mxu0 %v2393
    %2647 = vmatprep.subr.mxu0 0.0
    %2648 = vmatpush1.msra.mxu0 %v2390
    %2649 = vmatprep.subr.mxu0 0.0
    %2650 = vmatpush1.msra.mxu0 %v2387
    %2651 = vmatprep.subr.mxu0 0.0
    %2652 = vmatpush1.msra.mxu0 %v2384
    %2653 = vmatprep.subr.mxu0 0.0
    %2654 = vmatpush1.msra.mxu0 %v2381
    %2655 = vmatprep.subr.mxu0 0.0
    %2656 = vmatpush1.msra.mxu0 %v2378
    %2657 = vmatprep.subr.mxu0 0.0
    %2658 = vmatpush1.msra.mxu0 %v2375
    %2659 = vmatprep.subr.mxu0 0.0
    %2660 = vmatpush1.msra.mxu0 %v2372
    %2661 = vmatprep.subr.mxu0 0.0
    %2662 = vmatpush1.msra.mxu0 %v2369
    %2663 = vmatprep.subr.mxu0 0.0
    %2664 = vmatpush1.msra.mxu0 %v2366
    %2665 = vmatprep.subr.mxu0 0.0
    %2666 = vmatpush1.msra.mxu0 %v2363
    %2667 = vmatprep.subr.mxu0 0.0
    %2668 = vmatpush1.msra.mxu0 %v2360
    %2669 = vmatprep.subr.mxu0 0.0
    %2670 = vmatpush1.msra.mxu0 %v2357
    %2671 = vmatprep.subr.mxu0 0.0
    %2672 = vmatpush1.msra.mxu0 %v2354
    %2673 = vmatprep.subr.mxu0 0.0
    %2674 = vmatpush1.msra.mxu0 %v2351
    %2675 = vmatprep.subr.mxu0 0.0
    %2676 = vmatpush2.msra.mxu0 %v2444
    %2677 = vmatprep.subr.mxu0 0.0
    %2678 = vmatpush2.msra.mxu0 %v2441
    %2679 = vmatprep.subr.mxu0 0.0
    %2680 = vmatpush2.msra.mxu0 %v2438
    %2681 = vmatprep.subr.mxu0 0.0
    %2682 = vmatpush2.msra.mxu0 %v2435
    %2683 = vmatprep.subr.mxu0 0.0
    %2684 = vmatpush2.msra.mxu0 %v2432
    %2685 = vmatprep.subr.mxu0 0.0
    %2686 = vmatpush2.msra.mxu0 %v2429
    %2687 = vmatprep.subr.mxu0 0.0
    %2688 = vmatpush2.msra.mxu0 %v2426
    %2689 = vmatprep.subr.mxu0 0.0
    %2690 = vmatpush2.msra.mxu0 %v2423
    %2691 = vmatprep.subr.mxu0 0.0
    %2692 = vmatpush2.msra.mxu0 %v2420
    %2693 = vmatprep.subr.mxu0 0.0
    %2694 = vmatpush2.msra.mxu0 %v2417
    %2695 = vmatprep.subr.mxu0 0.0
    %2696 = vmatpush2.msra.mxu0 %v2414
    %2697 = vmatprep.subr.mxu0 0.0
    %2698 = vmatpush2.msra.mxu0 %v2411
    %2699 = vmatprep.subr.mxu0 0.0
    %2700 = vmatpush2.msra.mxu0 %v2408
    %2701 = vmatprep.subr.mxu0 0.0
    %2702 = vmatpush2.msra.mxu0 %v2405
    %2703 = vmatprep.subr.mxu0 0.0
    %2704 = vmatpush2.msra.mxu0 %v2402
    %2705 = vmatprep.subr.mxu0 0.0
    %2706 = vmatpush2.msra.mxu0 %v2399
    %2707 = vmatprep.mubr.f32.mxu0 %v2315
    %2708 = vmatmul.mubr.f32.gmra.mxu0 %v2312
    %v2709 = vpop.f32.mrf.mxu0
    %v2710 = vadd.f32 0.0, %v2709
    %v2711 = vpop.f32.mrf.mxu0
    %2712 = vmatprep.mubr.f32.mxu0 %v2322
    %2713 = vmatmul.mubr.f32.gmra.mxu0 %v2320
    %v2714 = vpop.f32.mrf.mxu0
    %v2715 = vadd.f32 0.0, %v2714
    %v2716 = vpop.f32.mrf.mxu0
    %2717 = vmatprep.mubr.f32.mxu0 %v2330
    %2718 = vmatmul.mubr.f32.gmra.mxu0 %v2327
    %v2719 = vpop.f32.mrf.mxu0
    %v2720 = vadd.f32 0.0, %v2719
    %v2721 = vpop.f32.mrf.mxu0
    %2722 = vmatprep.mubr.f32.mxu0 %v2337
    %2723 = vmatmul.mubr.f32.gmra.mxu0 %v2335
    %v2724 = vpop.f32.mrf.mxu0
    %v2725 = vadd.f32 0.0, %v2724
    %v2726 = vpop.f32.mrf.mxu0
    %2727 = vdwg.mxu0
    %2728 = vmatprep.subr.mxu0 0.0
    %2729 = vmatpush1.msra.mxu0 0.0
    %2730 = vmatprep.subr.mxu0 0.0
    %2731 = vmatpush1.msra.mxu0 0.0
    %2732 = vmatprep.subr.mxu0 0.0
    %2733 = vmatpush1.msra.mxu0 0.0
    %2734 = vmatprep.subr.mxu0 0.0
    %2735 = vmatpush1.msra.mxu0 0.0
    %2736 = vmatprep.subr.mxu0 0.0
    %2737 = vmatpush1.msra.mxu0 0.0
    %2738 = vmatprep.subr.mxu0 0.0
    %2739 = vmatpush1.msra.mxu0 0.0
    %2740 = vmatprep.subr.mxu0 0.0
    %2741 = vmatpush1.msra.mxu0 0.0
    %2742 = vmatprep.subr.mxu0 0.0
    %2743 = vmatpush1.msra.mxu0 0.0
    %2744 = vmatprep.subr.mxu0 0.0
    %2745 = vmatpush1.msra.mxu0 0.0
    %2746 = vmatprep.subr.mxu0 0.0
    %2747 = vmatpush1.msra.mxu0 0.0
    %2748 = vmatprep.subr.mxu0 0.0
    %2749 = vmatpush1.msra.mxu0 0.0
    %2750 = vmatprep.subr.mxu0 0.0
    %2751 = vmatpush1.msra.mxu0 0.0
    %2752 = vmatprep.subr.mxu0 0.0
    %2753 = vmatpush1.msra.mxu0 %v2456
    %2754 = vmatprep.subr.mxu0 0.0
    %2755 = vmatpush1.msra.mxu0 %v2453
    %2756 = vmatprep.subr.mxu0 0.0
    %2757 = vmatpush1.msra.mxu0 %v2450
    %2758 = vmatprep.subr.mxu0 0.0
    %2759 = vmatpush1.msra.mxu0 %v2447
    %2760 = vmatprep.subr.mxu0 0.0
    %2761 = vmatpush2.msra.mxu0 0.0
    %2762 = vmatprep.subr.mxu0 0.0
    %2763 = vmatpush2.msra.mxu0 0.0
    %2764 = vmatprep.subr.mxu0 0.0
    %2765 = vmatpush2.msra.mxu0 0.0
    %2766 = vmatprep.subr.mxu0 0.0
    %2767 = vmatpush2.msra.mxu0 0.0
    %2768 = vmatprep.subr.mxu0 0.0
    %2769 = vmatpush2.msra.mxu0 0.0
    %2770 = vmatprep.subr.mxu0 0.0
    %2771 = vmatpush2.msra.mxu0 0.0
    %2772 = vmatprep.subr.mxu0 0.0
    %2773 = vmatpush2.msra.mxu0 0.0
    %2774 = vmatprep.subr.mxu0 0.0
    %2775 = vmatpush2.msra.mxu0 0.0
    %2776 = vmatprep.subr.mxu0 0.0
    %2777 = vmatpush2.msra.mxu0 0.0
    %2778 = vmatprep.subr.mxu0 0.0
    %2779 = vmatpush2.msra.mxu0 0.0
    %2780 = vmatprep.subr.mxu0 0.0
    %2781 = vmatpush2.msra.mxu0 0.0
    %2782 = vmatprep.subr.mxu0 0.0
    %2783 = vmatpush2.msra.mxu0 0.0
    %2784 = vmatprep.subr.mxu0 0.0
    %2785 = vmatpush2.msra.mxu0 0.0
    %2786 = vmatprep.subr.mxu0 0.0
    %2787 = vmatpush2.msra.mxu0 0.0
    %2788 = vmatprep.subr.mxu0 0.0
    %2789 = vmatpush2.msra.mxu0 0.0
    %2790 = vmatprep.subr.mxu0 0.0
    %2791 = vmatpush2.msra.mxu0 0.0
    %2792 = vmatprep.mubr.f32.mxu0 0.0
    %2793 = vmatmul.mubr.f32.gmra.mxu0 %v2457
    %v2794 = vpop.f32.mrf.mxu0
    %v2795 = vadd.f32 %v2710, %v2794
    %v2796 = vpop.f32.mrf.mxu0
    %2797 = vmatprep.mubr.f32.mxu0 0.0
    %2798 = vmatmul.mubr.f32.gmra.mxu0 %v2459
    %v2799 = vpop.f32.mrf.mxu0
    %v2800 = vadd.f32 %v2715, %v2799
    %v2801 = vpop.f32.mrf.mxu0
    %2802 = vmatprep.mubr.f32.mxu0 0.0
    %2803 = vmatmul.mubr.f32.gmra.mxu0 %v2461
    %v2804 = vpop.f32.mrf.mxu0
    %v2805 = vadd.f32 %v2720, %v2804
    %v2806 = vpop.f32.mrf.mxu0
    %2807 = vmatprep.mubr.f32.mxu0 0.0
    %2808 = vmatmul.mubr.f32.gmra.mxu0 %v2463
    %v2809 = vpop.f32.mrf.mxu0
    %v2810 = vadd.f32 %v2725, %v2809
    %v2811 = vpop.f32.mrf.mxu0
    %2812 = vdwg.mxu0
    %v2814 = vsel %vm1356, %v2161, 0
    %v2816 = vsel %vm1356, %v2164, 0
    %v2819 = vsel %vm1356, %v2167, 0
    %v2821 = vsel %vm1356, %v2170, 0
    %2823 = vmatprep.subr.mxu0 %v2217
    %2824 = vmatpush1.msra.mxu0 %v2216
    %2825 = vmatprep.subr.mxu0 %v2214
    %2826 = vmatpush1.msra.mxu0 %v2213
    %2827 = vmatprep.subr.mxu0 %v2211
    %2828 = vmatpush1.msra.mxu0 %v2210
    %2829 = vmatprep.subr.mxu0 %v2208
    %2830 = vmatpush1.msra.mxu0 %v2207
    %2831 = vmatprep.subr.mxu0 %v2205
    %2832 = vmatpush1.msra.mxu0 %v2204
    %2833 = vmatprep.subr.mxu0 %v2202
    %2834 = vmatpush1.msra.mxu0 %v2201
    %2835 = vmatprep.subr.mxu0 %v2199
    %2836 = vmatpush1.msra.mxu0 %v2198
    %2837 = vmatprep.subr.mxu0 %v2196
    %2838 = vmatpush1.msra.mxu0 %v2195
    %2839 = vmatprep.subr.mxu0 %v2193
    %2840 = vmatpush1.msra.mxu0 %v2192
    %2841 = vmatprep.subr.mxu0 %v2190
    %2842 = vmatpush1.msra.mxu0 %v2189
    %2843 = vmatprep.subr.mxu0 %v2187
    %2844 = vmatpush1.msra.mxu0 %v2186
    %2845 = vmatprep.subr.mxu0 %v2184
    %2846 = vmatpush1.msra.mxu0 %v2183
    %2847 = vmatprep.subr.mxu0 %v2181
    %2848 = vmatpush1.msra.mxu0 %v2180
    %2849 = vmatprep.subr.mxu0 %v2178
    %2850 = vmatpush1.msra.mxu0 %v2177
    %2851 = vmatprep.subr.mxu0 %v2175
    %2852 = vmatpush1.msra.mxu0 %v2174
    %2853 = vmatprep.subr.mxu0 %v2172
    %2854 = vmatpush1.msra.mxu0 %v2171
    %2855 = vmatprep.subr.mxu0 %v2265
    %2856 = vmatpush2.msra.mxu0 %v2264
    %2857 = vmatprep.subr.mxu0 %v2262
    %2858 = vmatpush2.msra.mxu0 %v2261
    %2859 = vmatprep.subr.mxu0 %v2259
    %2860 = vmatpush2.msra.mxu0 %v2258
    %2861 = vmatprep.subr.mxu0 %v2256
    %2862 = vmatpush2.msra.mxu0 %v2255
    %2863 = vmatprep.subr.mxu0 %v2253
    %2864 = vmatpush2.msra.mxu0 %v2252
    %2865 = vmatprep.subr.mxu0 %v2250
    %2866 = vmatpush2.msra.mxu0 %v2249
    %2867 = vmatprep.subr.mxu0 %v2247
    %2868 = vmatpush2.msra.mxu0 %v2246
    %2869 = vmatprep.subr.mxu0 %v2244
    %2870 = vmatpush2.msra.mxu0 %v2243
    %2871 = vmatprep.subr.mxu0 %v2241
    %2872 = vmatpush2.msra.mxu0 %v2240
    %2873 = vmatprep.subr.mxu0 %v2238
    %2874 = vmatpush2.msra.mxu0 %v2237
    %2875 = vmatprep.subr.mxu0 %v2235
    %2876 = vmatpush2.msra.mxu0 %v2234
    %2877 = vmatprep.subr.mxu0 %v2232
    %2878 = vmatpush2.msra.mxu0 %v2231
    %2879 = vmatprep.subr.mxu0 %v2229
    %2880 = vmatpush2.msra.mxu0 %v2228
    %2881 = vmatprep.subr.mxu0 %v2226
    %2882 = vmatpush2.msra.mxu0 %v2225
    %2883 = vmatprep.subr.mxu0 %v2223
    %2884 = vmatpush2.msra.mxu0 %v2222
    %2885 = vmatprep.subr.mxu0 %v2220
    %2886 = vmatpush2.msra.mxu0 %v2219
    %2887 = vmatprep.mubr.f32.mxu0 %v2160
    %2888 = vmatmul.mubr.f32.gmra.mxu0 %v2159
    %v2889 = vpop.f32.mrf.mxu0
    %v2890 = vadd.f32 %v2621, %v2889
    %v2891 = vpop.f32.mrf.mxu0
    %v2892 = vadd.f32 %v2623, %v2891
    %2893 = vmatprep.mubr.f32.mxu0 %v2163
    %2894 = vmatmul.mubr.f32.gmra.mxu0 %v2162
    %v2895 = vpop.f32.mrf.mxu0
    %v2896 = vadd.f32 %v2627, %v2895
    %v2897 = vpop.f32.mrf.mxu0
    %v2898 = vadd.f32 %v2629, %v2897
    %2899 = vmatprep.mubr.f32.mxu0 %v2166
    %2900 = vmatmul.mubr.f32.gmra.mxu0 %v2165
    %v2901 = vpop.f32.mrf.mxu0
    %v2902 = vadd.f32 %v2633, %v2901
    %v2903 = vpop.f32.mrf.mxu0
    %v2904 = vadd.f32 %v2635, %v2903
    %2905 = vmatprep.mubr.f32.mxu0 %v2169
    %2906 = vmatmul.mubr.f32.gmra.mxu0 %v2168
    %v2907 = vpop.f32.mrf.mxu0
    %v2908 = vadd.f32 %v2639, %v2907
    %v2909 = vpop.f32.mrf.mxu0
    %v2910 = vadd.f32 %v2641, %v2909
    %2911 = vdwg.mxu0
    %2912 = vmatprep.subr.mxu0 0.0
    %2913 = vmatpush1.msra.mxu0 0.0
    %2914 = vmatprep.subr.mxu0 0.0
    %2915 = vmatpush1.msra.mxu0 0.0
    %2916 = vmatprep.subr.mxu0 0.0
    %2917 = vmatpush1.msra.mxu0 0.0
    %2918 = vmatprep.subr.mxu0 0.0
    %2919 = vmatpush1.msra.mxu0 0.0
    %2920 = vmatprep.subr.mxu0 0.0
    %2921 = vmatpush1.msra.mxu0 0.0
    %2922 = vmatprep.subr.mxu0 0.0
    %2923 = vmatpush1.msra.mxu0 0.0
    %2924 = vmatprep.subr.mxu0 0.0
    %2925 = vmatpush1.msra.mxu0 0.0
    %2926 = vmatprep.subr.mxu0 0.0
    %2927 = vmatpush1.msra.mxu0 0.0
    %2928 = vmatprep.subr.mxu0 0.0
    %2929 = vmatpush1.msra.mxu0 0.0
    %2930 = vmatprep.subr.mxu0 0.0
    %2931 = vmatpush1.msra.mxu0 0.0
    %2932 = vmatprep.subr.mxu0 0.0
    %2933 = vmatpush1.msra.mxu0 0.0
    %2934 = vmatprep.subr.mxu0 0.0
    %2935 = vmatpush1.msra.mxu0 0.0
    %2936 = vmatprep.subr.mxu0 %v2277
    %2937 = vmatpush1.msra.mxu0 %v2276
    %2938 = vmatprep.subr.mxu0 %v2274
    %2939 = vmatpush1.msra.mxu0 %v2273
    %2940 = vmatprep.subr.mxu0 %v2271
    %2941 = vmatpush1.msra.mxu0 %v2270
    %2942 = vmatprep.subr.mxu0 %v2268
    %2943 = vmatpush1.msra.mxu0 %v2267
    %2944 = vmatprep.subr.mxu0 0.0
    %2945 = vmatpush2.msra.mxu0 0.0
    %2946 = vmatprep.subr.mxu0 0.0
    %2947 = vmatpush2.msra.mxu0 0.0
    %2948 = vmatprep.subr.mxu0 0.0
    %2949 = vmatpush2.msra.mxu0 0.0
    %2950 = vmatprep.subr.mxu0 0.0
    %2951 = vmatpush2.msra.mxu0 0.0
    %2952 = vmatprep.subr.mxu0 0.0
    %2953 = vmatpush2.msra.mxu0 0.0
    %2954 = vmatprep.subr.mxu0 0.0
    %2955 = vmatpush2.msra.mxu0 0.0
    %2956 = vmatprep.subr.mxu0 0.0
    %2957 = vmatpush2.msra.mxu0 0.0
    %2958 = vmatprep.subr.mxu0 0.0
    %2959 = vmatpush2.msra.mxu0 0.0
    %2960 = vmatprep.subr.mxu0 0.0
    %2961 = vmatpush2.msra.mxu0 0.0
    %2962 = vmatprep.subr.mxu0 0.0
    %2963 = vmatpush2.msra.mxu0 0.0
    %2964 = vmatprep.subr.mxu0 0.0
    %2965 = vmatpush2.msra.mxu0 0.0
    %2966 = vmatprep.subr.mxu0 0.0
    %2967 = vmatpush2.msra.mxu0 0.0
    %2968 = vmatprep.subr.mxu0 0.0
    %2969 = vmatpush2.msra.mxu0 0.0
    %2970 = vmatprep.subr.mxu0 0.0
    %2971 = vmatpush2.msra.mxu0 0.0
    %2972 = vmatprep.subr.mxu0 0.0
    %2973 = vmatpush2.msra.mxu0 0.0
    %2974 = vmatprep.subr.mxu0 0.0
    %2975 = vmatpush2.msra.mxu0 0.0
    %2976 = vmatprep.mubr.f32.mxu0 0.0
    %2977 = vmatmul.mubr.f32.gmra.mxu0 %v2814
    %v2978 = vpop.f32.mrf.mxu0
    %v2979 = vadd.f32 %v2890, %v2978
    %v2980 = vpop.f32.mrf.mxu0
    %v2981 = vadd.f32 %v2892, %v2980
    %2982 = vmatprep.mubr.f32.mxu0 0.0
    %2983 = vmatmul.mubr.f32.gmra.mxu0 %v2816
    %v2984 = vpop.f32.mrf.mxu0
    %v2985 = vadd.f32 %v2896, %v2984
    %v2986 = vpop.f32.mrf.mxu0
    %v2987 = vadd.f32 %v2898, %v2986
    %2988 = vmatprep.mubr.f32.mxu0 0.0
    %2989 = vmatmul.mubr.f32.gmra.mxu0 %v2819
    %v2990 = vpop.f32.mrf.mxu0
    %v2991 = vadd.f32 %v2902, %v2990
    %v2992 = vpop.f32.mrf.mxu0
    %v2993 = vadd.f32 %v2904, %v2992
    %2994 = vmatprep.mubr.f32.mxu0 0.0
    %2995 = vmatmul.mubr.f32.gmra.mxu0 %v2821
    %v2996 = vpop.f32.mrf.mxu0
    %v2997 = vadd.f32 %v2908, %v2996
    %v2998 = vpop.f32.mrf.mxu0
    %v2999 = vadd.f32 %v2910, %v2998
    %3000 = vdwg.mxu0
    %3001 = vmatprep.subr.mxu0 0.0
    %3002 = vmatpush1.msra.mxu0 %v2218
    %3003 = vmatprep.subr.mxu0 0.0
    %3004 = vmatpush1.msra.mxu0 %v2215
    %3005 = vmatprep.subr.mxu0 0.0
    %3006 = vmatpush1.msra.mxu0 %v2212
    %3007 = vmatprep.subr.mxu0 0.0
    %3008 = vmatpush1.msra.mxu0 %v2209
    %3009 = vmatprep.subr.mxu0 0.0
    %3010 = vmatpush1.msra.mxu0 %v2206
    %3011 = vmatprep.subr.mxu0 0.0
    %3012 = vmatpush1.msra.mxu0 %v2203
    %3013 = vmatprep.subr.mxu0 0.0
    %3014 = vmatpush1.msra.mxu0 %v2200
    %3015 = vmatprep.subr.mxu0 0.0
    %3016 = vmatpush1.msra.mxu0 %v2197
    %3017 = vmatprep.subr.mxu0 0.0
    %3018 = vmatpush1.msra.mxu0 %v2194
    %3019 = vmatprep.subr.mxu0 0.0
    %3020 = vmatpush1.msra.mxu0 %v2191
    %3021 = vmatprep.subr.mxu0 0.0
    %3022 = vmatpush1.msra.mxu0 %v2188
    %3023 = vmatprep.subr.mxu0 0.0
    %3024 = vmatpush1.msra.mxu0 %v2185
    %3025 = vmatprep.subr.mxu0 0.0
    %3026 = vmatpush1.msra.mxu0 %v2182
    %3027 = vmatprep.subr.mxu0 0.0
    %3028 = vmatpush1.msra.mxu0 %v2179
    %3029 = vmatprep.subr.mxu0 0.0
    %3030 = vmatpush1.msra.mxu0 %v2176
    %3031 = vmatprep.subr.mxu0 0.0
    %3032 = vmatpush1.msra.mxu0 %v2173
    %3033 = vmatprep.subr.mxu0 0.0
    %3034 = vmatpush2.msra.mxu0 %v2266
    %3035 = vmatprep.subr.mxu0 0.0
    %3036 = vmatpush2.msra.mxu0 %v2263
    %3037 = vmatprep.subr.mxu0 0.0
    %3038 = vmatpush2.msra.mxu0 %v2260
    %3039 = vmatprep.subr.mxu0 0.0
    %3040 = vmatpush2.msra.mxu0 %v2257
    %3041 = vmatprep.subr.mxu0 0.0
    %3042 = vmatpush2.msra.mxu0 %v2254
    %3043 = vmatprep.subr.mxu0 0.0
    %3044 = vmatpush2.msra.mxu0 %v2251
    %3045 = vmatprep.subr.mxu0 0.0
    %3046 = vmatpush2.msra.mxu0 %v2248
    %3047 = vmatprep.subr.mxu0 0.0
    %3048 = vmatpush2.msra.mxu0 %v2245
    %3049 = vmatprep.subr.mxu0 0.0
    %3050 = vmatpush2.msra.mxu0 %v2242
    %3051 = vmatprep.subr.mxu0 0.0
    %3052 = vmatpush2.msra.mxu0 %v2239
    %3053 = vmatprep.subr.mxu0 0.0
    %3054 = vmatpush2.msra.mxu0 %v2236
    %3055 = vmatprep.subr.mxu0 0.0
    %3056 = vmatpush2.msra.mxu0 %v2233
    %3057 = vmatprep.subr.mxu0 0.0
    %3058 = vmatpush2.msra.mxu0 %v2230
    %3059 = vmatprep.subr.mxu0 0.0
    %3060 = vmatpush2.msra.mxu0 %v2227
    %3061 = vmatprep.subr.mxu0 0.0
    %3062 = vmatpush2.msra.mxu0 %v2224
    %3063 = vmatprep.subr.mxu0 0.0
    %3064 = vmatpush2.msra.mxu0 %v2221
    %3065 = vmatprep.mubr.f32.mxu0 %v2160
    %3066 = vmatmul.mubr.f32.gmra.mxu0 %v2159
    %v3067 = vpop.f32.mrf.mxu0
    %v3068 = vadd.f32 %v2795, %v3067
    %v3069 = vpop.f32.mrf.mxu0
    %3070 = vmatprep.mubr.f32.mxu0 %v2163
    %3071 = vmatmul.mubr.f32.gmra.mxu0 %v2162
    %v3072 = vpop.f32.mrf.mxu0
    %v3073 = vadd.f32 %v2800, %v3072
    %v3074 = vpop.f32.mrf.mxu0
    %3075 = vmatprep.mubr.f32.mxu0 %v2166
    %3076 = vmatmul.mubr.f32.gmra.mxu0 %v2165
    %v3077 = vpop.f32.mrf.mxu0
    %v3078 = vadd.f32 %v2805, %v3077
    %v3079 = vpop.f32.mrf.mxu0
    %3080 = vmatprep.mubr.f32.mxu0 %v2169
    %3081 = vmatmul.mubr.f32.gmra.mxu0 %v2168
    %v3082 = vpop.f32.mrf.mxu0
    %v3083 = vadd.f32 %v2810, %v3082
    %v3084 = vpop.f32.mrf.mxu0
    %3085 = vdwg.mxu0
    %3086 = vmatprep.subr.mxu0 0.0
    %3087 = vmatpush1.msra.mxu0 0.0
    %3088 = vmatprep.subr.mxu0 0.0
    %3089 = vmatpush1.msra.mxu0 0.0
    %3090 = vmatprep.subr.mxu0 0.0
    %3091 = vmatpush1.msra.mxu0 0.0
    %3092 = vmatprep.subr.mxu0 0.0
    %3093 = vmatpush1.msra.mxu0 0.0
    %3094 = vmatprep.subr.mxu0 0.0
    %3095 = vmatpush1.msra.mxu0 0.0
    %3096 = vmatprep.subr.mxu0 0.0
    %3097 = vmatpush1.msra.mxu0 0.0
    %3098 = vmatprep.subr.mxu0 0.0
    %3099 = vmatpush1.msra.mxu0 0.0
    %3100 = vmatprep.subr.mxu0 0.0
    %3101 = vmatpush1.msra.mxu0 0.0
    %3102 = vmatprep.subr.mxu0 0.0
    %3103 = vmatpush1.msra.mxu0 0.0
    %3104 = vmatprep.subr.mxu0 0.0
    %3105 = vmatpush1.msra.mxu0 0.0
    %3106 = vmatprep.subr.mxu0 0.0
    %3107 = vmatpush1.msra.mxu0 0.0
    %3108 = vmatprep.subr.mxu0 0.0
    %3109 = vmatpush1.msra.mxu0 0.0
    %3110 = vmatprep.subr.mxu0 0.0
    %3111 = vmatpush1.msra.mxu0 %v2278
    %3112 = vmatprep.subr.mxu0 0.0
    %3113 = vmatpush1.msra.mxu0 %v2275
    %3114 = vmatprep.subr.mxu0 0.0
    %3115 = vmatpush1.msra.mxu0 %v2272
    %3116 = vmatprep.subr.mxu0 0.0
    %3117 = vmatpush1.msra.mxu0 %v2269
    %3118 = vmatprep.subr.mxu0 0.0
    %3119 = vmatpush2.msra.mxu0 0.0
    %3120 = vmatprep.subr.mxu0 0.0
    %3121 = vmatpush2.msra.mxu0 0.0
    %3122 = vmatprep.subr.mxu0 0.0
    %3123 = vmatpush2.msra.mxu0 0.0
    %3124 = vmatprep.subr.mxu0 0.0
    %3125 = vmatpush2.msra.mxu0 0.0
    %3126 = vmatprep.subr.mxu0 0.0
    %3127 = vmatpush2.msra.mxu0 0.0
    %3128 = vmatprep.subr.mxu0 0.0
    %3129 = vmatpush2.msra.mxu0 0.0
    %3130 = vmatprep.subr.mxu0 0.0
    %3131 = vmatpush2.msra.mxu0 0.0
    %3132 = vmatprep.subr.mxu0 0.0
    %3133 = vmatpush2.msra.mxu0 0.0
    %3134 = vmatprep.subr.mxu0 0.0
    %3135 = vmatpush2.msra.mxu0 0.0
    %3136 = vmatprep.subr.mxu0 0.0
    %3137 = vmatpush2.msra.mxu0 0.0
    %3138 = vmatprep.subr.mxu0 0.0
    %3139 = vmatpush2.msra.mxu0 0.0
    %3140 = vmatprep.subr.mxu0 0.0
    %3141 = vmatpush2.msra.mxu0 0.0
    %3142 = vmatprep.subr.mxu0 0.0
    %3143 = vmatpush2.msra.mxu0 0.0
    %3144 = vmatprep.subr.mxu0 0.0
    %3145 = vmatpush2.msra.mxu0 0.0
    %3146 = vmatprep.subr.mxu0 0.0
    %3147 = vmatpush2.msra.mxu0 0.0
    %3148 = vmatprep.subr.mxu0 0.0
    %3149 = vmatpush2.msra.mxu0 0.0
    %3150 = vmatprep.mubr.f32.mxu0 0.0
    %3151 = vmatmul.mubr.f32.gmra.mxu0 %v2814
    %v3152 = vpop.f32.mrf.mxu0
    %v3153 = vadd.f32 %v3068, %v3152
    %v3154 = vpop.f32.mrf.mxu0
    %3155 = vmatprep.mubr.f32.mxu0 0.0
    %3156 = vmatmul.mubr.f32.gmra.mxu0 %v2816
    %v3157 = vpop.f32.mrf.mxu0
    %v3158 = vadd.f32 %v3073, %v3157
    %v3159 = vpop.f32.mrf.mxu0
    %3160 = vmatprep.mubr.f32.mxu0 0.0
    %3161 = vmatmul.mubr.f32.gmra.mxu0 %v2819
    %v3162 = vpop.f32.mrf.mxu0
    %v3163 = vadd.f32 %v3078, %v3162
    %v3164 = vpop.f32.mrf.mxu0
    %3165 = vmatprep.mubr.f32.mxu0 0.0
    %3166 = vmatmul.mubr.f32.gmra.mxu0 %v2821
    %v3167 = vpop.f32.mrf.mxu0
    %v3168 = vadd.f32 %v3083, %v3167
    %v3169 = vpop.f32.mrf.mxu0
    %3170 = vdwg.mxu0
    %v3171 = vld [vmem:[#allocation3] sm:$0xfc]
    %v3172 = vld [vmem:[#allocation3 + $0x8] sm:$0xfc]
    %v3173 = vld [vmem:[#allocation3 + $0x10] sm:$0xfc]
    %v3174 = vld [vmem:[#allocation3 + $0x30] sm:$0x3]
    %v3175 = vld [vmem:[#allocation3 + $0x38] sm:$0x3]
    %v3176 = vld [vmem:[#allocation3 + $0x40] sm:$0x3]
    %v3177 = vld [vmem:[#allocation3 + $0x48] sm:$0xfc]
    %v3178 = vld [vmem:[#allocation3 + $0x50] sm:$0xfc]
    %v3179 = vld [vmem:[#allocation3 + $0x58] sm:$0xfc]
    %v3180 = vld [vmem:[#allocation3 + $0x78] sm:$0x3]
    %v3181 = vld [vmem:[#allocation3 + $0x80] sm:$0x3]
    %v3182 = vld [vmem:[#allocation3 + $0x88] sm:$0x3]
    %vm3195 = vcmask 1045504
    %v3196 = vrot.slane %v3171, 2
    %v3197 = vrot.slane %v2162, 2
    %v3198 = vsel %vm3195, %v3196, %v3197
    %v3199 = vrot.slane %v3172, 2
    %v3200 = vrot.slane %v2163, 2
    %v3201 = vsel %vm3195, %v3199, %v3200
    %v3202 = vrot.slane %v3173, 2
    %v3203 = vrot.slane %v2164, 2
    %v3204 = vsel %vm3195, %v3202, %v3203
    %v3205 = vrot.slane %v3174, 2
    %v3206 = vsel %vm3195, %v3197, %v3205
    %v3207 = vrot.slane %v3175, 2
    %v3208 = vsel %vm3195, %v3200, %v3207
    %v3209 = vrot.slane %v3176, 2
    %v3210 = vsel %vm3195, %v3203, %v3209
    %v3211 = vrot.slane %v3177, 2
    %v3212 = vrot.slane %v2168, 2
    %v3213 = vsel %vm3195, %v3211, %v3212
    %v3214 = vrot.slane %v3178, 2
    %v3215 = vrot.slane %v2169, 2
    %v3216 = vsel %vm3195, %v3214, %v3215
    %v3217 = vrot.slane %v3179, 2
    %v3218 = vrot.slane %v2170, 2
    %v3219 = vsel %vm3195, %v3217, %v3218
    %v3220 = vrot.slane %v3180, 2
    %v3221 = vsel %vm3195, %v3212, %v3220
    %v3222 = vrot.slane %v3181, 2
    %v3223 = vsel %vm3195, %v3215, %v3222
    %v3224 = vrot.slane %v3182, 2
    %v3225 = vsel %vm3195, %v3218, %v3224
    %s3234 = scalar_lea.vmem [#allocation20], 1728
    %v3235 = vld [vmem:[%s3234] sm:$0xff]
    %v3236 = vld [vmem:[%s3234 + $0x8] sm:$0xff]
    %v3237 = vld [vmem:[%s3234 + $0x10] sm:$0xff]
    %v3238 = vld [vmem:[%s3234 + $0x18] sm:$0xff]
    %v3239 = vld [vmem:[%s3234 + $0x20] sm:$0xff]
    %v3240 = vld [vmem:[%s3234 + $0x28] sm:$0xff]
    %v3241 = vld [vmem:[%s3234 + $0x30] sm:$0xff]
    %v3242 = vld [vmem:[%s3234 + $0x38] sm:$0xff]
    %v3243 = vld [vmem:[%s3234 + $0x40] sm:$0xff]
    %v3244 = vld [vmem:[%s3234 + $0x48] sm:$0xff]
    %v3245 = vld [vmem:[%s3234 + $0x50] sm:$0xff]
    %v3246 = vld [vmem:[%s3234 + $0x58] sm:$0xff]
    %v3247 = vld [vmem:[%s3234 + $0x60] sm:$0xff]
    %v3248 = vld [vmem:[%s3234 + $0x68] sm:$0xff]
    %v3249 = vld [vmem:[%s3234 + $0x70] sm:$0xff]
    %v3250 = vld [vmem:[%s3234 + $0x78] sm:$0xff]
    %v3251 = vld [vmem:[%s3234 + $0x80] sm:$0xff]
    %v3252 = vld [vmem:[%s3234 + $0x88] sm:$0xff]
    %v3253 = vld [vmem:[%s3234 + $0x90] sm:$0xff]
    %v3254 = vld [vmem:[%s3234 + $0x98] sm:$0xff]
    %v3255 = vld [vmem:[%s3234 + $0xa0] sm:$0xff]
    %v3256 = vld [vmem:[%s3234 + $0xa8] sm:$0xff]
    %v3257 = vld [vmem:[%s3234 + $0xb0] sm:$0xff]
    %v3258 = vld [vmem:[%s3234 + $0xb8] sm:$0xff]
    %v3259 = vld [vmem:[%s3234 + $0xc0] sm:$0xff]
    %v3260 = vld [vmem:[%s3234 + $0xc8] sm:$0xff]
    %v3261 = vld [vmem:[%s3234 + $0xd0] sm:$0xff]
    %v3262 = vld [vmem:[%s3234 + $0xd8] sm:$0xff]
    %v3263 = vld [vmem:[%s3234 + $0xe0] sm:$0xff]
    %v3264 = vld [vmem:[%s3234 + $0xe8] sm:$0xff]
    %v3265 = vld [vmem:[%s3234 + $0xf0] sm:$0xff]
    %v3266 = vld [vmem:[%s3234 + $0xf8] sm:$0xff]
    %v3267 = vld [vmem:[%s3234 + $0x100] sm:$0xff]
    %v3268 = vld [vmem:[%s3234 + $0x108] sm:$0xff]
    %v3269 = vld [vmem:[%s3234 + $0x110] sm:$0xff]
    %v3270 = vld [vmem:[%s3234 + $0x118] sm:$0xff]
    %v3271 = vld [vmem:[%s3234 + $0x120] sm:$0xff]
    %v3272 = vld [vmem:[%s3234 + $0x128] sm:$0xff]
    %v3273 = vld [vmem:[%s3234 + $0x130] sm:$0xff]
    %v3274 = vld [vmem:[%s3234 + $0x138] sm:$0xff]
    %v3275 = vld [vmem:[%s3234 + $0x140] sm:$0xff]
    %v3276 = vld [vmem:[%s3234 + $0x148] sm:$0xff]
    %v3277 = vld [vmem:[%s3234 + $0x150] sm:$0xff]
    %v3278 = vld [vmem:[%s3234 + $0x158] sm:$0xff]
    %v3279 = vld [vmem:[%s3234 + $0x160] sm:$0xff]
    %v3280 = vld [vmem:[%s3234 + $0x168] sm:$0xff]
    %v3281 = vld [vmem:[%s3234 + $0x170] sm:$0xff]
    %v3282 = vld [vmem:[%s3234 + $0x178] sm:$0xff]
    %v3283 = vld [vmem:[%s3234 + $0x180] sm:$0xff]
    %v3284 = vld [vmem:[%s3234 + $0x188] sm:$0xff]
    %v3285 = vld [vmem:[%s3234 + $0x190] sm:$0xff]
    %v3286 = vld [vmem:[%s3234 + $0x198] sm:$0xff]
    %v3287 = vld [vmem:[%s3234 + $0x1a0] sm:$0xff]
    %v3288 = vld [vmem:[%s3234 + $0x1a8] sm:$0xff]
    %v3289 = vld [vmem:[%s3234 + $0x1b0] sm:$0xff]
    %v3290 = vld [vmem:[%s3234 + $0x1b8] sm:$0xff]
    %v3291 = vld [vmem:[%s3234 + $0x1c0] sm:$0xff]
    %v3292 = vld [vmem:[%s3234 + $0x1c8] sm:$0xff]
    %v3293 = vld [vmem:[%s3234 + $0x1d0] sm:$0xff]
    %v3294 = vld [vmem:[%s3234 + $0x1d8] sm:$0xff]
    %v3295 = vld [vmem:[%s3234 + $0x1e0] sm:$0xff]
    %v3296 = vld [vmem:[%s3234 + $0x1e8] sm:$0xff]
    %v3297 = vld [vmem:[%s3234 + $0x1f0] sm:$0xff]
    %v3298 = vld [vmem:[%s3234 + $0x1f8] sm:$0xff]
    %v3299 = vld [vmem:[%s3234 + $0x200] sm:$0xff]
    %v3300 = vld [vmem:[%s3234 + $0x208] sm:$0xff]
    %v3301 = vld [vmem:[%s3234 + $0x210] sm:$0xff]
    %v3302 = vld [vmem:[%s3234 + $0x218] sm:$0xff]
    %v3303 = vld [vmem:[%s3234 + $0x220] sm:$0xff]
    %v3304 = vld [vmem:[%s3234 + $0x228] sm:$0xff]
    %v3305 = vld [vmem:[%s3234 + $0x230] sm:$0xff]
    %v3306 = vld [vmem:[%s3234 + $0x238] sm:$0xff]
    %v3307 = vld [vmem:[%s3234 + $0x240] sm:$0xff]
    %v3308 = vld [vmem:[%s3234 + $0x248] sm:$0xff]
    %v3309 = vld [vmem:[%s3234 + $0x250] sm:$0xff]
    %v3310 = vld [vmem:[%s3234 + $0x258] sm:$0xff]
    %v3311 = vld [vmem:[%s3234 + $0x260] sm:$0xff]
    %v3312 = vld [vmem:[%s3234 + $0x268] sm:$0xff]
    %v3313 = vld [vmem:[%s3234 + $0x270] sm:$0xff]
    %v3314 = vld [vmem:[%s3234 + $0x278] sm:$0xff]
    %v3315 = vld [vmem:[%s3234 + $0x280] sm:$0xff]
    %v3316 = vld [vmem:[%s3234 + $0x288] sm:$0xff]
    %v3317 = vld [vmem:[%s3234 + $0x290] sm:$0xff]
    %v3318 = vld [vmem:[%s3234 + $0x298] sm:$0xff]
    %v3319 = vld [vmem:[%s3234 + $0x2a0] sm:$0xff]
    %v3320 = vld [vmem:[%s3234 + $0x2a8] sm:$0xff]
    %v3321 = vld [vmem:[%s3234 + $0x2b0] sm:$0xff]
    %v3322 = vld [vmem:[%s3234 + $0x2b8] sm:$0xff]
    %v3323 = vld [vmem:[%s3234 + $0x2c0] sm:$0xff]
    %v3324 = vld [vmem:[%s3234 + $0x2c8] sm:$0xff]
    %v3325 = vld [vmem:[%s3234 + $0x2d0] sm:$0xff]
    %v3326 = vld [vmem:[%s3234 + $0x2d8] sm:$0xff]
    %v3327 = vld [vmem:[%s3234 + $0x2e0] sm:$0xff]
    %v3328 = vld [vmem:[%s3234 + $0x2e8] sm:$0xff]
    %v3329 = vld [vmem:[%s3234 + $0x2f0] sm:$0xff]
    %v3330 = vld [vmem:[%s3234 + $0x2f8] sm:$0xff]
    %v3331 = vld [vmem:[%s3234 + $0x300] sm:$0xff]
    %v3332 = vld [vmem:[%s3234 + $0x308] sm:$0xff]
    %v3333 = vld [vmem:[%s3234 + $0x310] sm:$0xff]
    %v3334 = vld [vmem:[%s3234 + $0x318] sm:$0xff]
    %v3335 = vld [vmem:[%s3234 + $0x320] sm:$0xff]
    %v3336 = vld [vmem:[%s3234 + $0x328] sm:$0xff]
    %v3337 = vld [vmem:[%s3234 + $0x330] sm:$0xff]
    %v3338 = vld [vmem:[%s3234 + $0x338] sm:$0xff]
    %v3339 = vld [vmem:[%s3234 + $0x340] sm:$0xff]
    %v3340 = vld [vmem:[%s3234 + $0x348] sm:$0xff]
    %v3341 = vld [vmem:[%s3234 + $0x350] sm:$0xff]
    %v3342 = vld [vmem:[%s3234 + $0x358] sm:$0xff]
    %v3343 = vsel %vm1356, %v3204, 0
    %v3345 = vsel %vm1356, %v3210, 0
    %v3347 = vsel %vm1356, %v3219, 0
    %v3349 = vsel %vm1356, %v3225, 0
    %3351 = vmatprep.subr.mxu0 %v3281
    %3352 = vmatpush1.msra.mxu0 %v3280
    %3353 = vmatprep.subr.mxu0 %v3278
    %3354 = vmatpush1.msra.mxu0 %v3277
    %3355 = vmatprep.subr.mxu0 %v3275
    %3356 = vmatpush1.msra.mxu0 %v3274
    %3357 = vmatprep.subr.mxu0 %v3272
    %3358 = vmatpush1.msra.mxu0 %v3271
    %3359 = vmatprep.subr.mxu0 %v3269
    %3360 = vmatpush1.msra.mxu0 %v3268
    %3361 = vmatprep.subr.mxu0 %v3266
    %3362 = vmatpush1.msra.mxu0 %v3265
    %3363 = vmatprep.subr.mxu0 %v3263
    %3364 = vmatpush1.msra.mxu0 %v3262
    %3365 = vmatprep.subr.mxu0 %v3260
    %3366 = vmatpush1.msra.mxu0 %v3259
    %3367 = vmatprep.subr.mxu0 %v3257
    %3368 = vmatpush1.msra.mxu0 %v3256
    %3369 = vmatprep.subr.mxu0 %v3254
    %3370 = vmatpush1.msra.mxu0 %v3253
    %3371 = vmatprep.subr.mxu0 %v3251
    %3372 = vmatpush1.msra.mxu0 %v3250
    %3373 = vmatprep.subr.mxu0 %v3248
    %3374 = vmatpush1.msra.mxu0 %v3247
    %3375 = vmatprep.subr.mxu0 %v3245
    %3376 = vmatpush1.msra.mxu0 %v3244
    %3377 = vmatprep.subr.mxu0 %v3242
    %3378 = vmatpush1.msra.mxu0 %v3241
    %3379 = vmatprep.subr.mxu0 %v3239
    %3380 = vmatpush1.msra.mxu0 %v3238
    %3381 = vmatprep.subr.mxu0 %v3236
    %3382 = vmatpush1.msra.mxu0 %v3235
    %3383 = vmatprep.subr.mxu0 %v3329
    %3384 = vmatpush2.msra.mxu0 %v3328
    %3385 = vmatprep.subr.mxu0 %v3326
    %3386 = vmatpush2.msra.mxu0 %v3325
    %3387 = vmatprep.subr.mxu0 %v3323
    %3388 = vmatpush2.msra.mxu0 %v3322
    %3389 = vmatprep.subr.mxu0 %v3320
    %3390 = vmatpush2.msra.mxu0 %v3319
    %3391 = vmatprep.subr.mxu0 %v3317
    %3392 = vmatpush2.msra.mxu0 %v3316
    %3393 = vmatprep.subr.mxu0 %v3314
    %3394 = vmatpush2.msra.mxu0 %v3313
    %3395 = vmatprep.subr.mxu0 %v3311
    %3396 = vmatpush2.msra.mxu0 %v3310
    %3397 = vmatprep.subr.mxu0 %v3308
    %3398 = vmatpush2.msra.mxu0 %v3307
    %3399 = vmatprep.subr.mxu0 %v3305
    %3400 = vmatpush2.msra.mxu0 %v3304
    %3401 = vmatprep.subr.mxu0 %v3302
    %3402 = vmatpush2.msra.mxu0 %v3301
    %3403 = vmatprep.subr.mxu0 %v3299
    %3404 = vmatpush2.msra.mxu0 %v3298
    %3405 = vmatprep.subr.mxu0 %v3296
    %3406 = vmatpush2.msra.mxu0 %v3295
    %3407 = vmatprep.subr.mxu0 %v3293
    %3408 = vmatpush2.msra.mxu0 %v3292
    %3409 = vmatprep.subr.mxu0 %v3290
    %3410 = vmatpush2.msra.mxu0 %v3289
    %3411 = vmatprep.subr.mxu0 %v3287
    %3412 = vmatpush2.msra.mxu0 %v3286
    %3413 = vmatprep.subr.mxu0 %v3284
    %3414 = vmatpush2.msra.mxu0 %v3283
    %3415 = vmatprep.mubr.f32.mxu0 %v3201
    %3416 = vmatmul.mubr.f32.gmra.mxu0 %v3198
    %v3417 = vpop.f32.mrf.mxu0
    %v3418 = vadd.f32 0.0, %v3417
    %v3419 = vpop.f32.mrf.mxu0
    %v3420 = vadd.f32 0.0, %v3419
    %3421 = vmatprep.mubr.f32.mxu0 %v3208
    %3422 = vmatmul.mubr.f32.gmra.mxu0 %v3206
    %v3423 = vpop.f32.mrf.mxu0
    %v3424 = vadd.f32 0.0, %v3423
    %v3425 = vpop.f32.mrf.mxu0
    %v3426 = vadd.f32 0.0, %v3425
    %3427 = vmatprep.mubr.f32.mxu0 %v3216
    %3428 = vmatmul.mubr.f32.gmra.mxu0 %v3213
    %v3429 = vpop.f32.mrf.mxu0
    %v3430 = vadd.f32 0.0, %v3429
    %v3431 = vpop.f32.mrf.mxu0
    %v3432 = vadd.f32 0.0, %v3431
    %3433 = vmatprep.mubr.f32.mxu0 %v3223
    %3434 = vmatmul.mubr.f32.gmra.mxu0 %v3221
    %v3435 = vpop.f32.mrf.mxu0
    %v3436 = vadd.f32 0.0, %v3435
    %v3437 = vpop.f32.mrf.mxu0
    %v3438 = vadd.f32 0.0, %v3437
    %3439 = vdwg.mxu0
    %3440 = vmatprep.subr.mxu0 0.0
    %3441 = vmatpush1.msra.mxu0 0.0
    %3442 = vmatprep.subr.mxu0 0.0
    %3443 = vmatpush1.msra.mxu0 0.0
    %3444 = vmatprep.subr.mxu0 0.0
    %3445 = vmatpush1.msra.mxu0 0.0
    %3446 = vmatprep.subr.mxu0 0.0
    %3447 = vmatpush1.msra.mxu0 0.0
    %3448 = vmatprep.subr.mxu0 0.0
    %3449 = vmatpush1.msra.mxu0 0.0
    %3450 = vmatprep.subr.mxu0 0.0
    %3451 = vmatpush1.msra.mxu0 0.0
    %3452 = vmatprep.subr.mxu0 0.0
    %3453 = vmatpush1.msra.mxu0 0.0
    %3454 = vmatprep.subr.mxu0 0.0
    %3455 = vmatpush1.msra.mxu0 0.0
    %3456 = vmatprep.subr.mxu0 0.0
    %3457 = vmatpush1.msra.mxu0 0.0
    %3458 = vmatprep.subr.mxu0 0.0
    %3459 = vmatpush1.msra.mxu0 0.0
    %3460 = vmatprep.subr.mxu0 0.0
    %3461 = vmatpush1.msra.mxu0 0.0
    %3462 = vmatprep.subr.mxu0 0.0
    %3463 = vmatpush1.msra.mxu0 0.0
    %3464 = vmatprep.subr.mxu0 %v3341
    %3465 = vmatpush1.msra.mxu0 %v3340
    %3466 = vmatprep.subr.mxu0 %v3338
    %3467 = vmatpush1.msra.mxu0 %v3337
    %3468 = vmatprep.subr.mxu0 %v3335
    %3469 = vmatpush1.msra.mxu0 %v3334
    %3470 = vmatprep.subr.mxu0 %v3332
    %3471 = vmatpush1.msra.mxu0 %v3331
    %3472 = vmatprep.subr.mxu0 0.0
    %3473 = vmatpush2.msra.mxu0 0.0
    %3474 = vmatprep.subr.mxu0 0.0
    %3475 = vmatpush2.msra.mxu0 0.0
    %3476 = vmatprep.subr.mxu0 0.0
    %3477 = vmatpush2.msra.mxu0 0.0
    %3478 = vmatprep.subr.mxu0 0.0
    %3479 = vmatpush2.msra.mxu0 0.0
    %3480 = vmatprep.subr.mxu0 0.0
    %3481 = vmatpush2.msra.mxu0 0.0
    %3482 = vmatprep.subr.mxu0 0.0
    %3483 = vmatpush2.msra.mxu0 0.0
    %3484 = vmatprep.subr.mxu0 0.0
    %3485 = vmatpush2.msra.mxu0 0.0
    %3486 = vmatprep.subr.mxu0 0.0
    %3487 = vmatpush2.msra.mxu0 0.0
    %3488 = vmatprep.subr.mxu0 0.0
    %3489 = vmatpush2.msra.mxu0 0.0
    %3490 = vmatprep.subr.mxu0 0.0
    %3491 = vmatpush2.msra.mxu0 0.0
    %3492 = vmatprep.subr.mxu0 0.0
    %3493 = vmatpush2.msra.mxu0 0.0
    %3494 = vmatprep.subr.mxu0 0.0
    %3495 = vmatpush2.msra.mxu0 0.0
    %3496 = vmatprep.subr.mxu0 0.0
    %3497 = vmatpush2.msra.mxu0 0.0
    %3498 = vmatprep.subr.mxu0 0.0
    %3499 = vmatpush2.msra.mxu0 0.0
    %3500 = vmatprep.subr.mxu0 0.0
    %3501 = vmatpush2.msra.mxu0 0.0
    %3502 = vmatprep.subr.mxu0 0.0
    %3503 = vmatpush2.msra.mxu0 0.0
    %3504 = vmatprep.mubr.f32.mxu0 0.0
    %3505 = vmatmul.mubr.f32.gmra.mxu0 %v3343
    %v3506 = vpop.f32.mrf.mxu0
    %v3507 = vadd.f32 %v3418, %v3506
    %v3508 = vpop.f32.mrf.mxu0
    %v3509 = vadd.f32 %v3420, %v3508
    %3510 = vmatprep.mubr.f32.mxu0 0.0
    %3511 = vmatmul.mubr.f32.gmra.mxu0 %v3345
    %v3512 = vpop.f32.mrf.mxu0
    %v3513 = vadd.f32 %v3424, %v3512
    %v3514 = vpop.f32.mrf.mxu0
    %v3515 = vadd.f32 %v3426, %v3514
    %3516 = vmatprep.mubr.f32.mxu0 0.0
    %3517 = vmatmul.mubr.f32.gmra.mxu0 %v3347
    %v3518 = vpop.f32.mrf.mxu0
    %v3519 = vadd.f32 %v3430, %v3518
    %v3520 = vpop.f32.mrf.mxu0
    %v3521 = vadd.f32 %v3432, %v3520
    %3522 = vmatprep.mubr.f32.mxu0 0.0
    %3523 = vmatmul.mubr.f32.gmra.mxu0 %v3349
    %v3524 = vpop.f32.mrf.mxu0
    %v3525 = vadd.f32 %v3436, %v3524
    %v3526 = vpop.f32.mrf.mxu0
    %v3527 = vadd.f32 %v3438, %v3526
    %3528 = vdwg.mxu0
    %3529 = vmatprep.subr.mxu0 0.0
    %3530 = vmatpush1.msra.mxu0 %v3282
    %3531 = vmatprep.subr.mxu0 0.0
    %3532 = vmatpush1.msra.mxu0 %v3279
    %3533 = vmatprep.subr.mxu0 0.0
    %3534 = vmatpush1.msra.mxu0 %v3276
    %3535 = vmatprep.subr.mxu0 0.0
    %3536 = vmatpush1.msra.mxu0 %v3273
    %3537 = vmatprep.subr.mxu0 0.0
    %3538 = vmatpush1.msra.mxu0 %v3270
    %3539 = vmatprep.subr.mxu0 0.0
    %3540 = vmatpush1.msra.mxu0 %v3267
    %3541 = vmatprep.subr.mxu0 0.0
    %3542 = vmatpush1.msra.mxu0 %v3264
    %3543 = vmatprep.subr.mxu0 0.0
    %3544 = vmatpush1.msra.mxu0 %v3261
    %3545 = vmatprep.subr.mxu0 0.0
    %3546 = vmatpush1.msra.mxu0 %v3258
    %3547 = vmatprep.subr.mxu0 0.0
    %3548 = vmatpush1.msra.mxu0 %v3255
    %3549 = vmatprep.subr.mxu0 0.0
    %3550 = vmatpush1.msra.mxu0 %v3252
    %3551 = vmatprep.subr.mxu0 0.0
    %3552 = vmatpush1.msra.mxu0 %v3249
    %3553 = vmatprep.subr.mxu0 0.0
    %3554 = vmatpush1.msra.mxu0 %v3246
    %3555 = vmatprep.subr.mxu0 0.0
    %3556 = vmatpush1.msra.mxu0 %v3243
    %3557 = vmatprep.subr.mxu0 0.0
    %3558 = vmatpush1.msra.mxu0 %v3240
    %3559 = vmatprep.subr.mxu0 0.0
    %3560 = vmatpush1.msra.mxu0 %v3237
    %3561 = vmatprep.subr.mxu0 0.0
    %3562 = vmatpush2.msra.mxu0 %v3330
    %3563 = vmatprep.subr.mxu0 0.0
    %3564 = vmatpush2.msra.mxu0 %v3327
    %3565 = vmatprep.subr.mxu0 0.0
    %3566 = vmatpush2.msra.mxu0 %v3324
    %3567 = vmatprep.subr.mxu0 0.0
    %3568 = vmatpush2.msra.mxu0 %v3321
    %3569 = vmatprep.subr.mxu0 0.0
    %3570 = vmatpush2.msra.mxu0 %v3318
    %3571 = vmatprep.subr.mxu0 0.0
    %3572 = vmatpush2.msra.mxu0 %v3315
    %3573 = vmatprep.subr.mxu0 0.0
    %3574 = vmatpush2.msra.mxu0 %v3312
    %3575 = vmatprep.subr.mxu0 0.0
    %3576 = vmatpush2.msra.mxu0 %v3309
    %3577 = vmatprep.subr.mxu0 0.0
    %3578 = vmatpush2.msra.mxu0 %v3306
    %3579 = vmatprep.subr.mxu0 0.0
    %3580 = vmatpush2.msra.mxu0 %v3303
    %3581 = vmatprep.subr.mxu0 0.0
    %3582 = vmatpush2.msra.mxu0 %v3300
    %3583 = vmatprep.subr.mxu0 0.0
    %3584 = vmatpush2.msra.mxu0 %v3297
    %3585 = vmatprep.subr.mxu0 0.0
    %3586 = vmatpush2.msra.mxu0 %v3294
    %3587 = vmatprep.subr.mxu0 0.0
    %3588 = vmatpush2.msra.mxu0 %v3291
    %3589 = vmatprep.subr.mxu0 0.0
    %3590 = vmatpush2.msra.mxu0 %v3288
    %3591 = vmatprep.subr.mxu0 0.0
    %3592 = vmatpush2.msra.mxu0 %v3285
    %3593 = vmatprep.mubr.f32.mxu0 %v3201
    %3594 = vmatmul.mubr.f32.gmra.mxu0 %v3198
    %v3595 = vpop.f32.mrf.mxu0
    %v3596 = vadd.f32 0.0, %v3595
    %v3597 = vpop.f32.mrf.mxu0
    %3598 = vmatprep.mubr.f32.mxu0 %v3208
    %3599 = vmatmul.mubr.f32.gmra.mxu0 %v3206
    %v3600 = vpop.f32.mrf.mxu0
    %v3601 = vadd.f32 0.0, %v3600
    %v3602 = vpop.f32.mrf.mxu0
    %3603 = vmatprep.mubr.f32.mxu0 %v3216
    %3604 = vmatmul.mubr.f32.gmra.mxu0 %v3213
    %v3605 = vpop.f32.mrf.mxu0
    %v3606 = vadd.f32 0.0, %v3605
    %v3607 = vpop.f32.mrf.mxu0
    %3608 = vmatprep.mubr.f32.mxu0 %v3223
    %3609 = vmatmul.mubr.f32.gmra.mxu0 %v3221
    %v3610 = vpop.f32.mrf.mxu0
    %v3611 = vadd.f32 0.0, %v3610
    %v3612 = vpop.f32.mrf.mxu0
    %3613 = vdwg.mxu0
    %3614 = vmatprep.subr.mxu0 0.0
    %3615 = vmatpush1.msra.mxu0 0.0
    %3616 = vmatprep.subr.mxu0 0.0
    %3617 = vmatpush1.msra.mxu0 0.0
    %3618 = vmatprep.subr.mxu0 0.0
    %3619 = vmatpush1.msra.mxu0 0.0
    %3620 = vmatprep.subr.mxu0 0.0
    %3621 = vmatpush1.msra.mxu0 0.0
    %3622 = vmatprep.subr.mxu0 0.0
    %3623 = vmatpush1.msra.mxu0 0.0
    %3624 = vmatprep.subr.mxu0 0.0
    %3625 = vmatpush1.msra.mxu0 0.0
    %3626 = vmatprep.subr.mxu0 0.0
    %3627 = vmatpush1.msra.mxu0 0.0
    %3628 = vmatprep.subr.mxu0 0.0
    %3629 = vmatpush1.msra.mxu0 0.0
    %3630 = vmatprep.subr.mxu0 0.0
    %3631 = vmatpush1.msra.mxu0 0.0
    %3632 = vmatprep.subr.mxu0 0.0
    %3633 = vmatpush1.msra.mxu0 0.0
    %3634 = vmatprep.subr.mxu0 0.0
    %3635 = vmatpush1.msra.mxu0 0.0
    %3636 = vmatprep.subr.mxu0 0.0
    %3637 = vmatpush1.msra.mxu0 0.0
    %3638 = vmatprep.subr.mxu0 0.0
    %3639 = vmatpush1.msra.mxu0 %v3342
    %3640 = vmatprep.subr.mxu0 0.0
    %3641 = vmatpush1.msra.mxu0 %v3339
    %3642 = vmatprep.subr.mxu0 0.0
    %3643 = vmatpush1.msra.mxu0 %v3336
    %3644 = vmatprep.subr.mxu0 0.0
    %3645 = vmatpush1.msra.mxu0 %v3333
    %3646 = vmatprep.subr.mxu0 0.0
    %3647 = vmatpush2.msra.mxu0 0.0
    %3648 = vmatprep.subr.mxu0 0.0
    %3649 = vmatpush2.msra.mxu0 0.0
    %3650 = vmatprep.subr.mxu0 0.0
    %3651 = vmatpush2.msra.mxu0 0.0
    %3652 = vmatprep.subr.mxu0 0.0
    %3653 = vmatpush2.msra.mxu0 0.0
    %3654 = vmatprep.subr.mxu0 0.0
    %3655 = vmatpush2.msra.mxu0 0.0
    %3656 = vmatprep.subr.mxu0 0.0
    %3657 = vmatpush2.msra.mxu0 0.0
    %3658 = vmatprep.subr.mxu0 0.0
    %3659 = vmatpush2.msra.mxu0 0.0
    %3660 = vmatprep.subr.mxu0 0.0
    %3661 = vmatpush2.msra.mxu0 0.0
    %3662 = vmatprep.subr.mxu0 0.0
    %3663 = vmatpush2.msra.mxu0 0.0
    %3664 = vmatprep.subr.mxu0 0.0
    %3665 = vmatpush2.msra.mxu0 0.0
    %3666 = vmatprep.subr.mxu0 0.0
    %3667 = vmatpush2.msra.mxu0 0.0
    %3668 = vmatprep.subr.mxu0 0.0
    %3669 = vmatpush2.msra.mxu0 0.0
    %3670 = vmatprep.subr.mxu0 0.0
    %3671 = vmatpush2.msra.mxu0 0.0
    %3672 = vmatprep.subr.mxu0 0.0
    %3673 = vmatpush2.msra.mxu0 0.0
    %3674 = vmatprep.subr.mxu0 0.0
    %3675 = vmatpush2.msra.mxu0 0.0
    %3676 = vmatprep.subr.mxu0 0.0
    %3677 = vmatpush2.msra.mxu0 0.0
    %3678 = vmatprep.mubr.f32.mxu0 0.0
    %3679 = vmatmul.mubr.f32.gmra.mxu0 %v3343
    %v3680 = vpop.f32.mrf.mxu0
    %v3681 = vadd.f32 %v3596, %v3680
    %v3682 = vpop.f32.mrf.mxu0
    %3683 = vmatprep.mubr.f32.mxu0 0.0
    %3684 = vmatmul.mubr.f32.gmra.mxu0 %v3345
    %v3685 = vpop.f32.mrf.mxu0
    %v3686 = vadd.f32 %v3601, %v3685
    %v3687 = vpop.f32.mrf.mxu0
    %3688 = vmatprep.mubr.f32.mxu0 0.0
    %3689 = vmatmul.mubr.f32.gmra.mxu0 %v3347
    %v3690 = vpop.f32.mrf.mxu0
    %v3691 = vadd.f32 %v3606, %v3690
    %v3692 = vpop.f32.mrf.mxu0
    %3693 = vmatprep.mubr.f32.mxu0 0.0
    %3694 = vmatmul.mubr.f32.gmra.mxu0 %v3349
    %v3695 = vpop.f32.mrf.mxu0
    %v3696 = vadd.f32 %v3611, %v3695
    %v3697 = vpop.f32.mrf.mxu0
    %3698 = vdwg.mxu0
    %v3699 = vadd.f32 %v2979, %v3507
    %v3700 = vadd.f32 %v2981, %v3509
    %v3701 = vadd.f32 %v3153, %v3681
    %v3702 = vadd.f32 %v2985, %v3513
    %v3703 = vadd.f32 %v2987, %v3515
    %v3704 = vadd.f32 %v3158, %v3686
    %v3705 = vadd.f32 %v2991, %v3519
    %v3706 = vadd.f32 %v2993, %v3521
    %v3707 = vadd.f32 %v3163, %v3691
    %v3708 = vadd.f32 %v2997, %v3525
    %v3709 = vadd.f32 %v2999, %v3527
    %v3710 = vadd.f32 %v3168, %v3696
    %v3711 = vld [vmem:[#allocation22] sm:$0x7]
    %v3713 = vlaneseq
    %v3714 = vshrl.u32 %v3713, 7
    %v3715 = vsub.s32 0, %v3714
    %v3716 = vrot.slane %v3711, %v3715
    %v3717 = vlaneseq
    %v3718 = vshrl.u32 %v3717, 7
    %v3719 = vsub.s32 1, %v3718
    %v3720 = vrot.slane %v3711, %v3719
    %v3721 = vlaneseq
    %v3722 = vshrl.u32 %v3721, 7
    %v3723 = vsub.s32 2, %v3722
    %v3724 = vrot.slane %v3711, %v3723
    %v3728 = vadd.f32 %v3699, %v3716
    %v3729 = vadd.f32 %v3700, %v3720
    %v3730 = vadd.f32 %v3701, %v3724
    %v3731 = vadd.f32 %v3702, %v3716
    %v3732 = vadd.f32 %v3703, %v3720
    %v3733 = vadd.f32 %v3704, %v3724
    %v3734 = vadd.f32 %v3705, %v3716
    %v3735 = vadd.f32 %v3706, %v3720
    %v3736 = vadd.f32 %v3707, %v3724
    %v3737 = vadd.f32 %v3708, %v3716
    %v3738 = vadd.f32 %v3709, %v3720
    %v3739 = vadd.f32 %v3710, %v3724
    %v3740 = vmax.f32 %v3728, 0.0
    %v3741 = vmax.f32 %v3729, 0.0
    %v3742 = vmax.f32 %v3730, 0.0
    %v3743 = vmax.f32 %v3731, 0.0
    %v3744 = vmax.f32 %v3732, 0.0
    %v3745 = vmax.f32 %v3733, 0.0
    %v3746 = vmax.f32 %v3734, 0.0
    %v3747 = vmax.f32 %v3735, 0.0
    %v3748 = vmax.f32 %v3736, 0.0
    %v3749 = vmax.f32 %v3737, 0.0
    %v3750 = vmax.f32 %v3738, 0.0
    %v3751 = vmax.f32 %v3739, 0.0
    %v3752 = vadd.f32 %v3740, %v3743
    %v3753 = vadd.f32 %v3752, %v3746
    %v3754 = vadd.f32 %v3753, %v3749
    %v3755 = vrot.slane %v3754, 4
    %v3756 = vadd.f32 %v3754, %v3755
    %v3757 = vrot.slane %v3756, 2
    %v3758 = vadd.f32 %v3756, %v3757
    %v3759 = vrot.slane %v3758, 1
    %v3760 = vadd.f32 %v3758, %v3759
    %v3761 = vadd.f32 %v3741, %v3744
    %v3762 = vadd.f32 %v3761, %v3747
    %v3763 = vadd.f32 %v3762, %v3750
    %v3764 = vrot.slane %v3763, 4
    %v3765 = vadd.f32 %v3763, %v3764
    %v3766 = vrot.slane %v3765, 2
    %v3767 = vadd.f32 %v3765, %v3766
    %v3768 = vrot.slane %v3767, 1
    %v3769 = vadd.f32 %v3767, %v3768
    %v3770 = vsel %vm1356, %v3742, 0.0
    %v3771 = vsel %vm1356, %v3745, 0.0
    %v3772 = vadd.f32 %v3770, %v3771
    %v3773 = vsel %vm1356, %v3748, 0.0
    %v3774 = vadd.f32 %v3772, %v3773
    %v3775 = vsel %vm1356, %v3751, 0.0
    %v3776 = vadd.f32 %v3774, %v3775
    %v3777 = vrot.slane %v3776, 4
    %v3778 = vadd.f32 %v3776, %v3777
    %v3779 = vrot.slane %v3778, 2
    %v3780 = vadd.f32 %v3778, %v3779
    %v3781 = vrot.slane %v3780, 1
    %v3782 = vadd.f32 %v3780, %v3781
    %v3783 = vmul.f32 %v3740, %v3740
    %v3784 = vmul.f32 %v3741, %v3741
    %v3785 = vmul.f32 %v3742, %v3742
    %v3786 = vmul.f32 %v3743, %v3743
    %v3787 = vmul.f32 %v3744, %v3744
    %v3788 = vmul.f32 %v3745, %v3745
    %v3789 = vmul.f32 %v3746, %v3746
    %v3790 = vmul.f32 %v3747, %v3747
    %v3791 = vmul.f32 %v3748, %v3748
    %v3792 = vmul.f32 %v3749, %v3749
    %v3793 = vmul.f32 %v3750, %v3750
    %v3794 = vmul.f32 %v3751, %v3751
    %v3795 = vadd.f32 %v3783, %v3786
    %v3796 = vadd.f32 %v3795, %v3789
    %v3797 = vadd.f32 %v3796, %v3792
    %v3798 = vrot.slane %v3797, 4
    %v3799 = vadd.f32 %v3797, %v3798
    %v3800 = vrot.slane %v3799, 2
    %v3801 = vadd.f32 %v3799, %v3800
    %v3802 = vrot.slane %v3801, 1
    %v3803 = vadd.f32 %v3801, %v3802
    %v3804 = vadd.f32 %v3784, %v3787
    %v3805 = vadd.f32 %v3804, %v3790
    %v3806 = vadd.f32 %v3805, %v3793
    %v3807 = vrot.slane %v3806, 4
    %v3808 = vadd.f32 %v3806, %v3807
    %v3809 = vrot.slane %v3808, 2
    %v3810 = vadd.f32 %v3808, %v3809
    %v3811 = vrot.slane %v3810, 1
    %v3812 = vadd.f32 %v3810, %v3811
    %v3813 = vsel %vm1356, %v3785, 0.0
    %v3814 = vsel %vm1356, %v3788, 0.0
    %v3815 = vadd.f32 %v3813, %v3814
    %v3816 = vsel %vm1356, %v3791, 0.0
    %v3817 = vadd.f32 %v3815, %v3816
    %v3818 = vsel %vm1356, %v3794, 0.0
    %v3819 = vadd.f32 %v3817, %v3818
    %v3820 = vrot.slane %v3819, 4
    %v3821 = vadd.f32 %v3819, %v3820
    %v3822 = vrot.slane %v3821, 2
    %v3823 = vadd.f32 %v3821, %v3822
    %v3824 = vrot.slane %v3823, 1
    %v3825 = vadd.f32 %v3823, %v3824
    %v3826 = vld [vmem:[%s5] sm:$0xff]
    %v3827 = vld [vmem:[%s5 + $0x8] sm:$0xff]
    %v3828 = vld [vmem:[%s5 + $0x10] sm:$0xff]
    %v3829 = vld [vmem:[%s5 + $0x18] sm:$0xff]
    %v3830 = vld [vmem:[%s5 + $0x20] sm:$0xff]
    %v3831 = vld [vmem:[%s5 + $0x28] sm:$0xff]
    %v3832 = vld [vmem:[%s5 + $0x30] sm:$0xff]
    %v3833 = vld [vmem:[%s5 + $0x38] sm:$0xff]
    %v3834 = vld [vmem:[%s5 + $0x40] sm:$0xff]
    %v3835 = vld [vmem:[%s5 + $0x48] sm:$0xff]
    %v3836 = vld [vmem:[%s5 + $0x50] sm:$0xff]
    %v3837 = vld [vmem:[%s5 + $0x58] sm:$0xff]
    %v3838 = vld [vmem:[%s5 + $0x60] sm:$0xff]
    %v3839 = vld [vmem:[%s5 + $0x68] sm:$0xff]
    %v3840 = vld [vmem:[%s5 + $0x70] sm:$0xff]
    %v3841 = vld [vmem:[%s5 + $0x78] sm:$0xff]
    %v3842 = vld [vmem:[%s5 + $0x80] sm:$0xff]
    %v3843 = vld [vmem:[%s5 + $0x88] sm:$0xff]
    %v3844 = vld [vmem:[%s5 + $0x90] sm:$0xff]
    %v3845 = vld [vmem:[%s5 + $0x98] sm:$0xff]
    %v3846 = vld [vmem:[%s5 + $0xa0] sm:$0xff]
    %v3847 = vld [vmem:[%s5 + $0xa8] sm:$0xff]
    %v3848 = vld [vmem:[%s5 + $0xb0] sm:$0xff]
    %v3849 = vld [vmem:[%s5 + $0xb8] sm:$0xff]
    %v3850 = vld [vmem:[%s5 + $0xc0] sm:$0xff]
    %v3851 = vld [vmem:[%s5 + $0xc8] sm:$0xff]
    %v3852 = vld [vmem:[%s5 + $0xd0] sm:$0xff]
    %v3853 = vld [vmem:[%s5 + $0xd8] sm:$0xff]
    %v3854 = vld [vmem:[%s5 + $0xe0] sm:$0xff]
    %v3855 = vld [vmem:[%s5 + $0xe8] sm:$0xff]
    %v3856 = vld [vmem:[%s5 + $0xf0] sm:$0xff]
    %v3857 = vld [vmem:[%s5 + $0xf8] sm:$0xff]
    %v3858 = vld [vmem:[%s5 + $0x100] sm:$0xff]
    %v3859 = vld [vmem:[%s5 + $0x108] sm:$0xff]
    %v3860 = vld [vmem:[%s5 + $0x110] sm:$0xff]
    %v3861 = vld [vmem:[%s5 + $0x118] sm:$0xff]
    %v3863 = vsel %vm1356, %v3782, 0
    %3865 = vmatprep.subr.mxu0 0.0
    %3866 = vmatpush1.msra.mxu0 %v3841
    %3867 = vmatprep.subr.mxu0 0.0
    %3868 = vmatpush1.msra.mxu0 %v3840
    %3869 = vmatprep.subr.mxu0 0.0
    %3870 = vmatpush1.msra.mxu0 %v3839
    %3871 = vmatprep.subr.mxu0 0.0
    %3872 = vmatpush1.msra.mxu0 %v3838
    %3873 = vmatprep.subr.mxu0 0.0
    %3874 = vmatpush1.msra.mxu0 %v3837
    %3875 = vmatprep.subr.mxu0 0.0
    %3876 = vmatpush1.msra.mxu0 %v3836
    %3877 = vmatprep.subr.mxu0 0.0
    %3878 = vmatpush1.msra.mxu0 %v3835
    %3879 = vmatprep.subr.mxu0 0.0
    %3880 = vmatpush1.msra.mxu0 %v3834
    %3881 = vmatprep.subr.mxu0 0.0
    %3882 = vmatpush1.msra.mxu0 %v3833
    %3883 = vmatprep.subr.mxu0 0.0
    %3884 = vmatpush1.msra.mxu0 %v3832
    %3885 = vmatprep.subr.mxu0 0.0
    %3886 = vmatpush1.msra.mxu0 %v3831
    %3887 = vmatprep.subr.mxu0 0.0
    %3888 = vmatpush1.msra.mxu0 %v3830
    %3889 = vmatprep.subr.mxu0 0.0
    %3890 = vmatpush1.msra.mxu0 %v3829
    %3891 = vmatprep.subr.mxu0 0.0
    %3892 = vmatpush1.msra.mxu0 %v3828
    %3893 = vmatprep.subr.mxu0 0.0
    %3894 = vmatpush1.msra.mxu0 %v3827
    %3895 = vmatprep.subr.mxu0 0.0
    %3896 = vmatpush1.msra.mxu0 %v3826
    %3897 = vmatprep.subr.mxu0 0.0
    %3898 = vmatpush2.msra.mxu0 %v3857
    %3899 = vmatprep.subr.mxu0 0.0
    %3900 = vmatpush2.msra.mxu0 %v3856
    %3901 = vmatprep.subr.mxu0 0.0
    %3902 = vmatpush2.msra.mxu0 %v3855
    %3903 = vmatprep.subr.mxu0 0.0
    %3904 = vmatpush2.msra.mxu0 %v3854
    %3905 = vmatprep.subr.mxu0 0.0
    %3906 = vmatpush2.msra.mxu0 %v3853
    %3907 = vmatprep.subr.mxu0 0.0
    %3908 = vmatpush2.msra.mxu0 %v3852
    %3909 = vmatprep.subr.mxu0 0.0
    %3910 = vmatpush2.msra.mxu0 %v3851
    %3911 = vmatprep.subr.mxu0 0.0
    %3912 = vmatpush2.msra.mxu0 %v3850
    %3913 = vmatprep.subr.mxu0 0.0
    %3914 = vmatpush2.msra.mxu0 %v3849
    %3915 = vmatprep.subr.mxu0 0.0
    %3916 = vmatpush2.msra.mxu0 %v3848
    %3917 = vmatprep.subr.mxu0 0.0
    %3918 = vmatpush2.msra.mxu0 %v3847
    %3919 = vmatprep.subr.mxu0 0.0
    %3920 = vmatpush2.msra.mxu0 %v3846
    %3921 = vmatprep.subr.mxu0 0.0
    %3922 = vmatpush2.msra.mxu0 %v3845
    %3923 = vmatprep.subr.mxu0 0.0
    %3924 = vmatpush2.msra.mxu0 %v3844
    %3925 = vmatprep.subr.mxu0 0.0
    %3926 = vmatpush2.msra.mxu0 %v3843
    %3927 = vmatprep.subr.mxu0 0.0
    %3928 = vmatpush2.msra.mxu0 %v3842
    %3929 = vmatprep.mubr.f32.mxu0 %v3769
    %3930 = vmatmul.mubr.f32.gmra.mxu0 %v3760
    %v3931 = vpop.f32.mrf.mxu0
    %v3932 = vadd.f32 0.0, %v3931
    %v3933 = vpop.f32.mrf.mxu0
    %3934 = vdwg.mxu0
    %3935 = vmatprep.subr.mxu0 0.0
    %3936 = vmatpush1.msra.mxu0 0.0
    %3937 = vmatprep.subr.mxu0 0.0
    %3938 = vmatpush1.msra.mxu0 0.0
    %3939 = vmatprep.subr.mxu0 0.0
    %3940 = vmatpush1.msra.mxu0 0.0
    %3941 = vmatprep.subr.mxu0 0.0
    %3942 = vmatpush1.msra.mxu0 0.0
    %3943 = vmatprep.subr.mxu0 0.0
    %3944 = vmatpush1.msra.mxu0 0.0
    %3945 = vmatprep.subr.mxu0 0.0
    %3946 = vmatpush1.msra.mxu0 0.0
    %3947 = vmatprep.subr.mxu0 0.0
    %3948 = vmatpush1.msra.mxu0 0.0
    %3949 = vmatprep.subr.mxu0 0.0
    %3950 = vmatpush1.msra.mxu0 0.0
    %3951 = vmatprep.subr.mxu0 0.0
    %3952 = vmatpush1.msra.mxu0 0.0
    %3953 = vmatprep.subr.mxu0 0.0
    %3954 = vmatpush1.msra.mxu0 0.0
    %3955 = vmatprep.subr.mxu0 0.0
    %3956 = vmatpush1.msra.mxu0 0.0
    %3957 = vmatprep.subr.mxu0 0.0
    %3958 = vmatpush1.msra.mxu0 0.0
    %3959 = vmatprep.subr.mxu0 0.0
    %3960 = vmatpush1.msra.mxu0 %v3861
    %3961 = vmatprep.subr.mxu0 0.0
    %3962 = vmatpush1.msra.mxu0 %v3860
    %3963 = vmatprep.subr.mxu0 0.0
    %3964 = vmatpush1.msra.mxu0 %v3859
    %3965 = vmatprep.subr.mxu0 0.0
    %3966 = vmatpush1.msra.mxu0 %v3858
    %3967 = vmatprep.subr.mxu0 0.0
    %3968 = vmatpush2.msra.mxu0 0.0
    %3969 = vmatprep.subr.mxu0 0.0
    %3970 = vmatpush2.msra.mxu0 0.0
    %3971 = vmatprep.subr.mxu0 0.0
    %3972 = vmatpush2.msra.mxu0 0.0
    %3973 = vmatprep.subr.mxu0 0.0
    %3974 = vmatpush2.msra.mxu0 0.0
    %3975 = vmatprep.subr.mxu0 0.0
    %3976 = vmatpush2.msra.mxu0 0.0
    %3977 = vmatprep.subr.mxu0 0.0
    %3978 = vmatpush2.msra.mxu0 0.0
    %3979 = vmatprep.subr.mxu0 0.0
    %3980 = vmatpush2.msra.mxu0 0.0
    %3981 = vmatprep.subr.mxu0 0.0
    %3982 = vmatpush2.msra.mxu0 0.0
    %3983 = vmatprep.subr.mxu0 0.0
    %3984 = vmatpush2.msra.mxu0 0.0
    %3985 = vmatprep.subr.mxu0 0.0
    %3986 = vmatpush2.msra.mxu0 0.0
    %3987 = vmatprep.subr.mxu0 0.0
    %3988 = vmatpush2.msra.mxu0 0.0
    %3989 = vmatprep.subr.mxu0 0.0
    %3990 = vmatpush2.msra.mxu0 0.0
    %3991 = vmatprep.subr.mxu0 0.0
    %3992 = vmatpush2.msra.mxu0 0.0
    %3993 = vmatprep.subr.mxu0 0.0
    %3994 = vmatpush2.msra.mxu0 0.0
    %3995 = vmatprep.subr.mxu0 0.0
    %3996 = vmatpush2.msra.mxu0 0.0
    %3997 = vmatprep.subr.mxu0 0.0
    %3998 = vmatpush2.msra.mxu0 0.0
    %3999 = vmatprep.mubr.f32.mxu0 0.0
    %4000 = vmatmul.mubr.f32.gmra.mxu0 %v3863
    %v4001 = vpop.f32.mrf.mxu0
    %v4002 = vadd.f32 %v3932, %v4001
    %v4003 = vpop.f32.mrf.mxu0
    %4004 = vdwg.mxu0
    %v4005 = vmul.f32 %v4002, 0.001953125
    %v4007 = vsel %vm1356, %v3825, 0
    %4009 = vmatprep.subr.mxu0 0.0
    %4010 = vmatpush1.msra.mxu0 %v3841
    %4011 = vmatprep.subr.mxu0 0.0
    %4012 = vmatpush1.msra.mxu0 %v3840
    %4013 = vmatprep.subr.mxu0 0.0
    %4014 = vmatpush1.msra.mxu0 %v3839
    %4015 = vmatprep.subr.mxu0 0.0
    %4016 = vmatpush1.msra.mxu0 %v3838
    %4017 = vmatprep.subr.mxu0 0.0
    %4018 = vmatpush1.msra.mxu0 %v3837
    %4019 = vmatprep.subr.mxu0 0.0
    %4020 = vmatpush1.msra.mxu0 %v3836
    %4021 = vmatprep.subr.mxu0 0.0
    %4022 = vmatpush1.msra.mxu0 %v3835
    %4023 = vmatprep.subr.mxu0 0.0
    %4024 = vmatpush1.msra.mxu0 %v3834
    %4025 = vmatprep.subr.mxu0 0.0
    %4026 = vmatpush1.msra.mxu0 %v3833
    %4027 = vmatprep.subr.mxu0 0.0
    %4028 = vmatpush1.msra.mxu0 %v3832
    %4029 = vmatprep.subr.mxu0 0.0
    %4030 = vmatpush1.msra.mxu0 %v3831
    %4031 = vmatprep.subr.mxu0 0.0
    %4032 = vmatpush1.msra.mxu0 %v3830
    %4033 = vmatprep.subr.mxu0 0.0
    %4034 = vmatpush1.msra.mxu0 %v3829
    %4035 = vmatprep.subr.mxu0 0.0
    %4036 = vmatpush1.msra.mxu0 %v3828
    %4037 = vmatprep.subr.mxu0 0.0
    %4038 = vmatpush1.msra.mxu0 %v3827
    %4039 = vmatprep.subr.mxu0 0.0
    %4040 = vmatpush1.msra.mxu0 %v3826
    %4041 = vmatprep.subr.mxu0 0.0
    %4042 = vmatpush2.msra.mxu0 %v3857
    %4043 = vmatprep.subr.mxu0 0.0
    %4044 = vmatpush2.msra.mxu0 %v3856
    %4045 = vmatprep.subr.mxu0 0.0
    %4046 = vmatpush2.msra.mxu0 %v3855
    %4047 = vmatprep.subr.mxu0 0.0
    %4048 = vmatpush2.msra.mxu0 %v3854
    %4049 = vmatprep.subr.mxu0 0.0
    %4050 = vmatpush2.msra.mxu0 %v3853
    %4051 = vmatprep.subr.mxu0 0.0
    %4052 = vmatpush2.msra.mxu0 %v3852
    %4053 = vmatprep.subr.mxu0 0.0
    %4054 = vmatpush2.msra.mxu0 %v3851
    %4055 = vmatprep.subr.mxu0 0.0
    %4056 = vmatpush2.msra.mxu0 %v3850
    %4057 = vmatprep.subr.mxu0 0.0
    %4058 = vmatpush2.msra.mxu0 %v3849
    %4059 = vmatprep.subr.mxu0 0.0
    %4060 = vmatpush2.msra.mxu0 %v3848
    %4061 = vmatprep.subr.mxu0 0.0
    %4062 = vmatpush2.msra.mxu0 %v3847
    %4063 = vmatprep.subr.mxu0 0.0
    %4064 = vmatpush2.msra.mxu0 %v3846
    %4065 = vmatprep.subr.mxu0 0.0
    %4066 = vmatpush2.msra.mxu0 %v3845
    %4067 = vmatprep.subr.mxu0 0.0
    %4068 = vmatpush2.msra.mxu0 %v3844
    %4069 = vmatprep.subr.mxu0 0.0
    %4070 = vmatpush2.msra.mxu0 %v3843
    %4071 = vmatprep.subr.mxu0 0.0
    %4072 = vmatpush2.msra.mxu0 %v3842
    %4073 = vmatprep.mubr.f32.mxu0 %v3812
    %4074 = vmatmul.mubr.f32.gmra.mxu0 %v3803
    %v4075 = vpop.f32.mrf.mxu0
    %v4076 = vadd.f32 0.0, %v4075
    %v4077 = vpop.f32.mrf.mxu0
    %4078 = vdwg.mxu0
    %4079 = vmatprep.subr.mxu0 0.0
    %4080 = vmatpush1.msra.mxu0 0.0
    %4081 = vmatprep.subr.mxu0 0.0
    %4082 = vmatpush1.msra.mxu0 0.0
    %4083 = vmatprep.subr.mxu0 0.0
    %4084 = vmatpush1.msra.mxu0 0.0
    %4085 = vmatprep.subr.mxu0 0.0
    %4086 = vmatpush1.msra.mxu0 0.0
    %4087 = vmatprep.subr.mxu0 0.0
    %4088 = vmatpush1.msra.mxu0 0.0
    %4089 = vmatprep.subr.mxu0 0.0
    %4090 = vmatpush1.msra.mxu0 0.0
    %4091 = vmatprep.subr.mxu0 0.0
    %4092 = vmatpush1.msra.mxu0 0.0
    %4093 = vmatprep.subr.mxu0 0.0
    %4094 = vmatpush1.msra.mxu0 0.0
    %4095 = vmatprep.subr.mxu0 0.0
    %4096 = vmatpush1.msra.mxu0 0.0
    %4097 = vmatprep.subr.mxu0 0.0
    %4098 = vmatpush1.msra.mxu0 0.0
    %4099 = vmatprep.subr.mxu0 0.0
    %4100 = vmatpush1.msra.mxu0 0.0
    %4101 = vmatprep.subr.mxu0 0.0
    %4102 = vmatpush1.msra.mxu0 0.0
    %4103 = vmatprep.subr.mxu0 0.0
    %4104 = vmatpush1.msra.mxu0 %v3861
    %4105 = vmatprep.subr.mxu0 0.0
    %4106 = vmatpush1.msra.mxu0 %v3860
    %4107 = vmatprep.subr.mxu0 0.0
    %4108 = vmatpush1.msra.mxu0 %v3859
    %4109 = vmatprep.subr.mxu0 0.0
    %4110 = vmatpush1.msra.mxu0 %v3858
    %4111 = vmatprep.subr.mxu0 0.0
    %4112 = vmatpush2.msra.mxu0 0.0
    %4113 = vmatprep.subr.mxu0 0.0
    %4114 = vmatpush2.msra.mxu0 0.0
    %4115 = vmatprep.subr.mxu0 0.0
    %4116 = vmatpush2.msra.mxu0 0.0
    %4117 = vmatprep.subr.mxu0 0.0
    %4118 = vmatpush2.msra.mxu0 0.0
    %4119 = vmatprep.subr.mxu0 0.0
    %4120 = vmatpush2.msra.mxu0 0.0
    %4121 = vmatprep.subr.mxu0 0.0
    %4122 = vmatpush2.msra.mxu0 0.0
    %4123 = vmatprep.subr.mxu0 0.0
    %4124 = vmatpush2.msra.mxu0 0.0
    %4125 = vmatprep.subr.mxu0 0.0
    %4126 = vmatpush2.msra.mxu0 0.0
    %4127 = vmatprep.subr.mxu0 0.0
    %4128 = vmatpush2.msra.mxu0 0.0
    %4129 = vmatprep.subr.mxu0 0.0
    %4130 = vmatpush2.msra.mxu0 0.0
    %4131 = vmatprep.subr.mxu0 0.0
    %4132 = vmatpush2.msra.mxu0 0.0
    %4133 = vmatprep.subr.mxu0 0.0
    %4134 = vmatpush2.msra.mxu0 0.0
    %4135 = vmatprep.subr.mxu0 0.0
    %4136 = vmatpush2.msra.mxu0 0.0
    %4137 = vmatprep.subr.mxu0 0.0
    %4138 = vmatpush2.msra.mxu0 0.0
    %4139 = vmatprep.subr.mxu0 0.0
    %4140 = vmatpush2.msra.mxu0 0.0
    %4141 = vmatprep.subr.mxu0 0.0
    %4142 = vmatpush2.msra.mxu0 0.0
    %4143 = vmatprep.mubr.f32.mxu0 0.0
    %4144 = vmatmul.mubr.f32.gmra.mxu0 %v4007
    %v4145 = vpop.f32.mrf.mxu0
    %v4146 = vadd.f32 %v4076, %v4145
    %v4147 = vpop.f32.mrf.mxu0
    %4148 = vdwg.mxu0
    %v4149 = vmul.f32 %v4146, 0.001953125
    %v4150 = vmul.f32 %v4005, %v4005
    %v4151 = vsub.f32 %v4149, %v4150
    %v4152 = vmax.f32 %v4151, 0.0
    %v4153 = vld [vmem:[#allocation23] sm:$0x1]
    %v4154 = vadd.f32 %v4152, 1e-05
    %v4155 = vrsqrt.pop %v4154
    %v4156 = vmul.f32 %v4153, %v4155
    %v4157 = vld [vmem:[#allocation25] sm:$0x1]
    %v4158 = vmul.f32 %v4005, %v4156
    %v4159 = vsub.f32 %v4157, %v4158
    %v4160 = vld [vmem:[#allocation13] sm:$0xff]
    %v4161 = vld [vmem:[#allocation13 + $0x8] sm:$0xff]
    %v4162 = vld [vmem:[#allocation13 + $0x10] sm:$0xff]
    %v4163 = vld [vmem:[#allocation13 + $0x18] sm:$0xff]
    %v4164 = vld [vmem:[#allocation13 + $0x20] sm:$0xff]
    %v4165 = vld [vmem:[#allocation13 + $0x28] sm:$0xff]
    %v4167 = vsel %vm1753, %v4156, 0
    %4169 = vmatprep.subr.mxu0 0.0
    %4170 = vmatpush1.msra.mxu0 0.0
    %4171 = vmatprep.subr.mxu0 0.0
    %4172 = vmatpush1.msra.mxu0 0.0
    %4173 = vmatprep.subr.mxu0 0.0
    %4174 = vmatpush1.msra.mxu0 0.0
    %4175 = vmatprep.subr.mxu0 0.0
    %4176 = vmatpush1.msra.mxu0 0.0
    %4177 = vmatprep.subr.mxu0 0.0
    %4178 = vmatpush1.msra.mxu0 0.0
    %4179 = vmatprep.subr.mxu0 0.0
    %4180 = vmatpush1.msra.mxu0 0.0
    %4181 = vmatprep.subr.mxu0 0.0
    %4182 = vmatpush1.msra.mxu0 0.0
    %4183 = vmatprep.subr.mxu0 0.0
    %4184 = vmatpush1.msra.mxu0 0.0
    %4185 = vmatprep.subr.mxu0 0.0
    %4186 = vmatpush1.msra.mxu0 0.0
    %4187 = vmatprep.subr.mxu0 0.0
    %4188 = vmatpush1.msra.mxu0 0.0
    %4189 = vmatprep.subr.mxu0 0.0
    %4190 = vmatpush1.msra.mxu0 0.0
    %4191 = vmatprep.subr.mxu0 0.0
    %4192 = vmatpush1.msra.mxu0 0.0
    %4193 = vmatprep.subr.mxu0 0.0
    %4194 = vmatpush1.msra.mxu0 0.0
    %4195 = vmatprep.subr.mxu0 0.0
    %4196 = vmatpush1.msra.mxu0 0.0
    %4197 = vmatprep.subr.mxu0 %v4164
    %4198 = vmatpush1.msra.mxu0 %v4163
    %4199 = vmatprep.subr.mxu0 %v4161
    %4200 = vmatpush1.msra.mxu0 %v4160
    %4201 = vmatprep.subr.mxu0 0.0
    %4202 = vmatpush2.msra.mxu0 0.0
    %4203 = vmatprep.subr.mxu0 0.0
    %4204 = vmatpush2.msra.mxu0 0.0
    %4205 = vmatprep.subr.mxu0 0.0
    %4206 = vmatpush2.msra.mxu0 0.0
    %4207 = vmatprep.subr.mxu0 0.0
    %4208 = vmatpush2.msra.mxu0 0.0
    %4209 = vmatprep.subr.mxu0 0.0
    %4210 = vmatpush2.msra.mxu0 0.0
    %4211 = vmatprep.subr.mxu0 0.0
    %4212 = vmatpush2.msra.mxu0 0.0
    %4213 = vmatprep.subr.mxu0 0.0
    %4214 = vmatpush2.msra.mxu0 0.0
    %4215 = vmatprep.subr.mxu0 0.0
    %4216 = vmatpush2.msra.mxu0 0.0
    %4217 = vmatprep.subr.mxu0 0.0
    %4218 = vmatpush2.msra.mxu0 0.0
    %4219 = vmatprep.subr.mxu0 0.0
    %4220 = vmatpush2.msra.mxu0 0.0
    %4221 = vmatprep.subr.mxu0 0.0
    %4222 = vmatpush2.msra.mxu0 0.0
    %4223 = vmatprep.subr.mxu0 0.0
    %4224 = vmatpush2.msra.mxu0 0.0
    %4225 = vmatprep.subr.mxu0 0.0
    %4226 = vmatpush2.msra.mxu0 0.0
    %4227 = vmatprep.subr.mxu0 0.0
    %4228 = vmatpush2.msra.mxu0 0.0
    %4229 = vmatprep.subr.mxu0 0.0
    %4230 = vmatpush2.msra.mxu0 0.0
    %4231 = vmatprep.subr.mxu0 0.0
    %4232 = vmatpush2.msra.mxu0 0.0
    %4233 = vmatprep.mubr.f32.mxu0 0.0
    %4234 = vmatmul.mubr.f32.gmra.mxu0 %v4167
    %v4235 = vpop.f32.mrf.mxu0
    %v4236 = vadd.f32 0.0, %v4235
    %v4237 = vpop.f32.mrf.mxu0
    %v4238 = vadd.f32 0.0, %v4237
    %4239 = vdwg.mxu0
    %4240 = vmatprep.subr.mxu0 0.0
    %4241 = vmatpush1.msra.mxu0 0.0
    %4242 = vmatprep.subr.mxu0 0.0
    %4243 = vmatpush1.msra.mxu0 0.0
    %4244 = vmatprep.subr.mxu0 0.0
    %4245 = vmatpush1.msra.mxu0 0.0
    %4246 = vmatprep.subr.mxu0 0.0
    %4247 = vmatpush1.msra.mxu0 0.0
    %4248 = vmatprep.subr.mxu0 0.0
    %4249 = vmatpush1.msra.mxu0 0.0
    %4250 = vmatprep.subr.mxu0 0.0
    %4251 = vmatpush1.msra.mxu0 0.0
    %4252 = vmatprep.subr.mxu0 0.0
    %4253 = vmatpush1.msra.mxu0 0.0
    %4254 = vmatprep.subr.mxu0 0.0
    %4255 = vmatpush1.msra.mxu0 0.0
    %4256 = vmatprep.subr.mxu0 0.0
    %4257 = vmatpush1.msra.mxu0 0.0
    %4258 = vmatprep.subr.mxu0 0.0
    %4259 = vmatpush1.msra.mxu0 0.0
    %4260 = vmatprep.subr.mxu0 0.0
    %4261 = vmatpush1.msra.mxu0 0.0
    %4262 = vmatprep.subr.mxu0 0.0
    %4263 = vmatpush1.msra.mxu0 0.0
    %4264 = vmatprep.subr.mxu0 0.0
    %4265 = vmatpush1.msra.mxu0 0.0
    %4266 = vmatprep.subr.mxu0 0.0
    %4267 = vmatpush1.msra.mxu0 0.0
    %4268 = vmatprep.subr.mxu0 0.0
    %4269 = vmatpush1.msra.mxu0 %v4165
    %4270 = vmatprep.subr.mxu0 0.0
    %4271 = vmatpush1.msra.mxu0 %v4162
    %4272 = vmatprep.subr.mxu0 0.0
    %4273 = vmatpush2.msra.mxu0 0.0
    %4274 = vmatprep.subr.mxu0 0.0
    %4275 = vmatpush2.msra.mxu0 0.0
    %4276 = vmatprep.subr.mxu0 0.0
    %4277 = vmatpush2.msra.mxu0 0.0
    %4278 = vmatprep.subr.mxu0 0.0
    %4279 = vmatpush2.msra.mxu0 0.0
    %4280 = vmatprep.subr.mxu0 0.0
    %4281 = vmatpush2.msra.mxu0 0.0
    %4282 = vmatprep.subr.mxu0 0.0
    %4283 = vmatpush2.msra.mxu0 0.0
    %4284 = vmatprep.subr.mxu0 0.0
    %4285 = vmatpush2.msra.mxu0 0.0
    %4286 = vmatprep.subr.mxu0 0.0
    %4287 = vmatpush2.msra.mxu0 0.0
    %4288 = vmatprep.subr.mxu0 0.0
    %4289 = vmatpush2.msra.mxu0 0.0
    %4290 = vmatprep.subr.mxu0 0.0
    %4291 = vmatpush2.msra.mxu0 0.0
    %4292 = vmatprep.subr.mxu0 0.0
    %4293 = vmatpush2.msra.mxu0 0.0
    %4294 = vmatprep.subr.mxu0 0.0
    %4295 = vmatpush2.msra.mxu0 0.0
    %4296 = vmatprep.subr.mxu0 0.0
    %4297 = vmatpush2.msra.mxu0 0.0
    %4298 = vmatprep.subr.mxu0 0.0
    %4299 = vmatpush2.msra.mxu0 0.0
    %4300 = vmatprep.subr.mxu0 0.0
    %4301 = vmatpush2.msra.mxu0 0.0
    %4302 = vmatprep.subr.mxu0 0.0
    %4303 = vmatpush2.msra.mxu0 0.0
    %4304 = vmatprep.mubr.f32.mxu0 0.0
    %4305 = vmatmul.mubr.f32.gmra.mxu0 %v4167
    %v4306 = vpop.f32.mrf.mxu0
    %v4307 = vadd.f32 0.0, %v4306
    %v4308 = vpop.f32.mrf.mxu0
    %4309 = vdwg.mxu0
    %v4311 = vsel %vm1753, %v4159, 0
    %4313 = vmatprep.subr.mxu0 0.0
    %4314 = vmatpush1.msra.mxu0 0.0
    %4315 = vmatprep.subr.mxu0 0.0
    %4316 = vmatpush1.msra.mxu0 0.0
    %4317 = vmatprep.subr.mxu0 0.0
    %4318 = vmatpush1.msra.mxu0 0.0
    %4319 = vmatprep.subr.mxu0 0.0
    %4320 = vmatpush1.msra.mxu0 0.0
    %4321 = vmatprep.subr.mxu0 0.0
    %4322 = vmatpush1.msra.mxu0 0.0
    %4323 = vmatprep.subr.mxu0 0.0
    %4324 = vmatpush1.msra.mxu0 0.0
    %4325 = vmatprep.subr.mxu0 0.0
    %4326 = vmatpush1.msra.mxu0 0.0
    %4327 = vmatprep.subr.mxu0 0.0
    %4328 = vmatpush1.msra.mxu0 0.0
    %4329 = vmatprep.subr.mxu0 0.0
    %4330 = vmatpush1.msra.mxu0 0.0
    %4331 = vmatprep.subr.mxu0 0.0
    %4332 = vmatpush1.msra.mxu0 0.0
    %4333 = vmatprep.subr.mxu0 0.0
    %4334 = vmatpush1.msra.mxu0 0.0
    %4335 = vmatprep.subr.mxu0 0.0
    %4336 = vmatpush1.msra.mxu0 0.0
    %4337 = vmatprep.subr.mxu0 0.0
    %4338 = vmatpush1.msra.mxu0 0.0
    %4339 = vmatprep.subr.mxu0 0.0
    %4340 = vmatpush1.msra.mxu0 0.0
    %4341 = vmatprep.subr.mxu0 %v4164
    %4342 = vmatpush1.msra.mxu0 %v4163
    %4343 = vmatprep.subr.mxu0 %v4161
    %4344 = vmatpush1.msra.mxu0 %v4160
    %4345 = vmatprep.subr.mxu0 0.0
    %4346 = vmatpush2.msra.mxu0 0.0
    %4347 = vmatprep.subr.mxu0 0.0
    %4348 = vmatpush2.msra.mxu0 0.0
    %4349 = vmatprep.subr.mxu0 0.0
    %4350 = vmatpush2.msra.mxu0 0.0
    %4351 = vmatprep.subr.mxu0 0.0
    %4352 = vmatpush2.msra.mxu0 0.0
    %4353 = vmatprep.subr.mxu0 0.0
    %4354 = vmatpush2.msra.mxu0 0.0
    %4355 = vmatprep.subr.mxu0 0.0
    %4356 = vmatpush2.msra.mxu0 0.0
    %4357 = vmatprep.subr.mxu0 0.0
    %4358 = vmatpush2.msra.mxu0 0.0
    %4359 = vmatprep.subr.mxu0 0.0
    %4360 = vmatpush2.msra.mxu0 0.0
    %4361 = vmatprep.subr.mxu0 0.0
    %4362 = vmatpush2.msra.mxu0 0.0
    %4363 = vmatprep.subr.mxu0 0.0
    %4364 = vmatpush2.msra.mxu0 0.0
    %4365 = vmatprep.subr.mxu0 0.0
    %4366 = vmatpush2.msra.mxu0 0.0
    %4367 = vmatprep.subr.mxu0 0.0
    %4368 = vmatpush2.msra.mxu0 0.0
    %4369 = vmatprep.subr.mxu0 0.0
    %4370 = vmatpush2.msra.mxu0 0.0
    %4371 = vmatprep.subr.mxu0 0.0
    %4372 = vmatpush2.msra.mxu0 0.0
    %4373 = vmatprep.subr.mxu0 0.0
    %4374 = vmatpush2.msra.mxu0 0.0
    %4375 = vmatprep.subr.mxu0 0.0
    %4376 = vmatpush2.msra.mxu0 0.0
    %4377 = vmatprep.mubr.f32.mxu0 0.0
    %4378 = vmatmul.mubr.f32.gmra.mxu0 %v4311
    %v4379 = vpop.f32.mrf.mxu0
    %v4380 = vadd.f32 0.0, %v4379
    %v4381 = vpop.f32.mrf.mxu0
    %v4382 = vadd.f32 0.0, %v4381
    %4383 = vdwg.mxu0
    %4384 = vmatprep.subr.mxu0 0.0
    %4385 = vmatpush1.msra.mxu0 0.0
    %4386 = vmatprep.subr.mxu0 0.0
    %4387 = vmatpush1.msra.mxu0 0.0
    %4388 = vmatprep.subr.mxu0 0.0
    %4389 = vmatpush1.msra.mxu0 0.0
    %4390 = vmatprep.subr.mxu0 0.0
    %4391 = vmatpush1.msra.mxu0 0.0
    %4392 = vmatprep.subr.mxu0 0.0
    %4393 = vmatpush1.msra.mxu0 0.0
    %4394 = vmatprep.subr.mxu0 0.0
    %4395 = vmatpush1.msra.mxu0 0.0
    %4396 = vmatprep.subr.mxu0 0.0
    %4397 = vmatpush1.msra.mxu0 0.0
    %4398 = vmatprep.subr.mxu0 0.0
    %4399 = vmatpush1.msra.mxu0 0.0
    %4400 = vmatprep.subr.mxu0 0.0
    %4401 = vmatpush1.msra.mxu0 0.0
    %4402 = vmatprep.subr.mxu0 0.0
    %4403 = vmatpush1.msra.mxu0 0.0
    %4404 = vmatprep.subr.mxu0 0.0
    %4405 = vmatpush1.msra.mxu0 0.0
    %4406 = vmatprep.subr.mxu0 0.0
    %4407 = vmatpush1.msra.mxu0 0.0
    %4408 = vmatprep.subr.mxu0 0.0
    %4409 = vmatpush1.msra.mxu0 0.0
    %4410 = vmatprep.subr.mxu0 0.0
    %4411 = vmatpush1.msra.mxu0 0.0
    %4412 = vmatprep.subr.mxu0 0.0
    %4413 = vmatpush1.msra.mxu0 %v4165
    %4414 = vmatprep.subr.mxu0 0.0
    %4415 = vmatpush1.msra.mxu0 %v4162
    %4416 = vmatprep.subr.mxu0 0.0
    %4417 = vmatpush2.msra.mxu0 0.0
    %4418 = vmatprep.subr.mxu0 0.0
    %4419 = vmatpush2.msra.mxu0 0.0
    %4420 = vmatprep.subr.mxu0 0.0
    %4421 = vmatpush2.msra.mxu0 0.0
    %4422 = vmatprep.subr.mxu0 0.0
    %4423 = vmatpush2.msra.mxu0 0.0
    %4424 = vmatprep.subr.mxu0 0.0
    %4425 = vmatpush2.msra.mxu0 0.0
    %4426 = vmatprep.subr.mxu0 0.0
    %4427 = vmatpush2.msra.mxu0 0.0
    %4428 = vmatprep.subr.mxu0 0.0
    %4429 = vmatpush2.msra.mxu0 0.0
    %4430 = vmatprep.subr.mxu0 0.0
    %4431 = vmatpush2.msra.mxu0 0.0
    %4432 = vmatprep.subr.mxu0 0.0
    %4433 = vmatpush2.msra.mxu0 0.0
    %4434 = vmatprep.subr.mxu0 0.0
    %4435 = vmatpush2.msra.mxu0 0.0
    %4436 = vmatprep.subr.mxu0 0.0
    %4437 = vmatpush2.msra.mxu0 0.0
    %4438 = vmatprep.subr.mxu0 0.0
    %4439 = vmatpush2.msra.mxu0 0.0
    %4440 = vmatprep.subr.mxu0 0.0
    %4441 = vmatpush2.msra.mxu0 0.0
    %4442 = vmatprep.subr.mxu0 0.0
    %4443 = vmatpush2.msra.mxu0 0.0
    %4444 = vmatprep.subr.mxu0 0.0
    %4445 = vmatpush2.msra.mxu0 0.0
    %4446 = vmatprep.subr.mxu0 0.0
    %4447 = vmatpush2.msra.mxu0 0.0
    %4448 = vmatprep.mubr.f32.mxu0 0.0
    %4449 = vmatmul.mubr.f32.gmra.mxu0 %v4311
    %v4450 = vpop.f32.mrf.mxu0
    %v4451 = vadd.f32 0.0, %v4450
    %v4452 = vpop.f32.mrf.mxu0
    %4453 = vdwg.mxu0
    %v4454 = vlaneseq
    %v4455 = vshrl.u32 %v4454, 7
    %v4456 = vsub.s32 0, %v4455
    %v4457 = vrot.slane %v4236, %v4456
    %v4458 = vlaneseq
    %v4459 = vshrl.u32 %v4458, 7
    %v4460 = vsub.s32 0, %v4459
    %v4461 = vrot.slane %v4238, %v4460
    %v4462 = vlaneseq
    %v4463 = vshrl.u32 %v4462, 7
    %v4464 = vsub.s32 0, %v4463
    %v4465 = vrot.slane %v4307, %v4464
    %v4466 = vmul.f32 %v3740, %v4457
    %v4467 = vmul.f32 %v3741, %v4461
    %v4468 = vmul.f32 %v3742, %v4465
    %v4469 = vmul.f32 %v3743, %v4457
    %v4470 = vmul.f32 %v3744, %v4461
    %v4471 = vmul.f32 %v3745, %v4465
    %v4472 = vmul.f32 %v3746, %v4457
    %v4473 = vmul.f32 %v3747, %v4461
    %v4474 = vmul.f32 %v3748, %v4465
    %v4475 = vmul.f32 %v3749, %v4457
    %v4476 = vmul.f32 %v3750, %v4461
    %v4477 = vmul.f32 %v3751, %v4465
    %v4478 = vlaneseq
    %v4479 = vshrl.u32 %v4478, 7
    %v4480 = vsub.s32 0, %v4479
    %v4481 = vrot.slane %v4380, %v4480
    %v4482 = vlaneseq
    %v4483 = vshrl.u32 %v4482, 7
    %v4484 = vsub.s32 0, %v4483
    %v4485 = vrot.slane %v4382, %v4484
    %v4486 = vlaneseq
    %v4487 = vshrl.u32 %v4486, 7
    %v4488 = vsub.s32 0, %v4487
    %v4489 = vrot.slane %v4451, %v4488
    %v4490 = vadd.f32 %v4466, %v4481
    %v4491 = vadd.f32 %v4467, %v4485
    %v4492 = vadd.f32 %v4468, %v4489
    %v4493 = vadd.f32 %v4469, %v4481
    %v4494 = vadd.f32 %v4470, %v4485
    %v4495 = vadd.f32 %v4471, %v4489
    %v4496 = vadd.f32 %v4472, %v4481
    %v4497 = vadd.f32 %v4473, %v4485
    %v4498 = vadd.f32 %v4474, %v4489
    %v4499 = vadd.f32 %v4475, %v4481
    %v4500 = vadd.f32 %v4476, %v4485
    %v4501 = vadd.f32 %v4477, %v4489
    %v4514 = vrot.slane %v4490, 7
    %v4515 = vrot.slane %v4491, 7
    %v4516 = vrot.slane %v4492, 7
    %v4517 = vrot.slane %v4493, 7
    %v4518 = vsel %vm2102, %v4514, %v4517
    %v4519 = vrot.slane %v4494, 7
    %v4520 = vsel %vm2102, %v4515, %v4519
    %v4521 = vrot.slane %v4495, 7
    %v4522 = vsel %vm2102, %v4516, %v4521
    %v4523 = vrot.slane %v4496, 7
    %v4524 = vrot.slane %v4497, 7
    %v4525 = vrot.slane %v4498, 7
    %v4526 = vrot.slane %v4499, 7
    %v4527 = vsel %vm2102, %v4523, %v4526
    %v4528 = vrot.slane %v4500, 7
    %v4529 = vsel %vm2102, %v4524, %v4528
    %v4530 = vrot.slane %v4501, 7
    %v4531 = vsel %vm2102, %v4525, %v4530
    %4550 = vst [vmem:[#allocation4] sm:$0xfe] %v4514
    %4551 = vst [vmem:[#allocation4 + $0x8] sm:$0xfe] %v4515
    %4552 = vst.msk [vmem:[#allocation4 + $0x10] sm:$0xfe] %vm2141, %v4516
    %4553 = vst [vmem:[#allocation4 + $0x18] sm:$0xff] %v4518
    %4554 = vst [vmem:[#allocation4 + $0x20] sm:$0xff] %v4520
    %4555 = vst.msk [vmem:[#allocation4 + $0x28] sm:$0xff] %vm1356, %v4522
    %4556 = vst [vmem:[#allocation4 + $0x30] sm:$0x1] %v4517
    %4557 = vst [vmem:[#allocation4 + $0x38] sm:$0x1] %v4519
    %4558 = vst.msk [vmem:[#allocation4 + $0x40] sm:$0x1] %vm2148, %v4521
    %4559 = vst [vmem:[#allocation4 + $0x48] sm:$0xfe] %v4523
    %4560 = vst [vmem:[#allocation4 + $0x50] sm:$0xfe] %v4524
    %4561 = vst.msk [vmem:[#allocation4 + $0x58] sm:$0xfe] %vm2141, %v4525
    %4562 = vst [vmem:[#allocation4 + $0x60] sm:$0xff] %v4527
    %4563 = vst [vmem:[#allocation4 + $0x68] sm:$0xff] %v4529
    %4564 = vst.msk [vmem:[#allocation4 + $0x70] sm:$0xff] %vm1356, %v4531
    %4565 = vst [vmem:[#allocation4 + $0x78] sm:$0x1] %v4526
    %4566 = vst [vmem:[#allocation4 + $0x80] sm:$0x1] %v4528
    %4567 = vst.msk [vmem:[#allocation4 + $0x88] sm:$0x1] %vm2148, %v4530
    %v4568 = vld [vmem:[#allocation4] sm:$0xfe]
    %v4569 = vld [vmem:[#allocation4 + $0x8] sm:$0xfe]
    %v4570 = vld [vmem:[#allocation4 + $0x10] sm:$0xfe]
    %v4571 = vld [vmem:[#allocation4 + $0x18] sm:$0x7f]
    %v4572 = vld [vmem:[#allocation4 + $0x20] sm:$0x7f]
    %v4573 = vld [vmem:[#allocation4 + $0x28] sm:$0x7f]
    %v4574 = vld [vmem:[#allocation4 + $0x48] sm:$0xfe]
    %v4575 = vld [vmem:[#allocation4 + $0x50] sm:$0xfe]
    %v4576 = vld [vmem:[#allocation4 + $0x58] sm:$0xfe]
    %v4577 = vld [vmem:[#allocation4 + $0x60] sm:$0x7f]
    %v4578 = vld [vmem:[#allocation4 + $0x68] sm:$0x7f]
    %v4579 = vld [vmem:[#allocation4 + $0x70] sm:$0x7f]
    %v4592 = vrot.slane %v4568, 1
    %v4593 = vrot.slane %v4571, 1
    %v4594 = vsel %vm2309, %v4592, %v4593
    %v4595 = vrot.slane %v4569, 1
    %v4596 = vrot.slane %v4572, 1
    %v4597 = vsel %vm2309, %v4595, %v4596
    %v4598 = vrot.slane %v4570, 1
    %v4599 = vrot.slane %v4573, 1
    %v4600 = vsel %vm2309, %v4598, %v4599
    %v4601 = vrot.slane %v4574, 1
    %v4602 = vrot.slane %v4577, 1
    %v4603 = vsel %vm2309, %v4601, %v4602
    %v4604 = vrot.slane %v4575, 1
    %v4605 = vrot.slane %v4578, 1
    %v4606 = vsel %vm2309, %v4604, %v4605
    %v4607 = vrot.slane %v4576, 1
    %v4608 = vrot.slane %v4579, 1
    %v4609 = vsel %vm2309, %v4607, %v4608
    %v4622 = vsel %vm3195, %v4593, 0.0
    %v4623 = vadd.f32 %v4594, %v4622
    %v4624 = vrot.slane %v4623, 4
    %v4625 = vadd.f32 %v4623, %v4624
    %v4626 = vrot.slane %v4625, 2
    %v4627 = vadd.f32 %v4625, %v4626
    %v4628 = vrot.slane %v4627, 1
    %v4629 = vadd.f32 %v4627, %v4628
    %v4630 = vsel %vm3195, %v4596, 0.0
    %v4631 = vadd.f32 %v4597, %v4630
    %v4632 = vrot.slane %v4631, 4
    %v4633 = vadd.f32 %v4631, %v4632
    %v4634 = vrot.slane %v4633, 2
    %v4635 = vadd.f32 %v4633, %v4634
    %v4636 = vrot.slane %v4635, 1
    %v4637 = vadd.f32 %v4635, %v4636
    %v4638 = vsel %vm1356, %v4600, 0.0
    %vm4639 = vcmask 259072
    %v4640 = vsel %vm4639, %v4599, 0.0
    %v4641 = vadd.f32 %v4638, %v4640
    %v4642 = vrot.slane %v4641, 4
    %v4643 = vadd.f32 %v4641, %v4642
    %v4644 = vrot.slane %v4643, 2
    %v4645 = vadd.f32 %v4643, %v4644
    %v4646 = vrot.slane %v4645, 1
    %v4647 = vadd.f32 %v4645, %v4646
    %v4648 = vsel %vm3195, %v4602, 0.0
    %v4649 = vadd.f32 %v4603, %v4648
    %v4650 = vrot.slane %v4649, 4
    %v4651 = vadd.f32 %v4649, %v4650
    %v4652 = vrot.slane %v4651, 2
    %v4653 = vadd.f32 %v4651, %v4652
    %v4654 = vrot.slane %v4653, 1
    %v4655 = vadd.f32 %v4653, %v4654
    %v4656 = vsel %vm3195, %v4605, 0.0
    %v4657 = vadd.f32 %v4606, %v4656
    %v4658 = vrot.slane %v4657, 4
    %v4659 = vadd.f32 %v4657, %v4658
    %v4660 = vrot.slane %v4659, 2
    %v4661 = vadd.f32 %v4659, %v4660
    %v4662 = vrot.slane %v4661, 1
    %v4663 = vadd.f32 %v4661, %v4662
    %v4664 = vsel %vm1356, %v4609, 0.0
    %v4665 = vsel %vm4639, %v4608, 0.0
    %v4666 = vadd.f32 %v4664, %v4665
    %v4667 = vrot.slane %v4666, 4
    %v4668 = vadd.f32 %v4666, %v4667
    %v4669 = vrot.slane %v4668, 2
    %v4670 = vadd.f32 %v4668, %v4669
    %v4671 = vrot.slane %v4670, 1
    %v4672 = vadd.f32 %v4670, %v4671
    %v4673 = vld [vmem:[%s15] sm:$0xff]
    %v4674 = vld [vmem:[%s15 + $0x8] sm:$0xff]
    %v4675 = vld [vmem:[%s15 + $0x10] sm:$0xff]
    %v4676 = vld [vmem:[%s15 + $0x18] sm:$0xff]
    %v4677 = vld [vmem:[%s15 + $0x20] sm:$0xff]
    %v4678 = vld [vmem:[%s15 + $0x28] sm:$0xff]
    %v4679 = vld [vmem:[%s15 + $0x30] sm:$0xff]
    %v4680 = vld [vmem:[%s15 + $0x38] sm:$0xff]
    %v4681 = vld [vmem:[%s15 + $0x40] sm:$0xff]
    %v4682 = vld [vmem:[%s15 + $0x48] sm:$0xff]
    %v4683 = vld [vmem:[%s15 + $0x50] sm:$0xff]
    %v4684 = vld [vmem:[%s15 + $0x58] sm:$0xff]
    %v4685 = vld [vmem:[%s15 + $0x60] sm:$0xff]
    %v4686 = vld [vmem:[%s15 + $0x68] sm:$0xff]
    %v4687 = vld [vmem:[%s15 + $0x70] sm:$0xff]
    %v4688 = vld [vmem:[%s15 + $0x78] sm:$0xff]
    %v4689 = vld [vmem:[%s15 + $0x80] sm:$0xff]
    %v4690 = vld [vmem:[%s15 + $0x88] sm:$0xff]
    %v4691 = vld [vmem:[%s15 + $0x90] sm:$0xff]
    %v4692 = vld [vmem:[%s15 + $0x98] sm:$0xff]
    %v4693 = vld [vmem:[%s15 + $0xa0] sm:$0xff]
    %v4694 = vld [vmem:[%s15 + $0xa8] sm:$0xff]
    %v4695 = vld [vmem:[%s15 + $0xb0] sm:$0xff]
    %v4696 = vld [vmem:[%s15 + $0xb8] sm:$0xff]
    %v4697 = vld [vmem:[%s15 + $0xc0] sm:$0xff]
    %v4698 = vld [vmem:[%s15 + $0xc8] sm:$0xff]
    %v4699 = vld [vmem:[%s15 + $0xd0] sm:$0xff]
    %v4700 = vld [vmem:[%s15 + $0xd8] sm:$0xff]
    %v4701 = vld [vmem:[%s15 + $0xe0] sm:$0xff]
    %v4702 = vld [vmem:[%s15 + $0xe8] sm:$0xff]
    %v4703 = vld [vmem:[%s15 + $0xf0] sm:$0xff]
    %v4704 = vld [vmem:[%s15 + $0xf8] sm:$0xff]
    %v4705 = vld [vmem:[%s15 + $0x100] sm:$0xff]
    %v4706 = vld [vmem:[%s15 + $0x108] sm:$0xff]
    %v4707 = vld [vmem:[%s15 + $0x110] sm:$0xff]
    %v4708 = vld [vmem:[%s15 + $0x118] sm:$0xff]
    %v4709 = vld [vmem:[#allocation4] sm:$0xfc]
    %v4710 = vld [vmem:[#allocation4 + $0x8] sm:$0xfc]
    %v4711 = vld [vmem:[#allocation4 + $0x10] sm:$0xfc]
    %v4712 = vld [vmem:[#allocation4 + $0x18] sm:$0xff]
    %v4713 = vld [vmem:[#allocation4 + $0x20] sm:$0xff]
    %v4714 = vld [vmem:[#allocation4 + $0x28] sm:$0xff]
    %v4715 = vld [vmem:[#allocation4 + $0x48] sm:$0xfc]
    %v4716 = vld [vmem:[#allocation4 + $0x50] sm:$0xfc]
    %v4717 = vld [vmem:[#allocation4 + $0x58] sm:$0xfc]
    %v4718 = vld [vmem:[#allocation4 + $0x60] sm:$0xff]
    %v4719 = vld [vmem:[#allocation4 + $0x68] sm:$0xff]
    %v4720 = vld [vmem:[#allocation4 + $0x70] sm:$0xff]
    %v4733 = vrot.slane %v4709, 2
    %v4734 = vrot.slane %v4712, 2
    %v4735 = vsel %vm3195, %v4733, %v4734
    %v4736 = vrot.slane %v4710, 2
    %v4737 = vrot.slane %v4713, 2
    %v4738 = vsel %vm3195, %v4736, %v4737
    %v4739 = vrot.slane %v4711, 2
    %v4740 = vrot.slane %v4714, 2
    %v4741 = vsel %vm3195, %v4739, %v4740
    %v4742 = vrot.slane %v4715, 2
    %v4743 = vrot.slane %v4718, 2
    %v4744 = vsel %vm3195, %v4742, %v4743
    %v4745 = vrot.slane %v4716, 2
    %v4746 = vrot.slane %v4719, 2
    %v4747 = vsel %vm3195, %v4745, %v4746
    %v4748 = vrot.slane %v4717, 2
    %v4749 = vrot.slane %v4720, 2
    %v4750 = vsel %vm3195, %v4748, %v4749
    %v4763 = vsel %vm3195, %v4734, 0.0
    %v4764 = vadd.f32 %v4735, %v4763
    %v4765 = vrot.slane %v4764, 4
    %v4766 = vadd.f32 %v4764, %v4765
    %v4767 = vrot.slane %v4766, 2
    %v4768 = vadd.f32 %v4766, %v4767
    %v4769 = vrot.slane %v4768, 1
    %v4770 = vadd.f32 %v4768, %v4769
    %v4771 = vsel %vm3195, %v4737, 0.0
    %v4772 = vadd.f32 %v4738, %v4771
    %v4773 = vrot.slane %v4772, 4
    %v4774 = vadd.f32 %v4772, %v4773
    %v4775 = vrot.slane %v4774, 2
    %v4776 = vadd.f32 %v4774, %v4775
    %v4777 = vrot.slane %v4776, 1
    %v4778 = vadd.f32 %v4776, %v4777
    %v4779 = vsel %vm1356, %v4741, 0.0
    %v4780 = vsel %vm4639, %v4740, 0.0
    %v4781 = vadd.f32 %v4779, %v4780
    %v4782 = vrot.slane %v4781, 4
    %v4783 = vadd.f32 %v4781, %v4782
    %v4784 = vrot.slane %v4783, 2
    %v4785 = vadd.f32 %v4783, %v4784
    %v4786 = vrot.slane %v4785, 1
    %v4787 = vadd.f32 %v4785, %v4786
    %v4788 = vsel %vm3195, %v4743, 0.0
    %v4789 = vadd.f32 %v4744, %v4788
    %v4790 = vrot.slane %v4789, 4
    %v4791 = vadd.f32 %v4789, %v4790
    %v4792 = vrot.slane %v4791, 2
    %v4793 = vadd.f32 %v4791, %v4792
    %v4794 = vrot.slane %v4793, 1
    %v4795 = vadd.f32 %v4793, %v4794
    %v4796 = vsel %vm3195, %v4746, 0.0
    %v4797 = vadd.f32 %v4747, %v4796
    %v4798 = vrot.slane %v4797, 4
    %v4799 = vadd.f32 %v4797, %v4798
    %v4800 = vrot.slane %v4799, 2
    %v4801 = vadd.f32 %v4799, %v4800
    %v4802 = vrot.slane %v4801, 1
    %v4803 = vadd.f32 %v4801, %v4802
    %v4804 = vsel %vm1356, %v4750, 0.0
    %v4805 = vsel %vm4639, %v4749, 0.0
    %v4806 = vadd.f32 %v4804, %v4805
    %v4807 = vrot.slane %v4806, 4
    %v4808 = vadd.f32 %v4806, %v4807
    %v4809 = vrot.slane %v4808, 2
    %v4810 = vadd.f32 %v4808, %v4809
    %v4811 = vrot.slane %v4810, 1
    %v4812 = vadd.f32 %v4810, %v4811
    %s4813 = scalar_lea.vmem %s15, 288
    %v4814 = vld [vmem:[%s4813] sm:$0xff]
    %v4815 = vld [vmem:[%s4813 + $0x8] sm:$0xff]
    %v4816 = vld [vmem:[%s4813 + $0x10] sm:$0xff]
    %v4817 = vld [vmem:[%s4813 + $0x18] sm:$0xff]
    %v4818 = vld [vmem:[%s4813 + $0x20] sm:$0xff]
    %v4819 = vld [vmem:[%s4813 + $0x28] sm:$0xff]
    %v4820 = vld [vmem:[%s4813 + $0x30] sm:$0xff]
    %v4821 = vld [vmem:[%s4813 + $0x38] sm:$0xff]
    %v4822 = vld [vmem:[%s4813 + $0x40] sm:$0xff]
    %v4823 = vld [vmem:[%s4813 + $0x48] sm:$0xff]
    %v4824 = vld [vmem:[%s4813 + $0x50] sm:$0xff]
    %v4825 = vld [vmem:[%s4813 + $0x58] sm:$0xff]
    %v4826 = vld [vmem:[%s4813 + $0x60] sm:$0xff]
    %v4827 = vld [vmem:[%s4813 + $0x68] sm:$0xff]
    %v4828 = vld [vmem:[%s4813 + $0x70] sm:$0xff]
    %v4829 = vld [vmem:[%s4813 + $0x78] sm:$0xff]
    %v4830 = vld [vmem:[%s4813 + $0x80] sm:$0xff]
    %v4831 = vld [vmem:[%s4813 + $0x88] sm:$0xff]
    %v4832 = vld [vmem:[%s4813 + $0x90] sm:$0xff]
    %v4833 = vld [vmem:[%s4813 + $0x98] sm:$0xff]
    %v4834 = vld [vmem:[%s4813 + $0xa0] sm:$0xff]
    %v4835 = vld [vmem:[%s4813 + $0xa8] sm:$0xff]
    %v4836 = vld [vmem:[%s4813 + $0xb0] sm:$0xff]
    %v4837 = vld [vmem:[%s4813 + $0xb8] sm:$0xff]
    %v4838 = vld [vmem:[%s4813 + $0xc0] sm:$0xff]
    %v4839 = vld [vmem:[%s4813 + $0xc8] sm:$0xff]
    %v4840 = vld [vmem:[%s4813 + $0xd0] sm:$0xff]
    %v4841 = vld [vmem:[%s4813 + $0xd8] sm:$0xff]
    %v4842 = vld [vmem:[%s4813 + $0xe0] sm:$0xff]
    %v4843 = vld [vmem:[%s4813 + $0xe8] sm:$0xff]
    %v4844 = vld [vmem:[%s4813 + $0xf0] sm:$0xff]
    %v4845 = vld [vmem:[%s4813 + $0xf8] sm:$0xff]
    %v4846 = vld [vmem:[%s4813 + $0x100] sm:$0xff]
    %v4847 = vld [vmem:[%s4813 + $0x108] sm:$0xff]
    %v4848 = vld [vmem:[%s4813 + $0x110] sm:$0xff]
    %v4849 = vld [vmem:[%s4813 + $0x118] sm:$0xff]
    %vm4856 = vcmask 1041409
    %v4857 = vsel %vm4856, %v4795, %v4770
    %v4858 = vsel %vm4856, %v4803, %v4778
    %v4859 = vsel %vm4856, %v4812, %v4787
    %v4862 = vsel %vm1356, %v4859, 0
    %4864 = vmatprep.subr.mxu0 0.0
    %4865 = vmatpush1.msra.mxu0 %v4829
    %4866 = vmatprep.subr.mxu0 0.0
    %4867 = vmatpush1.msra.mxu0 %v4828
    %4868 = vmatprep.subr.mxu0 0.0
    %4869 = vmatpush1.msra.mxu0 %v4827
    %4870 = vmatprep.subr.mxu0 0.0
    %4871 = vmatpush1.msra.mxu0 %v4826
    %4872 = vmatprep.subr.mxu0 0.0
    %4873 = vmatpush1.msra.mxu0 %v4825
    %4874 = vmatprep.subr.mxu0 0.0
    %4875 = vmatpush1.msra.mxu0 %v4824
    %4876 = vmatprep.subr.mxu0 0.0
    %4877 = vmatpush1.msra.mxu0 %v4823
    %4878 = vmatprep.subr.mxu0 0.0
    %4879 = vmatpush1.msra.mxu0 %v4822
    %4880 = vmatprep.subr.mxu0 0.0
    %4881 = vmatpush1.msra.mxu0 %v4821
    %4882 = vmatprep.subr.mxu0 0.0
    %4883 = vmatpush1.msra.mxu0 %v4820
    %4884 = vmatprep.subr.mxu0 0.0
    %4885 = vmatpush1.msra.mxu0 %v4819
    %4886 = vmatprep.subr.mxu0 0.0
    %4887 = vmatpush1.msra.mxu0 %v4818
    %4888 = vmatprep.subr.mxu0 0.0
    %4889 = vmatpush1.msra.mxu0 %v4817
    %4890 = vmatprep.subr.mxu0 0.0
    %4891 = vmatpush1.msra.mxu0 %v4816
    %4892 = vmatprep.subr.mxu0 0.0
    %4893 = vmatpush1.msra.mxu0 %v4815
    %4894 = vmatprep.subr.mxu0 0.0
    %4895 = vmatpush1.msra.mxu0 %v4814
    %4896 = vmatprep.subr.mxu0 0.0
    %4897 = vmatpush2.msra.mxu0 %v4845
    %4898 = vmatprep.subr.mxu0 0.0
    %4899 = vmatpush2.msra.mxu0 %v4844
    %4900 = vmatprep.subr.mxu0 0.0
    %4901 = vmatpush2.msra.mxu0 %v4843
    %4902 = vmatprep.subr.mxu0 0.0
    %4903 = vmatpush2.msra.mxu0 %v4842
    %4904 = vmatprep.subr.mxu0 0.0
    %4905 = vmatpush2.msra.mxu0 %v4841
    %4906 = vmatprep.subr.mxu0 0.0
    %4907 = vmatpush2.msra.mxu0 %v4840
    %4908 = vmatprep.subr.mxu0 0.0
    %4909 = vmatpush2.msra.mxu0 %v4839
    %4910 = vmatprep.subr.mxu0 0.0
    %4911 = vmatpush2.msra.mxu0 %v4838
    %4912 = vmatprep.subr.mxu0 0.0
    %4913 = vmatpush2.msra.mxu0 %v4837
    %4914 = vmatprep.subr.mxu0 0.0
    %4915 = vmatpush2.msra.mxu0 %v4836
    %4916 = vmatprep.subr.mxu0 0.0
    %4917 = vmatpush2.msra.mxu0 %v4835
    %4918 = vmatprep.subr.mxu0 0.0
    %4919 = vmatpush2.msra.mxu0 %v4834
    %4920 = vmatprep.subr.mxu0 0.0
    %4921 = vmatpush2.msra.mxu0 %v4833
    %4922 = vmatprep.subr.mxu0 0.0
    %4923 = vmatpush2.msra.mxu0 %v4832
    %4924 = vmatprep.subr.mxu0 0.0
    %4925 = vmatpush2.msra.mxu0 %v4831
    %4926 = vmatprep.subr.mxu0 0.0
    %4927 = vmatpush2.msra.mxu0 %v4830
    %4928 = vmatprep.mubr.f32.mxu0 %v4858
    %4929 = vmatmul.mubr.f32.gmra.mxu0 %v4857
    %v4930 = vpop.f32.mrf.mxu0
    %v4931 = vadd.f32 0.0, %v4930
    %v4932 = vpop.f32.mrf.mxu0
    %4933 = vdwg.mxu0
    %4934 = vmatprep.subr.mxu0 0.0
    %4935 = vmatpush1.msra.mxu0 0.0
    %4936 = vmatprep.subr.mxu0 0.0
    %4937 = vmatpush1.msra.mxu0 0.0
    %4938 = vmatprep.subr.mxu0 0.0
    %4939 = vmatpush1.msra.mxu0 0.0
    %4940 = vmatprep.subr.mxu0 0.0
    %4941 = vmatpush1.msra.mxu0 0.0
    %4942 = vmatprep.subr.mxu0 0.0
    %4943 = vmatpush1.msra.mxu0 0.0
    %4944 = vmatprep.subr.mxu0 0.0
    %4945 = vmatpush1.msra.mxu0 0.0
    %4946 = vmatprep.subr.mxu0 0.0
    %4947 = vmatpush1.msra.mxu0 0.0
    %4948 = vmatprep.subr.mxu0 0.0
    %4949 = vmatpush1.msra.mxu0 0.0
    %4950 = vmatprep.subr.mxu0 0.0
    %4951 = vmatpush1.msra.mxu0 0.0
    %4952 = vmatprep.subr.mxu0 0.0
    %4953 = vmatpush1.msra.mxu0 0.0
    %4954 = vmatprep.subr.mxu0 0.0
    %4955 = vmatpush1.msra.mxu0 0.0
    %4956 = vmatprep.subr.mxu0 0.0
    %4957 = vmatpush1.msra.mxu0 0.0
    %4958 = vmatprep.subr.mxu0 0.0
    %4959 = vmatpush1.msra.mxu0 %v4849
    %4960 = vmatprep.subr.mxu0 0.0
    %4961 = vmatpush1.msra.mxu0 %v4848
    %4962 = vmatprep.subr.mxu0 0.0
    %4963 = vmatpush1.msra.mxu0 %v4847
    %4964 = vmatprep.subr.mxu0 0.0
    %4965 = vmatpush1.msra.mxu0 %v4846
    %4966 = vmatprep.subr.mxu0 0.0
    %4967 = vmatpush2.msra.mxu0 0.0
    %4968 = vmatprep.subr.mxu0 0.0
    %4969 = vmatpush2.msra.mxu0 0.0
    %4970 = vmatprep.subr.mxu0 0.0
    %4971 = vmatpush2.msra.mxu0 0.0
    %4972 = vmatprep.subr.mxu0 0.0
    %4973 = vmatpush2.msra.mxu0 0.0
    %4974 = vmatprep.subr.mxu0 0.0
    %4975 = vmatpush2.msra.mxu0 0.0
    %4976 = vmatprep.subr.mxu0 0.0
    %4977 = vmatpush2.msra.mxu0 0.0
    %4978 = vmatprep.subr.mxu0 0.0
    %4979 = vmatpush2.msra.mxu0 0.0
    %4980 = vmatprep.subr.mxu0 0.0
    %4981 = vmatpush2.msra.mxu0 0.0
    %4982 = vmatprep.subr.mxu0 0.0
    %4983 = vmatpush2.msra.mxu0 0.0
    %4984 = vmatprep.subr.mxu0 0.0
    %4985 = vmatpush2.msra.mxu0 0.0
    %4986 = vmatprep.subr.mxu0 0.0
    %4987 = vmatpush2.msra.mxu0 0.0
    %4988 = vmatprep.subr.mxu0 0.0
    %4989 = vmatpush2.msra.mxu0 0.0
    %4990 = vmatprep.subr.mxu0 0.0
    %4991 = vmatpush2.msra.mxu0 0.0
    %4992 = vmatprep.subr.mxu0 0.0
    %4993 = vmatpush2.msra.mxu0 0.0
    %4994 = vmatprep.subr.mxu0 0.0
    %4995 = vmatpush2.msra.mxu0 0.0
    %4996 = vmatprep.subr.mxu0 0.0
    %4997 = vmatpush2.msra.mxu0 0.0
    %4998 = vmatprep.mubr.f32.mxu0 0.0
    %4999 = vmatmul.mubr.f32.gmra.mxu0 %v4862
    %v5000 = vpop.f32.mrf.mxu0
    %v5001 = vadd.f32 %v4931, %v5000
    %v5002 = vpop.f32.mrf.mxu0
    %5003 = vdwg.mxu0
    %v5010 = vsel %vm4856, %v4655, %v4629
    %v5011 = vsel %vm4856, %v4663, %v4637
    %v5012 = vsel %vm4856, %v4672, %v4647
    %v5015 = vsel %vm1356, %v5012, 0
    %5017 = vmatprep.subr.mxu0 0.0
    %5018 = vmatpush1.msra.mxu0 %v4688
    %5019 = vmatprep.subr.mxu0 0.0
    %5020 = vmatpush1.msra.mxu0 %v4687
    %5021 = vmatprep.subr.mxu0 0.0
    %5022 = vmatpush1.msra.mxu0 %v4686
    %5023 = vmatprep.subr.mxu0 0.0
    %5024 = vmatpush1.msra.mxu0 %v4685
    %5025 = vmatprep.subr.mxu0 0.0
    %5026 = vmatpush1.msra.mxu0 %v4684
    %5027 = vmatprep.subr.mxu0 0.0
    %5028 = vmatpush1.msra.mxu0 %v4683
    %5029 = vmatprep.subr.mxu0 0.0
    %5030 = vmatpush1.msra.mxu0 %v4682
    %5031 = vmatprep.subr.mxu0 0.0
    %5032 = vmatpush1.msra.mxu0 %v4681
    %5033 = vmatprep.subr.mxu0 0.0
    %5034 = vmatpush1.msra.mxu0 %v4680
    %5035 = vmatprep.subr.mxu0 0.0
    %5036 = vmatpush1.msra.mxu0 %v4679
    %5037 = vmatprep.subr.mxu0 0.0
    %5038 = vmatpush1.msra.mxu0 %v4678
    %5039 = vmatprep.subr.mxu0 0.0
    %5040 = vmatpush1.msra.mxu0 %v4677
    %5041 = vmatprep.subr.mxu0 0.0
    %5042 = vmatpush1.msra.mxu0 %v4676
    %5043 = vmatprep.subr.mxu0 0.0
    %5044 = vmatpush1.msra.mxu0 %v4675
    %5045 = vmatprep.subr.mxu0 0.0
    %5046 = vmatpush1.msra.mxu0 %v4674
    %5047 = vmatprep.subr.mxu0 0.0
    %5048 = vmatpush1.msra.mxu0 %v4673
    %5049 = vmatprep.subr.mxu0 0.0
    %5050 = vmatpush2.msra.mxu0 %v4704
    %5051 = vmatprep.subr.mxu0 0.0
    %5052 = vmatpush2.msra.mxu0 %v4703
    %5053 = vmatprep.subr.mxu0 0.0
    %5054 = vmatpush2.msra.mxu0 %v4702
    %5055 = vmatprep.subr.mxu0 0.0
    %5056 = vmatpush2.msra.mxu0 %v4701
    %5057 = vmatprep.subr.mxu0 0.0
    %5058 = vmatpush2.msra.mxu0 %v4700
    %5059 = vmatprep.subr.mxu0 0.0
    %5060 = vmatpush2.msra.mxu0 %v4699
    %5061 = vmatprep.subr.mxu0 0.0
    %5062 = vmatpush2.msra.mxu0 %v4698
    %5063 = vmatprep.subr.mxu0 0.0
    %5064 = vmatpush2.msra.mxu0 %v4697
    %5065 = vmatprep.subr.mxu0 0.0
    %5066 = vmatpush2.msra.mxu0 %v4696
    %5067 = vmatprep.subr.mxu0 0.0
    %5068 = vmatpush2.msra.mxu0 %v4695
    %5069 = vmatprep.subr.mxu0 0.0
    %5070 = vmatpush2.msra.mxu0 %v4694
    %5071 = vmatprep.subr.mxu0 0.0
    %5072 = vmatpush2.msra.mxu0 %v4693
    %5073 = vmatprep.subr.mxu0 0.0
    %5074 = vmatpush2.msra.mxu0 %v4692
    %5075 = vmatprep.subr.mxu0 0.0
    %5076 = vmatpush2.msra.mxu0 %v4691
    %5077 = vmatprep.subr.mxu0 0.0
    %5078 = vmatpush2.msra.mxu0 %v4690
    %5079 = vmatprep.subr.mxu0 0.0
    %5080 = vmatpush2.msra.mxu0 %v4689
    %5081 = vmatprep.mubr.f32.mxu0 %v5011
    %5082 = vmatmul.mubr.f32.gmra.mxu0 %v5010
    %v5083 = vpop.f32.mrf.mxu0
    %v5084 = vadd.f32 %v5001, %v5083
    %v5085 = vpop.f32.mrf.mxu0
    %5086 = vdwg.mxu0
    %5087 = vmatprep.subr.mxu0 0.0
    %5088 = vmatpush1.msra.mxu0 0.0
    %5089 = vmatprep.subr.mxu0 0.0
    %5090 = vmatpush1.msra.mxu0 0.0
    %5091 = vmatprep.subr.mxu0 0.0
    %5092 = vmatpush1.msra.mxu0 0.0
    %5093 = vmatprep.subr.mxu0 0.0
    %5094 = vmatpush1.msra.mxu0 0.0
    %5095 = vmatprep.subr.mxu0 0.0
    %5096 = vmatpush1.msra.mxu0 0.0
    %5097 = vmatprep.subr.mxu0 0.0
    %5098 = vmatpush1.msra.mxu0 0.0
    %5099 = vmatprep.subr.mxu0 0.0
    %5100 = vmatpush1.msra.mxu0 0.0
    %5101 = vmatprep.subr.mxu0 0.0
    %5102 = vmatpush1.msra.mxu0 0.0
    %5103 = vmatprep.subr.mxu0 0.0
    %5104 = vmatpush1.msra.mxu0 0.0
    %5105 = vmatprep.subr.mxu0 0.0
    %5106 = vmatpush1.msra.mxu0 0.0
    %5107 = vmatprep.subr.mxu0 0.0
    %5108 = vmatpush1.msra.mxu0 0.0
    %5109 = vmatprep.subr.mxu0 0.0
    %5110 = vmatpush1.msra.mxu0 0.0
    %5111 = vmatprep.subr.mxu0 0.0
    %5112 = vmatpush1.msra.mxu0 %v4708
    %5113 = vmatprep.subr.mxu0 0.0
    %5114 = vmatpush1.msra.mxu0 %v4707
    %5115 = vmatprep.subr.mxu0 0.0
    %5116 = vmatpush1.msra.mxu0 %v4706
    %5117 = vmatprep.subr.mxu0 0.0
    %5118 = vmatpush1.msra.mxu0 %v4705
    %5119 = vmatprep.subr.mxu0 0.0
    %5120 = vmatpush2.msra.mxu0 0.0
    %5121 = vmatprep.subr.mxu0 0.0
    %5122 = vmatpush2.msra.mxu0 0.0
    %5123 = vmatprep.subr.mxu0 0.0
    %5124 = vmatpush2.msra.mxu0 0.0
    %5125 = vmatprep.subr.mxu0 0.0
    %5126 = vmatpush2.msra.mxu0 0.0
    %5127 = vmatprep.subr.mxu0 0.0
    %5128 = vmatpush2.msra.mxu0 0.0
    %5129 = vmatprep.subr.mxu0 0.0
    %5130 = vmatpush2.msra.mxu0 0.0
    %5131 = vmatprep.subr.mxu0 0.0
    %5132 = vmatpush2.msra.mxu0 0.0
    %5133 = vmatprep.subr.mxu0 0.0
    %5134 = vmatpush2.msra.mxu0 0.0
    %5135 = vmatprep.subr.mxu0 0.0
    %5136 = vmatpush2.msra.mxu0 0.0
    %5137 = vmatprep.subr.mxu0 0.0
    %5138 = vmatpush2.msra.mxu0 0.0
    %5139 = vmatprep.subr.mxu0 0.0
    %5140 = vmatpush2.msra.mxu0 0.0
    %5141 = vmatprep.subr.mxu0 0.0
    %5142 = vmatpush2.msra.mxu0 0.0
    %5143 = vmatprep.subr.mxu0 0.0
    %5144 = vmatpush2.msra.mxu0 0.0
    %5145 = vmatprep.subr.mxu0 0.0
    %5146 = vmatpush2.msra.mxu0 0.0
    %5147 = vmatprep.subr.mxu0 0.0
    %5148 = vmatpush2.msra.mxu0 0.0
    %5149 = vmatprep.subr.mxu0 0.0
    %5150 = vmatpush2.msra.mxu0 0.0
    %5151 = vmatprep.mubr.f32.mxu0 0.0
    %5152 = vmatmul.mubr.f32.gmra.mxu0 %v5015
    %v5153 = vpop.f32.mrf.mxu0
    %v5154 = vadd.f32 %v5084, %v5153
    %v5155 = vpop.f32.mrf.mxu0
    %5156 = vdwg.mxu0
    %v5157 = vld [vmem:[#allocation4] sm:$0xf8]
    %v5158 = vld [vmem:[#allocation4 + $0x8] sm:$0xf8]
    %v5159 = vld [vmem:[#allocation4 + $0x10] sm:$0xf8]
    %v5160 = vld [vmem:[#allocation4 + $0x18] sm:$0xff]
    %v5161 = vld [vmem:[#allocation4 + $0x20] sm:$0xff]
    %v5162 = vld [vmem:[#allocation4 + $0x28] sm:$0xff]
    %v5163 = vld [vmem:[#allocation4 + $0x30] sm:$0x1]
    %v5164 = vld [vmem:[#allocation4 + $0x38] sm:$0x1]
    %v5165 = vld [vmem:[#allocation4 + $0x40] sm:$0x1]
    %v5166 = vld [vmem:[#allocation4 + $0x48] sm:$0xf8]
    %v5167 = vld [vmem:[#allocation4 + $0x50] sm:$0xf8]
    %v5168 = vld [vmem:[#allocation4 + $0x58] sm:$0xf8]
    %v5169 = vld [vmem:[#allocation4 + $0x60] sm:$0xff]
    %v5170 = vld [vmem:[#allocation4 + $0x68] sm:$0xff]
    %v5171 = vld [vmem:[#allocation4 + $0x70] sm:$0xff]
    %v5172 = vld [vmem:[#allocation4 + $0x78] sm:$0x1]
    %v5173 = vld [vmem:[#allocation4 + $0x80] sm:$0x1]
    %v5174 = vld [vmem:[#allocation4 + $0x88] sm:$0x1]
    %vm5193 = vcmask 1044480
    %v5194 = vrot.slane %v5157, 3
    %v5195 = vrot.slane %v5160, 3
    %v5196 = vsel %vm5193, %v5194, %v5195
    %v5197 = vrot.slane %v5158, 3
    %v5198 = vrot.slane %v5161, 3
    %v5199 = vsel %vm5193, %v5197, %v5198
    %v5200 = vrot.slane %v5159, 3
    %v5201 = vrot.slane %v5162, 3
    %v5202 = vsel %vm5193, %v5200, %v5201
    %v5203 = vrot.slane %v5163, 3
    %v5204 = vsel %vm5193, %v5195, %v5203
    %v5205 = vrot.slane %v5164, 3
    %v5206 = vsel %vm5193, %v5198, %v5205
    %v5207 = vrot.slane %v5165, 3
    %v5208 = vsel %vm5193, %v5201, %v5207
    %v5209 = vrot.slane %v5166, 3
    %v5210 = vrot.slane %v5169, 3
    %v5211 = vsel %vm5193, %v5209, %v5210
    %v5212 = vrot.slane %v5167, 3
    %v5213 = vrot.slane %v5170, 3
    %v5214 = vsel %vm5193, %v5212, %v5213
    %v5215 = vrot.slane %v5168, 3
    %v5216 = vrot.slane %v5171, 3
    %v5217 = vsel %vm5193, %v5215, %v5216
    %v5218 = vrot.slane %v5172, 3
    %v5219 = vsel %vm5193, %v5210, %v5218
    %v5220 = vrot.slane %v5173, 3
    %v5221 = vsel %vm5193, %v5213, %v5220
    %v5222 = vrot.slane %v5174, 3
    %v5223 = vsel %vm5193, %v5216, %v5222
    %v5236 = vsel %vm3195, %v5204, 0.0
    %v5237 = vadd.f32 %v5196, %v5236
    %v5238 = vrot.slane %v5237, 4
    %v5239 = vadd.f32 %v5237, %v5238
    %v5240 = vrot.slane %v5239, 2
    %v5241 = vadd.f32 %v5239, %v5240
    %v5242 = vrot.slane %v5241, 1
    %v5243 = vadd.f32 %v5241, %v5242
    %v5244 = vsel %vm3195, %v5206, 0.0
    %v5245 = vadd.f32 %v5199, %v5244
    %v5246 = vrot.slane %v5245, 4
    %v5247 = vadd.f32 %v5245, %v5246
    %v5248 = vrot.slane %v5247, 2
    %v5249 = vadd.f32 %v5247, %v5248
    %v5250 = vrot.slane %v5249, 1
    %v5251 = vadd.f32 %v5249, %v5250
    %v5252 = vsel %vm1356, %v5202, 0.0
    %v5253 = vsel %vm4639, %v5208, 0.0
    %v5254 = vadd.f32 %v5252, %v5253
    %v5255 = vrot.slane %v5254, 4
    %v5256 = vadd.f32 %v5254, %v5255
    %v5257 = vrot.slane %v5256, 2
    %v5258 = vadd.f32 %v5256, %v5257
    %v5259 = vrot.slane %v5258, 1
    %v5260 = vadd.f32 %v5258, %v5259
    %v5261 = vsel %vm3195, %v5219, 0.0
    %v5262 = vadd.f32 %v5211, %v5261
    %v5263 = vrot.slane %v5262, 4
    %v5264 = vadd.f32 %v5262, %v5263
    %v5265 = vrot.slane %v5264, 2
    %v5266 = vadd.f32 %v5264, %v5265
    %v5267 = vrot.slane %v5266, 1
    %v5268 = vadd.f32 %v5266, %v5267
    %v5269 = vsel %vm3195, %v5221, 0.0
    %v5270 = vadd.f32 %v5214, %v5269
    %v5271 = vrot.slane %v5270, 4
    %v5272 = vadd.f32 %v5270, %v5271
    %v5273 = vrot.slane %v5272, 2
    %v5274 = vadd.f32 %v5272, %v5273
    %v5275 = vrot.slane %v5274, 1
    %v5276 = vadd.f32 %v5274, %v5275
    %v5277 = vsel %vm1356, %v5217, 0.0
    %v5278 = vsel %vm4639, %v5223, 0.0
    %v5279 = vadd.f32 %v5277, %v5278
    %v5280 = vrot.slane %v5279, 4
    %v5281 = vadd.f32 %v5279, %v5280
    %v5282 = vrot.slane %v5281, 2
    %v5283 = vadd.f32 %v5281, %v5282
    %v5284 = vrot.slane %v5283, 1
    %v5285 = vadd.f32 %v5283, %v5284
    %s5286 = scalar_lea.vmem %s15, 576
    %v5287 = vld [vmem:[%s5286] sm:$0xff]
    %v5288 = vld [vmem:[%s5286 + $0x8] sm:$0xff]
    %v5289 = vld [vmem:[%s5286 + $0x10] sm:$0xff]
    %v5290 = vld [vmem:[%s5286 + $0x18] sm:$0xff]
    %v5291 = vld [vmem:[%s5286 + $0x20] sm:$0xff]
    %v5292 = vld [vmem:[%s5286 + $0x28] sm:$0xff]
    %v5293 = vld [vmem:[%s5286 + $0x30] sm:$0xff]
    %v5294 = vld [vmem:[%s5286 + $0x38] sm:$0xff]
    %v5295 = vld [vmem:[%s5286 + $0x40] sm:$0xff]
    %v5296 = vld [vmem:[%s5286 + $0x48] sm:$0xff]
    %v5297 = vld [vmem:[%s5286 + $0x50] sm:$0xff]
    %v5298 = vld [vmem:[%s5286 + $0x58] sm:$0xff]
    %v5299 = vld [vmem:[%s5286 + $0x60] sm:$0xff]
    %v5300 = vld [vmem:[%s5286 + $0x68] sm:$0xff]
    %v5301 = vld [vmem:[%s5286 + $0x70] sm:$0xff]
    %v5302 = vld [vmem:[%s5286 + $0x78] sm:$0xff]
    %v5303 = vld [vmem:[%s5286 + $0x80] sm:$0xff]
    %v5304 = vld [vmem:[%s5286 + $0x88] sm:$0xff]
    %v5305 = vld [vmem:[%s5286 + $0x90] sm:$0xff]
    %v5306 = vld [vmem:[%s5286 + $0x98] sm:$0xff]
    %v5307 = vld [vmem:[%s5286 + $0xa0] sm:$0xff]
    %v5308 = vld [vmem:[%s5286 + $0xa8] sm:$0xff]
    %v5309 = vld [vmem:[%s5286 + $0xb0] sm:$0xff]
    %v5310 = vld [vmem:[%s5286 + $0xb8] sm:$0xff]
    %v5311 = vld [vmem:[%s5286 + $0xc0] sm:$0xff]
    %v5312 = vld [vmem:[%s5286 + $0xc8] sm:$0xff]
    %v5313 = vld [vmem:[%s5286 + $0xd0] sm:$0xff]
    %v5314 = vld [vmem:[%s5286 + $0xd8] sm:$0xff]
    %v5315 = vld [vmem:[%s5286 + $0xe0] sm:$0xff]
    %v5316 = vld [vmem:[%s5286 + $0xe8] sm:$0xff]
    %v5317 = vld [vmem:[%s5286 + $0xf0] sm:$0xff]
    %v5318 = vld [vmem:[%s5286 + $0xf8] sm:$0xff]
    %v5319 = vld [vmem:[%s5286 + $0x100] sm:$0xff]
    %v5320 = vld [vmem:[%s5286 + $0x108] sm:$0xff]
    %v5321 = vld [vmem:[%s5286 + $0x110] sm:$0xff]
    %v5322 = vld [vmem:[%s5286 + $0x118] sm:$0xff]
    %v5329 = vsel %vm4856, %v5268, %v5243
    %v5330 = vsel %vm4856, %v5276, %v5251
    %v5331 = vsel %vm4856, %v5285, %v5260
    %v5334 = vsel %vm1356, %v5331, 0
    %5336 = vmatprep.subr.mxu0 0.0
    %5337 = vmatpush1.msra.mxu0 %v5302
    %5338 = vmatprep.subr.mxu0 0.0
    %5339 = vmatpush1.msra.mxu0 %v5301
    %5340 = vmatprep.subr.mxu0 0.0
    %5341 = vmatpush1.msra.mxu0 %v5300
    %5342 = vmatprep.subr.mxu0 0.0
    %5343 = vmatpush1.msra.mxu0 %v5299
    %5344 = vmatprep.subr.mxu0 0.0
    %5345 = vmatpush1.msra.mxu0 %v5298
    %5346 = vmatprep.subr.mxu0 0.0
    %5347 = vmatpush1.msra.mxu0 %v5297
    %5348 = vmatprep.subr.mxu0 0.0
    %5349 = vmatpush1.msra.mxu0 %v5296
    %5350 = vmatprep.subr.mxu0 0.0
    %5351 = vmatpush1.msra.mxu0 %v5295
    %5352 = vmatprep.subr.mxu0 0.0
    %5353 = vmatpush1.msra.mxu0 %v5294
    %5354 = vmatprep.subr.mxu0 0.0
    %5355 = vmatpush1.msra.mxu0 %v5293
    %5356 = vmatprep.subr.mxu0 0.0
    %5357 = vmatpush1.msra.mxu0 %v5292
    %5358 = vmatprep.subr.mxu0 0.0
    %5359 = vmatpush1.msra.mxu0 %v5291
    %5360 = vmatprep.subr.mxu0 0.0
    %5361 = vmatpush1.msra.mxu0 %v5290
    %5362 = vmatprep.subr.mxu0 0.0
    %5363 = vmatpush1.msra.mxu0 %v5289
    %5364 = vmatprep.subr.mxu0 0.0
    %5365 = vmatpush1.msra.mxu0 %v5288
    %5366 = vmatprep.subr.mxu0 0.0
    %5367 = vmatpush1.msra.mxu0 %v5287
    %5368 = vmatprep.subr.mxu0 0.0
    %5369 = vmatpush2.msra.mxu0 %v5318
    %5370 = vmatprep.subr.mxu0 0.0
    %5371 = vmatpush2.msra.mxu0 %v5317
    %5372 = vmatprep.subr.mxu0 0.0
    %5373 = vmatpush2.msra.mxu0 %v5316
    %5374 = vmatprep.subr.mxu0 0.0
    %5375 = vmatpush2.msra.mxu0 %v5315
    %5376 = vmatprep.subr.mxu0 0.0
    %5377 = vmatpush2.msra.mxu0 %v5314
    %5378 = vmatprep.subr.mxu0 0.0
    %5379 = vmatpush2.msra.mxu0 %v5313
    %5380 = vmatprep.subr.mxu0 0.0
    %5381 = vmatpush2.msra.mxu0 %v5312
    %5382 = vmatprep.subr.mxu0 0.0
    %5383 = vmatpush2.msra.mxu0 %v5311
    %5384 = vmatprep.subr.mxu0 0.0
    %5385 = vmatpush2.msra.mxu0 %v5310
    %5386 = vmatprep.subr.mxu0 0.0
    %5387 = vmatpush2.msra.mxu0 %v5309
    %5388 = vmatprep.subr.mxu0 0.0
    %5389 = vmatpush2.msra.mxu0 %v5308
    %5390 = vmatprep.subr.mxu0 0.0
    %5391 = vmatpush2.msra.mxu0 %v5307
    %5392 = vmatprep.subr.mxu0 0.0
    %5393 = vmatpush2.msra.mxu0 %v5306
    %5394 = vmatprep.subr.mxu0 0.0
    %5395 = vmatpush2.msra.mxu0 %v5305
    %5396 = vmatprep.subr.mxu0 0.0
    %5397 = vmatpush2.msra.mxu0 %v5304
    %5398 = vmatprep.subr.mxu0 0.0
    %5399 = vmatpush2.msra.mxu0 %v5303
    %5400 = vmatprep.mubr.f32.mxu0 %v5330
    %5401 = vmatmul.mubr.f32.gmra.mxu0 %v5329
    %v5402 = vpop.f32.mrf.mxu0
    %v5403 = vadd.f32 0.0, %v5402
    %v5404 = vpop.f32.mrf.mxu0
    %5405 = vdwg.mxu0
    %5406 = vmatprep.subr.mxu0 0.0
    %5407 = vmatpush1.msra.mxu0 0.0
    %5408 = vmatprep.subr.mxu0 0.0
    %5409 = vmatpush1.msra.mxu0 0.0
    %5410 = vmatprep.subr.mxu0 0.0
    %5411 = vmatpush1.msra.mxu0 0.0
    %5412 = vmatprep.subr.mxu0 0.0
    %5413 = vmatpush1.msra.mxu0 0.0
    %5414 = vmatprep.subr.mxu0 0.0
    %5415 = vmatpush1.msra.mxu0 0.0
    %5416 = vmatprep.subr.mxu0 0.0
    %5417 = vmatpush1.msra.mxu0 0.0
    %5418 = vmatprep.subr.mxu0 0.0
    %5419 = vmatpush1.msra.mxu0 0.0
    %5420 = vmatprep.subr.mxu0 0.0
    %5421 = vmatpush1.msra.mxu0 0.0
    %5422 = vmatprep.subr.mxu0 0.0
    %5423 = vmatpush1.msra.mxu0 0.0
    %5424 = vmatprep.subr.mxu0 0.0
    %5425 = vmatpush1.msra.mxu0 0.0
    %5426 = vmatprep.subr.mxu0 0.0
    %5427 = vmatpush1.msra.mxu0 0.0
    %5428 = vmatprep.subr.mxu0 0.0
    %5429 = vmatpush1.msra.mxu0 0.0
    %5430 = vmatprep.subr.mxu0 0.0
    %5431 = vmatpush1.msra.mxu0 %v5322
    %5432 = vmatprep.subr.mxu0 0.0
    %5433 = vmatpush1.msra.mxu0 %v5321
    %5434 = vmatprep.subr.mxu0 0.0
    %5435 = vmatpush1.msra.mxu0 %v5320
    %5436 = vmatprep.subr.mxu0 0.0
    %5437 = vmatpush1.msra.mxu0 %v5319
    %5438 = vmatprep.subr.mxu0 0.0
    %5439 = vmatpush2.msra.mxu0 0.0
    %5440 = vmatprep.subr.mxu0 0.0
    %5441 = vmatpush2.msra.mxu0 0.0
    %5442 = vmatprep.subr.mxu0 0.0
    %5443 = vmatpush2.msra.mxu0 0.0
    %5444 = vmatprep.subr.mxu0 0.0
    %5445 = vmatpush2.msra.mxu0 0.0
    %5446 = vmatprep.subr.mxu0 0.0
    %5447 = vmatpush2.msra.mxu0 0.0
    %5448 = vmatprep.subr.mxu0 0.0
    %5449 = vmatpush2.msra.mxu0 0.0
    %5450 = vmatprep.subr.mxu0 0.0
    %5451 = vmatpush2.msra.mxu0 0.0
    %5452 = vmatprep.subr.mxu0 0.0
    %5453 = vmatpush2.msra.mxu0 0.0
    %5454 = vmatprep.subr.mxu0 0.0
    %5455 = vmatpush2.msra.mxu0 0.0
    %5456 = vmatprep.subr.mxu0 0.0
    %5457 = vmatpush2.msra.mxu0 0.0
    %5458 = vmatprep.subr.mxu0 0.0
    %5459 = vmatpush2.msra.mxu0 0.0
    %5460 = vmatprep.subr.mxu0 0.0
    %5461 = vmatpush2.msra.mxu0 0.0
    %5462 = vmatprep.subr.mxu0 0.0
    %5463 = vmatpush2.msra.mxu0 0.0
    %5464 = vmatprep.subr.mxu0 0.0
    %5465 = vmatpush2.msra.mxu0 0.0
    %5466 = vmatprep.subr.mxu0 0.0
    %5467 = vmatpush2.msra.mxu0 0.0
    %5468 = vmatprep.subr.mxu0 0.0
    %5469 = vmatpush2.msra.mxu0 0.0
    %5470 = vmatprep.mubr.f32.mxu0 0.0
    %5471 = vmatmul.mubr.f32.gmra.mxu0 %v5334
    %v5472 = vpop.f32.mrf.mxu0
    %v5473 = vadd.f32 %v5403, %v5472
    %v5474 = vpop.f32.mrf.mxu0
    %5475 = vdwg.mxu0
    %v5476 = vadd.f32 %v5154, %v5473
    %v5477 = vmul.f32 %v5476, 0.0051020407
    %v5478 = vld [vmem:[#allocation26] sm:$0x1]
    %v5480 = vlaneseq
    %v5481 = vshrl.u32 %v5480, 7
    %v5482 = vsub.s32 0, %v5481
    %v5483 = vrot.slane %v5478, %v5482
    %v5485 = vadd.f32 %v5477, %v5483
    %vm5486 = vcmask 74752
    %5487 = vst.msk [vmem:[#allocation28] sm:$0x3] %vm5486, %v5485
    // Predicated region
    $region126: #{tpu_custom_call.1} parent=1 // pred_check
      _
    $region127: #{tpu_custom_call.1} parent=1 // pred_check_branch
      %5489 = sbr.rel (0) target = $region129
    $region128: #{tpu_custom_call.1} parent=1 // pred_region
      %s5491 = ssub.s32 32, 32
      %5492 = vsyncadd [#allocation7], %s5491
      %s5494 = sshll.u32 [#allocation28], 4
      %s5495 = int_to_ptr.vmem [resolvable:$true] %s5494
      %5497 = dma.vmem_to_hbm [thread:$0]  %s5495, 32, %s17, [#allocation7]
    $region129: #{tpu_custom_call.1} parent=1 // pred_fallthru
      _
    // Predicated region
    $region130: #{tpu_custom_call.1} parent=1 // pred_check
      _
    $region131: #{tpu_custom_call.1} parent=1 // pred_check_branch
      %5499 = sbr.rel (0) target = $region133
    $region132: #{tpu_custom_call.1} parent=1 // pred_region
      %5500 = dma.done [#allocation7], 32
    $region133: #{tpu_custom_call.1} parent=1 // pred_fallthru
      _
    %5501 = vsyncpa [#allocation6], 1
    %5502 = vsyncpa [#allocation9], 1
    %5503 = vsyncpa [#allocation12], 1
    %5504 = vsyncpa [#allocation15], 1
    %5505 = vsyncpa [#allocation18], 1
    %5506 = vsyncpa [#allocation21], 1
    %5507 = vsyncpa [#allocation24], 1
    %5508 = vsyncpa [#allocation27], 1
    %5509 = vsyncpa [#allocation7], 1

</llo_original>
